<compile_context>
chip_gen: v7x
topology: tpu7x:2x2x1
jax: 0.10.0
libtpu: 0.0.40
codegen_flags: <defaults>
</compile_context>

<pallas_src>
import math
import functools

import jax
import jax.numpy as jnp
from jax import lax
from jax.experimental import pallas as pl
from jax.experimental.pallas import tpu as pltpu


# ----------------------------- config helpers -------------------------------

@functools.lru_cache(maxsize=None)
def _vmem_limit_bytes():
    """Generation-aware scoped-VMEM budget (leave headroom for compiler
    scratch / double buffering)."""
    try:
        cap = int(pltpu.get_tpu_info().vmem_capacity_bytes)
    except Exception:
        return 64 * 1024 * 1024
    return max(32 * 1024 * 1024, (cap // 8) * 7)


# ----------------------------- math helpers ---------------------------------

def _layernorm(z, w, b, eps=1e-5):
    m = jnp.mean(z, axis=-1, keepdims=True)
    v = jnp.mean((z - m) ** 2, axis=-1, keepdims=True)
    return (z - m) * lax.rsqrt(v + eps) * w + b


def _gelu_tanh(x):
    c = math.sqrt(2.0 / math.pi)
    return 0.5 * x * (1.0 + jnp.tanh(c * (x + 0.044715 * x * x * x)))


# ----------------------------- Pallas kernels -------------------------------

def transformer_block_kernel(n_heads,
                             x_ref, ln1w_ref, ln1b_ref,
                             wqkv_ref, bqkv_ref, wo_ref, bo_ref,
                             ln2w_ref, ln2b_ref,
                             wfc_ref, bfc_ref, wpr_ref, bpr_ref,
                             out_ref):
    f32 = jnp.float32
    bf16 = jnp.bfloat16

    x = x_ref[0]                                   # (T, C) f32 residual stream
    T, C = x.shape
    H = n_heads
    D = C // H
    scale = 1.0 / math.sqrt(D)

    # --- attention branch: LN -> fused wide QKV -> per-head causal softmax ---
    h = _layernorm(x, ln1w_ref[0], ln1b_ref[0]).astype(bf16)           # (T, C)
    qkv = jnp.dot(h, wqkv_ref[...],
                  preferred_element_type=f32) + bqkv_ref[0]            # (T, 3C) f32

    # causal mask built ONCE as (T,T); finite fill keeps masking a plain select
    row = lax.broadcasted_iota(jnp.int32, (T, T), 0)
    col = lax.broadcasted_iota(jnp.int32, (T, T), 1)
    causal = col <= row

    nt_dims = (((1,), (1,)), ((), ()))             # (T,D) x (T,D)^T -> (T,T)
    head_outs = []
    for hh in range(H):
        lo = hh * D
        qh = (qkv[:, lo:lo + D] * scale).astype(bf16)                  # (T, D)
        kh = qkv[:, C + lo:C + lo + D].astype(bf16)                    # (T, D)
        vh = qkv[:, 2 * C + lo:2 * C + lo + D].astype(bf16)            # (T, D)

        s = lax.dot_general(qh, kh, nt_dims, preferred_element_type=f32)
        s = jnp.where(causal, s, -1e30)
        s = s - jnp.max(s, axis=-1, keepdims=True)
        p = jnp.exp(s)
        p = p * pl.reciprocal(jnp.sum(p, axis=-1, keepdims=True), approx=True)
        head_outs.append(jnp.dot(p.astype(bf16), vh,
                                 preferred_element_type=f32))          # (T, D)

    # concat heads back to (T,C): out-projection contracts over the full
    # feature dim on the MXU (full K depth, lane-dense N=C output).
    y = jnp.concatenate(head_outs, axis=-1).astype(bf16)               # (T, C)
    x = x + jnp.dot(y, wo_ref[...], preferred_element_type=f32) + bo_ref[0]

    # --- MLP branch ---
    h2 = _layernorm(x, ln2w_ref[0], ln2b_ref[0]).astype(bf16)
    g = jnp.dot(h2, wfc_ref[...], preferred_element_type=f32) + bfc_ref[0]
    g = _gelu_tanh(g).astype(bf16)
    m = jnp.dot(g, wpr_ref[...], preferred_element_type=f32) + bpr_ref[0]

    out_ref[0] = x + m


def final_ln_kernel(x_ref, lnw_ref, lnb_ref, out_ref):
    # computed once per batch element (hoisted out of the vocab-tiled lm_head)
    out_ref[0] = _layernorm(x_ref[0], lnw_ref[0], lnb_ref[0]).astype(out_ref.dtype)


def lm_head_kernel(x_ref, wlm_ref, out_ref):
    out_ref[0] = jnp.dot(x_ref[0], wlm_ref[...],
                         preferred_element_type=jnp.float32)


# ----------------------------- wrappers --------------------------------------

_SINGLE_BUFFER_WEIGHTS = True   # flipped off if this jax build rejects pl.Buffered(1)


def _block_call(x, bw, n_heads, single_buffer_weights):
    B, T, C = x.shape
    H = n_heads

    weights = [bw['ln1_w'], bw['ln1_b'],
               bw['w_qkv'], bw['b_qkv'], bw['w_o'], bw['b_o'],
               bw['ln2_w'], bw['ln2_b'],
               bw['w_fc'], bw['b_fc'], bw['w_pr'], bw['b_pr']]

    # grid-invariant weights: single-buffer to halve their resident VMEM
    wkw = dict(pipeline_mode=pl.Buffered(1)) if single_buffer_weights else {}
    in_specs = [pl.BlockSpec((1, T, C), lambda b: (b, 0, 0))]
    for w in weights:
        nd = w.ndim
        in_specs.append(pl.BlockSpec(w.shape, lambda b, _nd=nd: (0,) * _nd, **wkw))

    flops = int(B * (2 * T * C * 3 * C        # fused QKV projection
                     + 4 * T * T * C          # QK^T + PV over all heads
                     + 2 * T * C * C          # output projection
                     + 16 * T * C * C))       # MLP (two 4C matmuls)
    transcendentals = int(B * (H * T * T + 4 * T * C))
    bytes_accessed = int(sum(a.size * a.dtype.itemsize for a in [x] + weights)
                         + x.size * 4)

    return pl.pallas_call(
        functools.partial(transformer_block_kernel, n_heads),
        out_shape=jax.ShapeDtypeStruct((B, T, C), jnp.float32),
        grid=(B,),
        in_specs=in_specs,
        out_specs=pl.BlockSpec((1, T, C), lambda b: (b, 0, 0)),
        compiler_params=pltpu.CompilerParams(
            dimension_semantics=("parallel",),
            vmem_limit_bytes=_vmem_limit_bytes()),
        cost_estimate=pl.CostEstimate(flops=flops,
                                      transcendentals=transcendentals,
                                      bytes_accessed=bytes_accessed),
    )(x, *weights)


def run_block(x, bw, n_heads):
    global _SINGLE_BUFFER_WEIGHTS
    if _SINGLE_BUFFER_WEIGHTS:
        try:
            return _block_call(x, bw, n_heads, True)
        except Exception:   # pragma: no cover - fallback for jax w/o Buffered(1)
            _SINGLE_BUFFER_WEIGHTS = False
    return _block_call(x, bw, n_heads, False)


def run_final_ln(x, lnw, lnb):
    B, T, C = x.shape
    return pl.pallas_call(
        final_ln_kernel,
        out_shape=jax.ShapeDtypeStruct((B, T, C), jnp.bfloat16),
        grid=(B,),
        in_specs=[pl.BlockSpec((1, T, C), lambda b: (b, 0, 0)),
                  pl.BlockSpec(lnw.shape, lambda b: (0, 0)),
                  pl.BlockSpec(lnb.shape, lambda b: (0, 0))],
        out_specs=pl.BlockSpec((1, T, C), lambda b: (b, 0, 0)),
        compiler_params=pltpu.CompilerParams(
            dimension_semantics=("parallel",),
            vmem_limit_bytes=_vmem_limit_bytes()),
    )(x, lnw, lnb)


def run_lm_head(x_bf16, wlm, *, v_tile=2048):
    B, T, C = x_bf16.shape
    V = wlm.shape[1]
    tv = V if V <= v_tile else v_tile     # keep a multiple of 256 at real sizes
    nv = pl.cdiv(V, tv)

    flops = int(2 * B * T * C * V)
    bytes_accessed = int(x_bf16.size * 2 + wlm.size * 2 + B * T * V * 4)

    return pl.pallas_call(
        lm_head_kernel,
        out_shape=jax.ShapeDtypeStruct((B, T, V), jnp.float32),
        grid=(B, nv),
        in_specs=[pl.BlockSpec((1, T, C), lambda b, v: (b, 0, 0)),
                  pl.BlockSpec((C, tv), lambda b, v: (0, v))],
        out_specs=pl.BlockSpec((1, T, tv), lambda b, v: (b, 0, v)),
        compiler_params=pltpu.CompilerParams(
            dimension_semantics=("parallel", "parallel"),
            vmem_limit_bytes=_vmem_limit_bytes()),
        cost_estimate=pl.CostEstimate(flops=flops, transcendentals=0,
                                      bytes_accessed=bytes_accessed),
    )(x_bf16, wlm)


def prep_params(params):
    """Wrapper-side layout plumbing: cast matmul weights to bf16; biases, LN
    params and the residual stream stay f32."""
    bf16 = jnp.bfloat16
    blocks = []
    for blk in params['blocks']:
        blocks.append({
            'ln1_w': blk['ln1_w'], 'ln1_b': blk['ln1_b'],
            'w_qkv': jnp.asarray(blk['w_qkv'], bf16), 'b_qkv': blk['b_qkv'],
            'w_o': jnp.asarray(blk['w_o'], bf16), 'b_o': blk['b_o'],
            'ln2_w': blk['ln2_w'], 'ln2_b': blk['ln2_b'],
            'w_fc': jnp.asarray(blk['w_fc'], bf16), 'b_fc': blk['b_fc'],
            'w_pr': jnp.asarray(blk['w_pr'], bf16), 'b_pr': blk['b_pr'],
        })
    return {
        'wte': params['wte'], 'wpe': params['wpe'],
        'ln_f_w': params['ln_f_w'], 'ln_f_b': params['ln_f_b'],
        'lm_head': jnp.asarray(params['lm_head'], bf16),
        'blocks': blocks,
    }


def gpt_forward(idx, pp, n_heads):
    B, T = idx.shape
    # TODO(synk): token-embedding gather stays as an XLA gather (no Pallas
    #             DMA-gather kernel for the embedding table here).
    x = pp['wte'][idx] + pp['wpe'][:T][None, :, :]            # (B, T, C) f32
    for bw in pp['blocks']:
        x = run_block(x, bw, n_heads)
    x = run_final_ln(x, pp['ln_f_w'], pp['ln_f_b'])           # (B, T, C) bf16
    return run_lm_head(x, pp['lm_head'])


# ----------------------------- pure-JAX reference ----------------------------

def gpt_reference(idx, params, n_heads):
    B, T = idx.shape
    x = params['wte'][idx] + params['wpe'][:T][None]
    C = x.shape[-1]
    D = C // n_heads
    causal = jnp.tril(jnp.ones((T, T), dtype=bool))
    for blk in params['blocks']:
        h = _layernorm(x, blk['ln1_w'][0], blk['ln1_b'][0])
        qkv = h @ blk['w_qkv'] + blk['b_qkv'][0]
        q, k, v = jnp.split(qkv, 3, axis=-1)
        q = q.reshape(B, T, n_heads, D).transpose(0, 2, 1, 3)
        k = k.reshape(B, T, n_heads, D).transpose(0, 2, 1, 3)
        v = v.reshape(B, T, n_heads, D).transpose(0, 2, 1, 3)
        att = (q @ k.transpose(0, 1, 3, 2)) / math.sqrt(D)
        att = jnp.where(causal[None, None], att, -jnp.inf)
        att = jax.nn.softmax(att, axis=-1)
        y = (att @ v).transpose(0, 2, 1, 3).reshape(B, T, C)
        x = x + (y @ blk['w_o'] + blk['b_o'][0])
        h2 = _layernorm(x, blk['ln2_w'][0], blk['ln2_b'][0])
        g = _gelu_tanh(h2 @ blk['w_fc'] + blk['b_fc'][0])
        x = x + (g @ blk['w_pr'] + blk['b_pr'][0])
    x = _layernorm(x, params['ln_f_w'][0], params['ln_f_b'][0])
    return x @ params['lm_head']


# ----------------------------- params -----------------------------------------

def init_params(key, vocab_size, block_size, n_layers, n_embed):
    C = n_embed
    ks = iter(jax.random.split(key, 5 + 12 * n_layers))
    std = 0.02

    def nrm(shape, scale=std):
        return jax.random.normal(next(ks), shape, jnp.float32) * scale

    params = {
        'wte': nrm((vocab_size, C)),
        'wpe': nrm((block_size, C)),
        'ln_f_w': 1.0 + nrm((1, C), 0.1),
        'ln_f_b': nrm((1, C), 0.1),
        'lm_head': nrm((C, vocab_size)),
        'blocks': [],
    }
    for _ in range(n_layers):
        params['blocks'].append({
            'ln1_w': 1.0 + nrm((1, C), 0.1), 'ln1_b': nrm((1, C), 0.1),
            'w_qkv': nrm((C, 3 * C)), 'b_qkv': nrm((1, 3 * C)),
            'w_o': nrm((C, C)), 'b_o': nrm((1, C)),
            'ln2_w': 1.0 + nrm((1, C), 0.1), 'ln2_b': nrm((1, C), 0.1),
            'w_fc': nrm((C, 4 * C)), 'b_fc': nrm((1, 4 * C)),
            'w_pr': nrm((4 * C, C)), 'b_pr': nrm((1, C)),
        })
    return params


# ----------------------------- main -------------------------------------------

if __name__ == "__main__":
    # small GPTConfig: block_size=8, vocab_size=64, n_layers=2, n_heads=4, n_embed=32
    BLOCK_SIZE, VOCAB, N_LAYERS, N_HEADS, N_EMBED = 8, 64, 2, 4, 32
    B, T = 2, 8

    key = jax.random.PRNGKey(0)
    k_params, k_idx = jax.random.split(key)
    params = init_params(k_params, VOCAB, BLOCK_SIZE, N_LAYERS, N_EMBED)
    idx = jax.random.randint(k_idx, (B, T), 0, VOCAB, dtype=jnp.int32)

    prepped = prep_params(params)
    logits = jax.block_until_ready(gpt_forward(idx, prepped, N_HEADS))

    ref = jax.block_until_ready(gpt_reference(idx, params, N_HEADS))
    assert logits.shape == (B, T, VOCAB)
    assert bool(jnp.all(jnp.isfinite(logits)))
    # bf16 matmul operands + EUP approx reciprocal -> loose-ish tolerance
    err = float(jnp.max(jnp.abs(logits - ref)))
    assert bool(jnp.allclose(logits, ref, atol=2e-2, rtol=2e-2)), err

    print("KERNEL_OK")
</pallas_src>

<mosaic_0001>
module attributes {stable_mosaic.version = 11 : i64} {
  func.func @transformer_block_kernel(%arg0: i32, %arg1: memref<1x8x32xf32, #tpu.memory_space<vmem>>, %arg2: memref<1x32xf32, #tpu.memory_space<vmem>>, %arg3: memref<1x32xf32, #tpu.memory_space<vmem>>, %arg4: memref<32x96xbf16, #tpu.memory_space<vmem>>, %arg5: memref<1x96xf32, #tpu.memory_space<vmem>>, %arg6: memref<32x32xbf16, #tpu.memory_space<vmem>>, %arg7: memref<1x32xf32, #tpu.memory_space<vmem>>, %arg8: memref<1x32xf32, #tpu.memory_space<vmem>>, %arg9: memref<1x32xf32, #tpu.memory_space<vmem>>, %arg10: memref<32x128xbf16, #tpu.memory_space<vmem>>, %arg11: memref<1x128xf32, #tpu.memory_space<vmem>>, %arg12: memref<128x32xbf16, #tpu.memory_space<vmem>>, %arg13: memref<1x32xf32, #tpu.memory_space<vmem>>, %arg14: memref<1x8x32xf32, #tpu.memory_space<vmem>>) attributes {dimension_semantics = [#tpu.dimension_semantics<parallel>], iteration_bounds = array<i64: 2>, scalar_prefetch = 0 : i64, scratch_operands = 0 : i64, tpu.core_type = #tpu.core_type<tc>, window_params = [{transform_indices = @transform_0, window_bounds = array<i64: 1, 8, 32>}, {pipeline_mode = #tpu.pipeline_mode<synchronous>, transform_indices = @transform_1, window_bounds = array<i64: 1, 32>}, {pipeline_mode = #tpu.pipeline_mode<synchronous>, transform_indices = @transform_2, window_bounds = array<i64: 1, 32>}, {pipeline_mode = #tpu.pipeline_mode<synchronous>, transform_indices = @transform_3, window_bounds = array<i64: 32, 96>}, {pipeline_mode = #tpu.pipeline_mode<synchronous>, transform_indices = @transform_4, window_bounds = array<i64: 1, 96>}, {pipeline_mode = #tpu.pipeline_mode<synchronous>, transform_indices = @transform_5, window_bounds = array<i64: 32, 32>}, {pipeline_mode = #tpu.pipeline_mode<synchronous>, transform_indices = @transform_6, window_bounds = array<i64: 1, 32>}, {pipeline_mode = #tpu.pipeline_mode<synchronous>, transform_indices = @transform_7, window_bounds = array<i64: 1, 32>}, {pipeline_mode = #tpu.pipeline_mode<synchronous>, transform_indices = @transform_8, window_bounds = array<i64: 1, 32>}, {pipeline_mode = #tpu.pipeline_mode<synchronous>, transform_indices = @transform_9, window_bounds = array<i64: 32, 128>}, {pipeline_mode = #tpu.pipeline_mode<synchronous>, transform_indices = @transform_10, window_bounds = array<i64: 1, 128>}, {pipeline_mode = #tpu.pipeline_mode<synchronous>, transform_indices = @transform_11, window_bounds = array<i64: 128, 32>}, {pipeline_mode = #tpu.pipeline_mode<synchronous>, transform_indices = @transform_12, window_bounds = array<i64: 1, 32>}, {transform_indices = @transform_13, window_bounds = array<i64: 1, 8, 32>}]} {
    %c0 = arith.constant 0 : index
    %c0_0 = arith.constant 0 : index
    %c0_1 = arith.constant 0 : index
    %0 = vector.load %arg1[%c0, %c0_0, %c0_1] : memref<1x8x32xf32, #tpu.memory_space<vmem>>, vector<1x8x32xf32>
    %1 = vector.shape_cast %0 : vector<1x8x32xf32> to vector<8x32xf32>
    %c0_2 = arith.constant 0 : index
    %c0_3 = arith.constant 0 : index
    %2 = vector.load %arg2[%c0_2, %c0_3] : memref<1x32xf32, #tpu.memory_space<vmem>>, vector<1x32xf32>
    %3 = vector.shape_cast %2 : vector<1x32xf32> to vector<32xf32>
    %c0_4 = arith.constant 0 : index
    %c0_5 = arith.constant 0 : index
    %4 = vector.load %arg3[%c0_4, %c0_5] : memref<1x32xf32, #tpu.memory_space<vmem>>, vector<1x32xf32>
    %5 = vector.shape_cast %4 : vector<1x32xf32> to vector<32xf32>
    %cst = arith.constant dense<0.000000e+00> : vector<8xf32>
    %6 = vector.multi_reduction <add>, %1, %cst [1] : vector<8x32xf32> to vector<8xf32>
    %7 = vector.shape_cast %6 : vector<8xf32> to vector<8x1xf32>
    %cst_6 = arith.constant 3.200000e+01 : f32
    %8 = vector.broadcast %cst_6 : f32 to vector<8x1xf32>
    %9 = arith.divf %7, %8 : vector<8x1xf32>
    %10 = vector.broadcast %9 : vector<8x1xf32> to vector<8x32xf32>
    %11 = arith.subf %1, %10 : vector<8x32xf32>
    %12 = arith.mulf %11, %11 : vector<8x32xf32>
    %cst_7 = arith.constant dense<0.000000e+00> : vector<8xf32>
    %13 = vector.multi_reduction <add>, %12, %cst_7 [1] : vector<8x32xf32> to vector<8xf32>
    %14 = vector.shape_cast %13 : vector<8xf32> to vector<8x1xf32>
    %cst_8 = arith.constant 3.200000e+01 : f32
    %15 = vector.broadcast %cst_8 : f32 to vector<8x1xf32>
    %16 = arith.divf %14, %15 : vector<8x1xf32>
    %17 = vector.broadcast %9 : vector<8x1xf32> to vector<8x32xf32>
    %18 = arith.subf %1, %17 : vector<8x32xf32>
    %cst_9 = arith.constant 9.99999974E-6 : f32
    %19 = vector.broadcast %cst_9 : f32 to vector<8x1xf32>
    %20 = arith.addf %16, %19 : vector<8x1xf32>
    %21 = math.rsqrt %20 : vector<8x1xf32>
    %22 = vector.broadcast %21 : vector<8x1xf32> to vector<8x32xf32>
    %23 = arith.mulf %18, %22 : vector<8x32xf32>
    %24 = vector.shape_cast %3 : vector<32xf32> to vector<1x32xf32>
    %25 = vector.broadcast %24 : vector<1x32xf32> to vector<8x32xf32>
    %26 = arith.mulf %23, %25 : vector<8x32xf32>
    %27 = vector.shape_cast %5 : vector<32xf32> to vector<1x32xf32>
    %28 = vector.broadcast %27 : vector<1x32xf32> to vector<8x32xf32>
    %29 = arith.addf %26, %28 : vector<8x32xf32>
    %30 = arith.truncf %29 : vector<8x32xf32> to vector<8x32xbf16>
    %c0_10 = arith.constant 0 : index
    %c0_11 = arith.constant 0 : index
    %31 = vector.load %arg4[%c0_10, %c0_11] : memref<32x96xbf16, #tpu.memory_space<vmem>>, vector<32x96xbf16>
    %cst_12 = arith.constant dense<0.000000e+00> : vector<8x96xf32>
    %32 = tpu.matmul %30, %31, %cst_12 {dimension_numbers = #tpu.dot_dimension_numbers<[1], [0], [0], [1], [0, 0, 1, 1], [], []>} : vector<8x32xbf16>, vector<32x96xbf16>, vector<8x96xf32> -> vector<8x96xf32>
    %c0_13 = arith.constant 0 : index
    %c0_14 = arith.constant 0 : index
    %33 = vector.load %arg5[%c0_13, %c0_14] : memref<1x96xf32, #tpu.memory_space<vmem>>, vector<1x96xf32>
    %34 = vector.shape_cast %33 : vector<1x96xf32> to vector<96xf32>
    %35 = vector.shape_cast %34 : vector<96xf32> to vector<1x96xf32>
    %36 = vector.broadcast %35 : vector<1x96xf32> to vector<8x96xf32>
    %37 = arith.addf %32, %36 : vector<8x96xf32>
    %38 = tpu.iota {dimensions = array<i32: 0>} : vector<8x8xi32>
    %39 = tpu.iota {dimensions = array<i32: 1>} : vector<8x8xi32>
    %40 = arith.cmpi sle, %39, %38 : vector<8x8xi32>
    %41 = vector.extract_strided_slice %37 {offsets = [0, 0], sizes = [8, 8], strides = [1, 1]} : vector<8x96xf32> to vector<8x8xf32>
    %cst_15 = arith.constant 0.353553385 : f32
    %42 = vector.broadcast %cst_15 : f32 to vector<8x8xf32>
    %43 = arith.mulf %41, %42 : vector<8x8xf32>
    %44 = arith.truncf %43 : vector<8x8xf32> to vector<8x8xbf16>
    %45 = vector.extract_strided_slice %37 {offsets = [0, 32], sizes = [8, 8], strides = [1, 1]} : vector<8x96xf32> to vector<8x8xf32>
    %46 = arith.truncf %45 : vector<8x8xf32> to vector<8x8xbf16>
    %47 = vector.extract_strided_slice %37 {offsets = [0, 64], sizes = [8, 8], strides = [1, 1]} : vector<8x96xf32> to vector<8x8xf32>
    %48 = arith.truncf %47 : vector<8x8xf32> to vector<8x8xbf16>
    %cst_16 = arith.constant dense<0.000000e+00> : vector<8x8xf32>
    %49 = tpu.matmul %44, %46, %cst_16 {dimension_numbers = #tpu.dot_dimension_numbers<[1], [1], [0], [0], [0, 0, 1, 0], [], []>} : vector<8x8xbf16>, vector<8x8xbf16>, vector<8x8xf32> -> vector<8x8xf32>
    %cst_17 = arith.constant -1.000000e+30 : f32
    %50 = vector.broadcast %cst_17 : f32 to vector<8x8xf32>
    %51 = arith.select %40, %49, %50 : vector<8x8xi1>, vector<8x8xf32>
    %cst_18 = arith.constant dense<0xFF800000> : vector<8xf32>
    %52 = vector.multi_reduction <maximumf>, %51, %cst_18 [1] : vector<8x8xf32> to vector<8xf32>
    %53 = vector.shape_cast %52 : vector<8xf32> to vector<8x1xf32>
    %54 = vector.broadcast %53 : vector<8x1xf32> to vector<8x8xf32>
    %55 = arith.subf %51, %54 : vector<8x8xf32>
    %56 = math.exp %55 : vector<8x8xf32>
    %cst_19 = arith.constant dense<0.000000e+00> : vector<8xf32>
    %57 = vector.multi_reduction <add>, %56, %cst_19 [1] : vector<8x8xf32> to vector<8xf32>
    %58 = vector.shape_cast %57 : vector<8xf32> to vector<8x1xf32>
    %59 = tpu.reciprocal %58 {approx = true} : vector<8x1xf32> -> vector<8x1xf32>
    %60 = vector.broadcast %59 : vector<8x1xf32> to vector<8x8xf32>
    %61 = arith.mulf %56, %60 : vector<8x8xf32>
    %62 = arith.truncf %61 : vector<8x8xf32> to vector<8x8xbf16>
    %cst_20 = arith.constant dense<0.000000e+00> : vector<8x8xf32>
    %63 = tpu.matmul %62, %48, %cst_20 {dimension_numbers = #tpu.dot_dimension_numbers<[1], [0], [0], [1], [0, 0, 1, 1], [], []>} : vector<8x8xbf16>, vector<8x8xbf16>, vector<8x8xf32> -> vector<8x8xf32>
    %64 = vector.extract_strided_slice %37 {offsets = [0, 8], sizes = [8, 8], strides = [1, 1]} : vector<8x96xf32> to vector<8x8xf32>
    %cst_21 = arith.constant 0.353553385 : f32
    %65 = vector.broadcast %cst_21 : f32 to vector<8x8xf32>
    %66 = arith.mulf %64, %65 : vector<8x8xf32>
    %67 = arith.truncf %66 : vector<8x8xf32> to vector<8x8xbf16>
    %68 = vector.extract_strided_slice %37 {offsets = [0, 40], sizes = [8, 8], strides = [1, 1]} : vector<8x96xf32> to vector<8x8xf32>
    %69 = arith.truncf %68 : vector<8x8xf32> to vector<8x8xbf16>
    %70 = vector.extract_strided_slice %37 {offsets = [0, 72], sizes = [8, 8], strides = [1, 1]} : vector<8x96xf32> to vector<8x8xf32>
    %71 = arith.truncf %70 : vector<8x8xf32> to vector<8x8xbf16>
    %cst_22 = arith.constant dense<0.000000e+00> : vector<8x8xf32>
    %72 = tpu.matmul %67, %69, %cst_22 {dimension_numbers = #tpu.dot_dimension_numbers<[1], [1], [0], [0], [0, 0, 1, 0], [], []>} : vector<8x8xbf16>, vector<8x8xbf16>, vector<8x8xf32> -> vector<8x8xf32>
    %cst_23 = arith.constant -1.000000e+30 : f32
    %73 = vector.broadcast %cst_23 : f32 to vector<8x8xf32>
    %74 = arith.select %40, %72, %73 : vector<8x8xi1>, vector<8x8xf32>
    %cst_24 = arith.constant dense<0xFF800000> : vector<8xf32>
    %75 = vector.multi_reduction <maximumf>, %74, %cst_24 [1] : vector<8x8xf32> to vector<8xf32>
    %76 = vector.shape_cast %75 : vector<8xf32> to vector<8x1xf32>
    %77 = vector.broadcast %76 : vector<8x1xf32> to vector<8x8xf32>
    %78 = arith.subf %74, %77 : vector<8x8xf32>
    %79 = math.exp %78 : vector<8x8xf32>
    %cst_25 = arith.constant dense<0.000000e+00> : vector<8xf32>
    %80 = vector.multi_reduction <add>, %79, %cst_25 [1] : vector<8x8xf32> to vector<8xf32>
    %81 = vector.shape_cast %80 : vector<8xf32> to vector<8x1xf32>
    %82 = tpu.reciprocal %81 {approx = true} : vector<8x1xf32> -> vector<8x1xf32>
    %83 = vector.broadcast %82 : vector<8x1xf32> to vector<8x8xf32>
    %84 = arith.mulf %79, %83 : vector<8x8xf32>
    %85 = arith.truncf %84 : vector<8x8xf32> to vector<8x8xbf16>
    %cst_26 = arith.constant dense<0.000000e+00> : vector<8x8xf32>
    %86 = tpu.matmul %85, %71, %cst_26 {dimension_numbers = #tpu.dot_dimension_numbers<[1], [0], [0], [1], [0, 0, 1, 1], [], []>} : vector<8x8xbf16>, vector<8x8xbf16>, vector<8x8xf32> -> vector<8x8xf32>
    %87 = vector.extract_strided_slice %37 {offsets = [0, 16], sizes = [8, 8], strides = [1, 1]} : vector<8x96xf32> to vector<8x8xf32>
    %cst_27 = arith.constant 0.353553385 : f32
    %88 = vector.broadcast %cst_27 : f32 to vector<8x8xf32>
    %89 = arith.mulf %87, %88 : vector<8x8xf32>
    %90 = arith.truncf %89 : vector<8x8xf32> to vector<8x8xbf16>
    %91 = vector.extract_strided_slice %37 {offsets = [0, 48], sizes = [8, 8], strides = [1, 1]} : vector<8x96xf32> to vector<8x8xf32>
    %92 = arith.truncf %91 : vector<8x8xf32> to vector<8x8xbf16>
    %93 = vector.extract_strided_slice %37 {offsets = [0, 80], sizes = [8, 8], strides = [1, 1]} : vector<8x96xf32> to vector<8x8xf32>
    %94 = arith.truncf %93 : vector<8x8xf32> to vector<8x8xbf16>
    %cst_28 = arith.constant dense<0.000000e+00> : vector<8x8xf32>
    %95 = tpu.matmul %90, %92, %cst_28 {dimension_numbers = #tpu.dot_dimension_numbers<[1], [1], [0], [0], [0, 0, 1, 0], [], []>} : vector<8x8xbf16>, vector<8x8xbf16>, vector<8x8xf32> -> vector<8x8xf32>
    %cst_29 = arith.constant -1.000000e+30 : f32
    %96 = vector.broadcast %cst_29 : f32 to vector<8x8xf32>
    %97 = arith.select %40, %95, %96 : vector<8x8xi1>, vector<8x8xf32>
    %cst_30 = arith.constant dense<0xFF800000> : vector<8xf32>
    %98 = vector.multi_reduction <maximumf>, %97, %cst_30 [1] : vector<8x8xf32> to vector<8xf32>
    %99 = vector.shape_cast %98 : vector<8xf32> to vector<8x1xf32>
    %100 = vector.broadcast %99 : vector<8x1xf32> to vector<8x8xf32>
    %101 = arith.subf %97, %100 : vector<8x8xf32>
    %102 = math.exp %101 : vector<8x8xf32>
    %cst_31 = arith.constant dense<0.000000e+00> : vector<8xf32>
    %103 = vector.multi_reduction <add>, %102, %cst_31 [1] : vector<8x8xf32> to vector<8xf32>
    %104 = vector.shape_cast %103 : vector<8xf32> to vector<8x1xf32>
    %105 = tpu.reciprocal %104 {approx = true} : vector<8x1xf32> -> vector<8x1xf32>
    %106 = vector.broadcast %105 : vector<8x1xf32> to vector<8x8xf32>
    %107 = arith.mulf %102, %106 : vector<8x8xf32>
    %108 = arith.truncf %107 : vector<8x8xf32> to vector<8x8xbf16>
    %cst_32 = arith.constant dense<0.000000e+00> : vector<8x8xf32>
    %109 = tpu.matmul %108, %94, %cst_32 {dimension_numbers = #tpu.dot_dimension_numbers<[1], [0], [0], [1], [0, 0, 1, 1], [], []>} : vector<8x8xbf16>, vector<8x8xbf16>, vector<8x8xf32> -> vector<8x8xf32>
    %110 = vector.extract_strided_slice %37 {offsets = [0, 24], sizes = [8, 8], strides = [1, 1]} : vector<8x96xf32> to vector<8x8xf32>
    %cst_33 = arith.constant 0.353553385 : f32
    %111 = vector.broadcast %cst_33 : f32 to vector<8x8xf32>
    %112 = arith.mulf %110, %111 : vector<8x8xf32>
    %113 = arith.truncf %112 : vector<8x8xf32> to vector<8x8xbf16>
    %114 = vector.extract_strided_slice %37 {offsets = [0, 56], sizes = [8, 8], strides = [1, 1]} : vector<8x96xf32> to vector<8x8xf32>
    %115 = arith.truncf %114 : vector<8x8xf32> to vector<8x8xbf16>
    %116 = vector.extract_strided_slice %37 {offsets = [0, 88], sizes = [8, 8], strides = [1, 1]} : vector<8x96xf32> to vector<8x8xf32>
    %117 = arith.truncf %116 : vector<8x8xf32> to vector<8x8xbf16>
    %cst_34 = arith.constant dense<0.000000e+00> : vector<8x8xf32>
    %118 = tpu.matmul %113, %115, %cst_34 {dimension_numbers = #tpu.dot_dimension_numbers<[1], [1], [0], [0], [0, 0, 1, 0], [], []>} : vector<8x8xbf16>, vector<8x8xbf16>, vector<8x8xf32> -> vector<8x8xf32>
    %cst_35 = arith.constant -1.000000e+30 : f32
    %119 = vector.broadcast %cst_35 : f32 to vector<8x8xf32>
    %120 = arith.select %40, %118, %119 : vector<8x8xi1>, vector<8x8xf32>
    %cst_36 = arith.constant dense<0xFF800000> : vector<8xf32>
    %121 = vector.multi_reduction <maximumf>, %120, %cst_36 [1] : vector<8x8xf32> to vector<8xf32>
    %122 = vector.shape_cast %121 : vector<8xf32> to vector<8x1xf32>
    %123 = vector.broadcast %122 : vector<8x1xf32> to vector<8x8xf32>
    %124 = arith.subf %120, %123 : vector<8x8xf32>
    %125 = math.exp %124 : vector<8x8xf32>
    %cst_37 = arith.constant dense<0.000000e+00> : vector<8xf32>
    %126 = vector.multi_reduction <add>, %125, %cst_37 [1] : vector<8x8xf32> to vector<8xf32>
    %127 = vector.shape_cast %126 : vector<8xf32> to vector<8x1xf32>
    %128 = tpu.reciprocal %127 {approx = true} : vector<8x1xf32> -> vector<8x1xf32>
    %129 = vector.broadcast %128 : vector<8x1xf32> to vector<8x8xf32>
    %130 = arith.mulf %125, %129 : vector<8x8xf32>
    %131 = arith.truncf %130 : vector<8x8xf32> to vector<8x8xbf16>
    %cst_38 = arith.constant dense<0.000000e+00> : vector<8x8xf32>
    %132 = tpu.matmul %131, %117, %cst_38 {dimension_numbers = #tpu.dot_dimension_numbers<[1], [0], [0], [1], [0, 0, 1, 1], [], []>} : vector<8x8xbf16>, vector<8x8xbf16>, vector<8x8xf32> -> vector<8x8xf32>
    %133 = tpu.concatenate %63, %86, %109, %132 in 1 : vector<8x8xf32>, vector<8x8xf32>, vector<8x8xf32>, vector<8x8xf32> -> vector<8x32xf32>
    %134 = arith.truncf %133 : vector<8x32xf32> to vector<8x32xbf16>
    %c0_39 = arith.constant 0 : index
    %c0_40 = arith.constant 0 : index
    %135 = vector.load %arg6[%c0_39, %c0_40] : memref<32x32xbf16, #tpu.memory_space<vmem>>, vector<32x32xbf16>
    %cst_41 = arith.constant dense<0.000000e+00> : vector<8x32xf32>
    %136 = tpu.matmul %134, %135, %cst_41 {dimension_numbers = #tpu.dot_dimension_numbers<[1], [0], [0], [1], [0, 0, 1, 1], [], []>} : vector<8x32xbf16>, vector<32x32xbf16>, vector<8x32xf32> -> vector<8x32xf32>
    %137 = arith.addf %1, %136 : vector<8x32xf32>
    %c0_42 = arith.constant 0 : index
    %c0_43 = arith.constant 0 : index
    %138 = vector.load %arg7[%c0_42, %c0_43] : memref<1x32xf32, #tpu.memory_space<vmem>>, vector<1x32xf32>
    %139 = vector.shape_cast %138 : vector<1x32xf32> to vector<32xf32>
    %140 = vector.shape_cast %139 : vector<32xf32> to vector<1x32xf32>
    %141 = vector.broadcast %140 : vector<1x32xf32> to vector<8x32xf32>
    %142 = arith.addf %137, %141 : vector<8x32xf32>
    %c0_44 = arith.constant 0 : index
    %c0_45 = arith.constant 0 : index
    %143 = vector.load %arg8[%c0_44, %c0_45] : memref<1x32xf32, #tpu.memory_space<vmem>>, vector<1x32xf32>
    %144 = vector.shape_cast %143 : vector<1x32xf32> to vector<32xf32>
    %c0_46 = arith.constant 0 : index
    %c0_47 = arith.constant 0 : index
    %145 = vector.load %arg9[%c0_46, %c0_47] : memref<1x32xf32, #tpu.memory_space<vmem>>, vector<1x32xf32>
    %146 = vector.shape_cast %145 : vector<1x32xf32> to vector<32xf32>
    %cst_48 = arith.constant dense<0.000000e+00> : vector<8xf32>
    %147 = vector.multi_reduction <add>, %142, %cst_48 [1] : vector<8x32xf32> to vector<8xf32>
    %148 = vector.shape_cast %147 : vector<8xf32> to vector<8x1xf32>
    %cst_49 = arith.constant 3.200000e+01 : f32
    %149 = vector.broadcast %cst_49 : f32 to vector<8x1xf32>
    %150 = arith.divf %148, %149 : vector<8x1xf32>
    %151 = vector.broadcast %150 : vector<8x1xf32> to vector<8x32xf32>
    %152 = arith.subf %142, %151 : vector<8x32xf32>
    %153 = arith.mulf %152, %152 : vector<8x32xf32>
    %cst_50 = arith.constant dense<0.000000e+00> : vector<8xf32>
    %154 = vector.multi_reduction <add>, %153, %cst_50 [1] : vector<8x32xf32> to vector<8xf32>
    %155 = vector.shape_cast %154 : vector<8xf32> to vector<8x1xf32>
    %cst_51 = arith.constant 3.200000e+01 : f32
    %156 = vector.broadcast %cst_51 : f32 to vector<8x1xf32>
    %157 = arith.divf %155, %156 : vector<8x1xf32>
    %158 = vector.broadcast %150 : vector<8x1xf32> to vector<8x32xf32>
    %159 = arith.subf %142, %158 : vector<8x32xf32>
    %cst_52 = arith.constant 9.99999974E-6 : f32
    %160 = vector.broadcast %cst_52 : f32 to vector<8x1xf32>
    %161 = arith.addf %157, %160 : vector<8x1xf32>
    %162 = math.rsqrt %161 : vector<8x1xf32>
    %163 = vector.broadcast %162 : vector<8x1xf32> to vector<8x32xf32>
    %164 = arith.mulf %159, %163 : vector<8x32xf32>
    %165 = vector.shape_cast %144 : vector<32xf32> to vector<1x32xf32>
    %166 = vector.broadcast %165 : vector<1x32xf32> to vector<8x32xf32>
    %167 = arith.mulf %164, %166 : vector<8x32xf32>
    %168 = vector.shape_cast %146 : vector<32xf32> to vector<1x32xf32>
    %169 = vector.broadcast %168 : vector<1x32xf32> to vector<8x32xf32>
    %170 = arith.addf %167, %169 : vector<8x32xf32>
    %171 = arith.truncf %170 : vector<8x32xf32> to vector<8x32xbf16>
    %c0_53 = arith.constant 0 : index
    %c0_54 = arith.constant 0 : index
    %172 = vector.load %arg10[%c0_53, %c0_54] : memref<32x128xbf16, #tpu.memory_space<vmem>>, vector<32x128xbf16>
    %cst_55 = arith.constant dense<0.000000e+00> : vector<8x128xf32>
    %173 = tpu.matmul %171, %172, %cst_55 {dimension_numbers = #tpu.dot_dimension_numbers<[1], [0], [0], [1], [0, 0, 1, 1], [], []>} : vector<8x32xbf16>, vector<32x128xbf16>, vector<8x128xf32> -> vector<8x128xf32>
    %c0_56 = arith.constant 0 : index
    %c0_57 = arith.constant 0 : index
    %174 = vector.load %arg11[%c0_56, %c0_57] : memref<1x128xf32, #tpu.memory_space<vmem>>, vector<1x128xf32>
    %175 = vector.shape_cast %174 : vector<1x128xf32> to vector<128xf32>
    %176 = vector.shape_cast %175 : vector<128xf32> to vector<1x128xf32>
    %177 = vector.broadcast %176 : vector<1x128xf32> to vector<8x128xf32>
    %178 = arith.addf %173, %177 : vector<8x128xf32>
    %cst_58 = arith.constant 5.000000e-01 : f32
    %179 = vector.broadcast %cst_58 : f32 to vector<8x128xf32>
    %180 = arith.mulf %179, %178 : vector<8x128xf32>
    %cst_59 = arith.constant 4.471500e-02 : f32
    %181 = vector.broadcast %cst_59 : f32 to vector<8x128xf32>
    %182 = arith.mulf %181, %178 : vector<8x128xf32>
    %183 = arith.mulf %182, %178 : vector<8x128xf32>
    %184 = arith.mulf %183, %178 : vector<8x128xf32>
    %185 = arith.addf %178, %184 : vector<8x128xf32>
    %cst_60 = arith.constant 0.797884583 : f32
    %186 = vector.broadcast %cst_60 : f32 to vector<8x128xf32>
    %187 = arith.mulf %186, %185 : vector<8x128xf32>
    %188 = math.tanh %187 : vector<8x128xf32>
    %cst_61 = arith.constant 1.000000e+00 : f32
    %189 = vector.broadcast %cst_61 : f32 to vector<8x128xf32>
    %190 = arith.addf %189, %188 : vector<8x128xf32>
    %191 = arith.mulf %180, %190 : vector<8x128xf32>
    %192 = arith.truncf %191 : vector<8x128xf32> to vector<8x128xbf16>
    %c0_62 = arith.constant 0 : index
    %c0_63 = arith.constant 0 : index
    %193 = vector.load %arg12[%c0_62, %c0_63] : memref<128x32xbf16, #tpu.memory_space<vmem>>, vector<128x32xbf16>
    %cst_64 = arith.constant dense<0.000000e+00> : vector<8x32xf32>
    %194 = tpu.matmul %192, %193, %cst_64 {dimension_numbers = #tpu.dot_dimension_numbers<[1], [0], [0], [1], [0, 0, 1, 1], [], []>} : vector<8x128xbf16>, vector<128x32xbf16>, vector<8x32xf32> -> vector<8x32xf32>
    %c0_65 = arith.constant 0 : index
    %c0_66 = arith.constant 0 : index
    %195 = vector.load %arg13[%c0_65, %c0_66] : memref<1x32xf32, #tpu.memory_space<vmem>>, vector<1x32xf32>
    %196 = vector.shape_cast %195 : vector<1x32xf32> to vector<32xf32>
    %197 = vector.shape_cast %196 : vector<32xf32> to vector<1x32xf32>
    %198 = vector.broadcast %197 : vector<1x32xf32> to vector<8x32xf32>
    %199 = arith.addf %194, %198 : vector<8x32xf32>
    %200 = arith.addf %142, %199 : vector<8x32xf32>
    %c0_67 = arith.constant 0 : index
    %c0_68 = arith.constant 0 : index
    %c0_69 = arith.constant 0 : index
    %201 = vector.load %arg14[%c0_67, %c0_68, %c0_69] : memref<1x8x32xf32, #tpu.memory_space<vmem>>, vector<1x8x32xf32>
    %202 = vector.shape_cast %201 : vector<1x8x32xf32> to vector<8x32xf32>
    %203 = vector.shape_cast %200 : vector<8x32xf32> to vector<1x8x32xf32>
    tpu.vector_store %arg14[%c0_67, %c0_68, %c0_69], %203 {strides = array<i32>} : memref<1x8x32xf32, #tpu.memory_space<vmem>>, vector<1x8x32xf32>,
    return
  }
  func.func @transform_0(%arg0: i32) -> (i32, i32, i32) {
    %c0_i32 = arith.constant 0 : i32
    %c0_i32_0 = arith.constant 0 : i32
    %c0_i32_1 = arith.constant 0 : i32
    return %arg0, %c0_i32, %c0_i32_0 : i32, i32, i32
  }
  func.func @transform_1(%arg0: i32) -> (i32, i32) {
    %c0_i32 = arith.constant 0 : i32
    %c0_i32_0 = arith.constant 0 : i32
    %c0_i32_1 = arith.constant 0 : i32
    return %c0_i32, %c0_i32_0 : i32, i32
  }
  func.func @transform_2(%arg0: i32) -> (i32, i32) {
    %c0_i32 = arith.constant 0 : i32
    %c0_i32_0 = arith.constant 0 : i32
    %c0_i32_1 = arith.constant 0 : i32
    return %c0_i32, %c0_i32_0 : i32, i32
  }
  func.func @transform_3(%arg0: i32) -> (i32, i32) {
    %c0_i32 = arith.constant 0 : i32
    %c0_i32_0 = arith.constant 0 : i32
    %c0_i32_1 = arith.constant 0 : i32
    return %c0_i32, %c0_i32_0 : i32, i32
  }
  func.func @transform_4(%arg0: i32) -> (i32, i32) {
    %c0_i32 = arith.constant 0 : i32
    %c0_i32_0 = arith.constant 0 : i32
    %c0_i32_1 = arith.constant 0 : i32
    return %c0_i32, %c0_i32_0 : i32, i32
  }
  func.func @transform_5(%arg0: i32) -> (i32, i32) {
    %c0_i32 = arith.constant 0 : i32
    %c0_i32_0 = arith.constant 0 : i32
    %c0_i32_1 = arith.constant 0 : i32
    return %c0_i32, %c0_i32_0 : i32, i32
  }
  func.func @transform_6(%arg0: i32) -> (i32, i32) {
    %c0_i32 = arith.constant 0 : i32
    %c0_i32_0 = arith.constant 0 : i32
    %c0_i32_1 = arith.constant 0 : i32
    return %c0_i32, %c0_i32_0 : i32, i32
  }
  func.func @transform_7(%arg0: i32) -> (i32, i32) {
    %c0_i32 = arith.constant 0 : i32
    %c0_i32_0 = arith.constant 0 : i32
    %c0_i32_1 = arith.constant 0 : i32
    return %c0_i32, %c0_i32_0 : i32, i32
  }
  func.func @transform_8(%arg0: i32) -> (i32, i32) {
    %c0_i32 = arith.constant 0 : i32
    %c0_i32_0 = arith.constant 0 : i32
    %c0_i32_1 = arith.constant 0 : i32
    return %c0_i32, %c0_i32_0 : i32, i32
  }
  func.func @transform_9(%arg0: i32) -> (i32, i32) {
    %c0_i32 = arith.constant 0 : i32
    %c0_i32_0 = arith.constant 0 : i32
    %c0_i32_1 = arith.constant 0 : i32
    return %c0_i32, %c0_i32_0 : i32, i32
  }
  func.func @transform_10(%arg0: i32) -> (i32, i32) {
    %c0_i32 = arith.constant 0 : i32
    %c0_i32_0 = arith.constant 0 : i32
    %c0_i32_1 = arith.constant 0 : i32
    return %c0_i32, %c0_i32_0 : i32, i32
  }
  func.func @transform_11(%arg0: i32) -> (i32, i32) {
    %c0_i32 = arith.constant 0 : i32
    %c0_i32_0 = arith.constant 0 : i32
    %c0_i32_1 = arith.constant 0 : i32
    return %c0_i32, %c0_i32_0 : i32, i32
  }
  func.func @transform_12(%arg0: i32) -> (i32, i32) {
    %c0_i32 = arith.constant 0 : i32
    %c0_i32_0 = arith.constant 0 : i32
    %c0_i32_1 = arith.constant 0 : i32
    return %c0_i32, %c0_i32_0 : i32, i32
  }
  func.func @transform_13(%arg0: i32) -> (i32, i32, i32) {
    %c0_i32 = arith.constant 0 : i32
    %c0_i32_0 = arith.constant 0 : i32
    %c0_i32_1 = arith.constant 0 : i32
    return %arg0, %c0_i32, %c0_i32_0 : i32, i32, i32
  }
}

module attributes {stable_mosaic.version = 11 : i64} {
  func.func @transformer_block_kernel(%arg0: i32, %arg1: memref<1x8x32xf32, #tpu.memory_space<vmem>>, %arg2: memref<1x32xf32, #tpu.memory_space<vmem>>, %arg3: memref<1x32xf32, #tpu.memory_space<vmem>>, %arg4: memref<32x96xbf16, #tpu.memory_space<vmem>>, %arg5: memref<1x96xf32, #tpu.memory_space<vmem>>, %arg6: memref<32x32xbf16, #tpu.memory_space<vmem>>, %arg7: memref<1x32xf32, #tpu.memory_space<vmem>>, %arg8: memref<1x32xf32, #tpu.memory_space<vmem>>, %arg9: memref<1x32xf32, #tpu.memory_space<vmem>>, %arg10: memref<32x128xbf16, #tpu.memory_space<vmem>>, %arg11: memref<1x128xf32, #tpu.memory_space<vmem>>, %arg12: memref<128x32xbf16, #tpu.memory_space<vmem>>, %arg13: memref<1x32xf32, #tpu.memory_space<vmem>>, %arg14: memref<1x8x32xf32, #tpu.memory_space<vmem>>) attributes {dimension_semantics = [#tpu.dimension_semantics<parallel>], iteration_bounds = array<i64: 2>, scalar_prefetch = 0 : i64, scratch_operands = 0 : i64, tpu.core_type = #tpu.core_type<tc>, window_params = [{transform_indices = @transform_0, window_bounds = array<i64: 1, 8, 32>}, {pipeline_mode = #tpu.pipeline_mode<synchronous>, transform_indices = @transform_1, window_bounds = array<i64: 1, 32>}, {pipeline_mode = #tpu.pipeline_mode<synchronous>, transform_indices = @transform_2, window_bounds = array<i64: 1, 32>}, {pipeline_mode = #tpu.pipeline_mode<synchronous>, transform_indices = @transform_3, window_bounds = array<i64: 32, 96>}, {pipeline_mode = #tpu.pipeline_mode<synchronous>, transform_indices = @transform_4, window_bounds = array<i64: 1, 96>}, {pipeline_mode = #tpu.pipeline_mode<synchronous>, transform_indices = @transform_5, window_bounds = array<i64: 32, 32>}, {pipeline_mode = #tpu.pipeline_mode<synchronous>, transform_indices = @transform_6, window_bounds = array<i64: 1, 32>}, {pipeline_mode = #tpu.pipeline_mode<synchronous>, transform_indices = @transform_7, window_bounds = array<i64: 1, 32>}, {pipeline_mode = #tpu.pipeline_mode<synchronous>, transform_indices = @transform_8, window_bounds = array<i64: 1, 32>}, {pipeline_mode = #tpu.pipeline_mode<synchronous>, transform_indices = @transform_9, window_bounds = array<i64: 32, 128>}, {pipeline_mode = #tpu.pipeline_mode<synchronous>, transform_indices = @transform_10, window_bounds = array<i64: 1, 128>}, {pipeline_mode = #tpu.pipeline_mode<synchronous>, transform_indices = @transform_11, window_bounds = array<i64: 128, 32>}, {pipeline_mode = #tpu.pipeline_mode<synchronous>, transform_indices = @transform_12, window_bounds = array<i64: 1, 32>}, {transform_indices = @transform_13, window_bounds = array<i64: 1, 8, 32>}]} {
    %c0 = arith.constant 0 : index
    %c0_0 = arith.constant 0 : index
    %c0_1 = arith.constant 0 : index
    %0 = vector.load %arg1[%c0, %c0_0, %c0_1] : memref<1x8x32xf32, #tpu.memory_space<vmem>>, vector<1x8x32xf32>
    %1 = vector.shape_cast %0 : vector<1x8x32xf32> to vector<8x32xf32>
    %c0_2 = arith.constant 0 : index
    %c0_3 = arith.constant 0 : index
    %2 = vector.load %arg2[%c0_2, %c0_3] : memref<1x32xf32, #tpu.memory_space<vmem>>, vector<1x32xf32>
    %3 = vector.shape_cast %2 : vector<1x32xf32> to vector<32xf32>
    %c0_4 = arith.constant 0 : index
    %c0_5 = arith.constant 0 : index
    %4 = vector.load %arg3[%c0_4, %c0_5] : memref<1x32xf32, #tpu.memory_space<vmem>>, vector<1x32xf32>
    %5 = vector.shape_cast %4 : vector<1x32xf32> to vector<32xf32>
    %cst = arith.constant dense<0.000000e+00> : vector<8xf32>
    %6 = vector.multi_reduction <add>, %1, %cst [1] : vector<8x32xf32> to vector<8xf32>
    %7 = vector.shape_cast %6 : vector<8xf32> to vector<8x1xf32>
    %cst_6 = arith.constant 3.200000e+01 : f32
    %8 = vector.broadcast %cst_6 : f32 to vector<8x1xf32>
    %9 = arith.divf %7, %8 : vector<8x1xf32>
    %10 = vector.broadcast %9 : vector<8x1xf32> to vector<8x32xf32>
    %11 = arith.subf %1, %10 : vector<8x32xf32>
    %12 = arith.mulf %11, %11 : vector<8x32xf32>
    %cst_7 = arith.constant dense<0.000000e+00> : vector<8xf32>
    %13 = vector.multi_reduction <add>, %12, %cst_7 [1] : vector<8x32xf32> to vector<8xf32>
    %14 = vector.shape_cast %13 : vector<8xf32> to vector<8x1xf32>
    %cst_8 = arith.constant 3.200000e+01 : f32
    %15 = vector.broadcast %cst_8 : f32 to vector<8x1xf32>
    %16 = arith.divf %14, %15 : vector<8x1xf32>
    %17 = vector.broadcast %9 : vector<8x1xf32> to vector<8x32xf32>
    %18 = arith.subf %1, %17 : vector<8x32xf32>
    %cst_9 = arith.constant 9.99999974E-6 : f32
    %19 = vector.broadcast %cst_9 : f32 to vector<8x1xf32>
    %20 = arith.addf %16, %19 : vector<8x1xf32>
    %21 = math.rsqrt %20 : vector<8x1xf32>
    %22 = vector.broadcast %21 : vector<8x1xf32> to vector<8x32xf32>
    %23 = arith.mulf %18, %22 : vector<8x32xf32>
    %24 = vector.shape_cast %3 : vector<32xf32> to vector<1x32xf32>
    %25 = vector.broadcast %24 : vector<1x32xf32> to vector<8x32xf32>
    %26 = arith.mulf %23, %25 : vector<8x32xf32>
    %27 = vector.shape_cast %5 : vector<32xf32> to vector<1x32xf32>
    %28 = vector.broadcast %27 : vector<1x32xf32> to vector<8x32xf32>
    %29 = arith.addf %26, %28 : vector<8x32xf32>
    %30 = arith.truncf %29 : vector<8x32xf32> to vector<8x32xbf16>
    %c0_10 = arith.constant 0 : index
    %c0_11 = arith.constant 0 : index
    %31 = vector.load %arg4[%c0_10, %c0_11] : memref<32x96xbf16, #tpu.memory_space<vmem>>, vector<32x96xbf16>
    %cst_12 = arith.constant dense<0.000000e+00> : vector<8x96xf32>
    %32 = tpu.matmul %30, %31, %cst_12 {dimension_numbers = #tpu.dot_dimension_numbers<[1], [0], [0], [1], [0, 0, 1, 1], [], []>} : vector<8x32xbf16>, vector<32x96xbf16>, vector<8x96xf32> -> vector<8x96xf32>
    %c0_13 = arith.constant 0 : index
    %c0_14 = arith.constant 0 : index
    %33 = vector.load %arg5[%c0_13, %c0_14] : memref<1x96xf32, #tpu.memory_space<vmem>>, vector<1x96xf32>
    %34 = vector.shape_cast %33 : vector<1x96xf32> to vector<96xf32>
    %35 = vector.shape_cast %34 : vector<96xf32> to vector<1x96xf32>
    %36 = vector.broadcast %35 : vector<1x96xf32> to vector<8x96xf32>
    %37 = arith.addf %32, %36 : vector<8x96xf32>
    %38 = tpu.iota {dimensions = array<i32: 0>} : vector<8x8xi32>
    %39 = tpu.iota {dimensions = array<i32: 1>} : vector<8x8xi32>
    %40 = arith.cmpi sle, %39, %38 : vector<8x8xi32>
    %41 = vector.extract_strided_slice %37 {offsets = [0, 0], sizes = [8, 8], strides = [1, 1]} : vector<8x96xf32> to vector<8x8xf32>
    %cst_15 = arith.constant 0.353553385 : f32
    %42 = vector.broadcast %cst_15 : f32 to vector<8x8xf32>
    %43 = arith.mulf %41, %42 : vector<8x8xf32>
    %44 = arith.truncf %43 : vector<8x8xf32> to vector<8x8xbf16>
    %45 = vector.extract_strided_slice %37 {offsets = [0, 32], sizes = [8, 8], strides = [1, 1]} : vector<8x96xf32> to vector<8x8xf32>
    %46 = arith.truncf %45 : vector<8x8xf32> to vector<8x8xbf16>
    %47 = vector.extract_strided_slice %37 {offsets = [0, 64], sizes = [8, 8], strides = [1, 1]} : vector<8x96xf32> to vector<8x8xf32>
    %48 = arith.truncf %47 : vector<8x8xf32> to vector<8x8xbf16>
    %cst_16 = arith.constant dense<0.000000e+00> : vector<8x8xf32>
    %49 = tpu.matmul %44, %46, %cst_16 {dimension_numbers = #tpu.dot_dimension_numbers<[1], [1], [0], [0], [0, 0, 1, 0], [], []>} : vector<8x8xbf16>, vector<8x8xbf16>, vector<8x8xf32> -> vector<8x8xf32>
    %cst_17 = arith.constant -1.000000e+30 : f32
    %50 = vector.broadcast %cst_17 : f32 to vector<8x8xf32>
    %51 = arith.select %40, %49, %50 : vector<8x8xi1>, vector<8x8xf32>
    %cst_18 = arith.constant dense<0xFF800000> : vector<8xf32>
    %52 = vector.multi_reduction <maximumf>, %51, %cst_18 [1] : vector<8x8xf32> to vector<8xf32>
    %53 = vector.shape_cast %52 : vector<8xf32> to vector<8x1xf32>
    %54 = vector.broadcast %53 : vector<8x1xf32> to vector<8x8xf32>
    %55 = arith.subf %51, %54 : vector<8x8xf32>
    %56 = math.exp %55 : vector<8x8xf32>
    %cst_19 = arith.constant dense<0.000000e+00> : vector<8xf32>
    %57 = vector.multi_reduction <add>, %56, %cst_19 [1] : vector<8x8xf32> to vector<8xf32>
    %58 = vector.shape_cast %57 : vector<8xf32> to vector<8x1xf32>
    %59 = tpu.reciprocal %58 {approx = true} : vector<8x1xf32> -> vector<8x1xf32>
    %60 = vector.broadcast %59 : vector<8x1xf32> to vector<8x8xf32>
    %61 = arith.mulf %56, %60 : vector<8x8xf32>
    %62 = arith.truncf %61 : vector<8x8xf32> to vector<8x8xbf16>
    %cst_20 = arith.constant dense<0.000000e+00> : vector<8x8xf32>
    %63 = tpu.matmul %62, %48, %cst_20 {dimension_numbers = #tpu.dot_dimension_numbers<[1], [0], [0], [1], [0, 0, 1, 1], [], []>} : vector<8x8xbf16>, vector<8x8xbf16>, vector<8x8xf32> -> vector<8x8xf32>
    %64 = vector.extract_strided_slice %37 {offsets = [0, 8], sizes = [8, 8], strides = [1, 1]} : vector<8x96xf32> to vector<8x8xf32>
    %cst_21 = arith.constant 0.353553385 : f32
    %65 = vector.broadcast %cst_21 : f32 to vector<8x8xf32>
    %66 = arith.mulf %64, %65 : vector<8x8xf32>
    %67 = arith.truncf %66 : vector<8x8xf32> to vector<8x8xbf16>
    %68 = vector.extract_strided_slice %37 {offsets = [0, 40], sizes = [8, 8], strides = [1, 1]} : vector<8x96xf32> to vector<8x8xf32>
    %69 = arith.truncf %68 : vector<8x8xf32> to vector<8x8xbf16>
    %70 = vector.extract_strided_slice %37 {offsets = [0, 72], sizes = [8, 8], strides = [1, 1]} : vector<8x96xf32> to vector<8x8xf32>
    %71 = arith.truncf %70 : vector<8x8xf32> to vector<8x8xbf16>
    %cst_22 = arith.constant dense<0.000000e+00> : vector<8x8xf32>
    %72 = tpu.matmul %67, %69, %cst_22 {dimension_numbers = #tpu.dot_dimension_numbers<[1], [1], [0], [0], [0, 0, 1, 0], [], []>} : vector<8x8xbf16>, vector<8x8xbf16>, vector<8x8xf32> -> vector<8x8xf32>
    %cst_23 = arith.constant -1.000000e+30 : f32
    %73 = vector.broadcast %cst_23 : f32 to vector<8x8xf32>
    %74 = arith.select %40, %72, %73 : vector<8x8xi1>, vector<8x8xf32>
    %cst_24 = arith.constant dense<0xFF800000> : vector<8xf32>
    %75 = vector.multi_reduction <maximumf>, %74, %cst_24 [1] : vector<8x8xf32> to vector<8xf32>
    %76 = vector.shape_cast %75 : vector<8xf32> to vector<8x1xf32>
    %77 = vector.broadcast %76 : vector<8x1xf32> to vector<8x8xf32>
    %78 = arith.subf %74, %77 : vector<8x8xf32>
    %79 = math.exp %78 : vector<8x8xf32>
    %cst_25 = arith.constant dense<0.000000e+00> : vector<8xf32>
    %80 = vector.multi_reduction <add>, %79, %cst_25 [1] : vector<8x8xf32> to vector<8xf32>
    %81 = vector.shape_cast %80 : vector<8xf32> to vector<8x1xf32>
    %82 = tpu.reciprocal %81 {approx = true} : vector<8x1xf32> -> vector<8x1xf32>
    %83 = vector.broadcast %82 : vector<8x1xf32> to vector<8x8xf32>
    %84 = arith.mulf %79, %83 : vector<8x8xf32>
    %85 = arith.truncf %84 : vector<8x8xf32> to vector<8x8xbf16>
    %cst_26 = arith.constant dense<0.000000e+00> : vector<8x8xf32>
    %86 = tpu.matmul %85, %71, %cst_26 {dimension_numbers = #tpu.dot_dimension_numbers<[1], [0], [0], [1], [0, 0, 1, 1], [], []>} : vector<8x8xbf16>, vector<8x8xbf16>, vector<8x8xf32> -> vector<8x8xf32>
    %87 = vector.extract_strided_slice %37 {offsets = [0, 16], sizes = [8, 8], strides = [1, 1]} : vector<8x96xf32> to vector<8x8xf32>
    %cst_27 = arith.constant 0.353553385 : f32
    %88 = vector.broadcast %cst_27 : f32 to vector<8x8xf32>
    %89 = arith.mulf %87, %88 : vector<8x8xf32>
    %90 = arith.truncf %89 : vector<8x8xf32> to vector<8x8xbf16>
    %91 = vector.extract_strided_slice %37 {offsets = [0, 48], sizes = [8, 8], strides = [1, 1]} : vector<8x96xf32> to vector<8x8xf32>
    %92 = arith.truncf %91 : vector<8x8xf32> to vector<8x8xbf16>
    %93 = vector.extract_strided_slice %37 {offsets = [0, 80], sizes = [8, 8], strides = [1, 1]} : vector<8x96xf32> to vector<8x8xf32>
    %94 = arith.truncf %93 : vector<8x8xf32> to vector<8x8xbf16>
    %cst_28 = arith.constant dense<0.000000e+00> : vector<8x8xf32>
    %95 = tpu.matmul %90, %92, %cst_28 {dimension_numbers = #tpu.dot_dimension_numbers<[1], [1], [0], [0], [0, 0, 1, 0], [], []>} : vector<8x8xbf16>, vector<8x8xbf16>, vector<8x8xf32> -> vector<8x8xf32>
    %cst_29 = arith.constant -1.000000e+30 : f32
    %96 = vector.broadcast %cst_29 : f32 to vector<8x8xf32>
    %97 = arith.select %40, %95, %96 : vector<8x8xi1>, vector<8x8xf32>
    %cst_30 = arith.constant dense<0xFF800000> : vector<8xf32>
    %98 = vector.multi_reduction <maximumf>, %97, %cst_30 [1] : vector<8x8xf32> to vector<8xf32>
    %99 = vector.shape_cast %98 : vector<8xf32> to vector<8x1xf32>
    %100 = vector.broadcast %99 : vector<8x1xf32> to vector<8x8xf32>
    %101 = arith.subf %97, %100 : vector<8x8xf32>
    %102 = math.exp %101 : vector<8x8xf32>
    %cst_31 = arith.constant dense<0.000000e+00> : vector<8xf32>
    %103 = vector.multi_reduction <add>, %102, %cst_31 [1] : vector<8x8xf32> to vector<8xf32>
    %104 = vector.shape_cast %103 : vector<8xf32> to vector<8x1xf32>
    %105 = tpu.reciprocal %104 {approx = true} : vector<8x1xf32> -> vector<8x1xf32>
    %106 = vector.broadcast %105 : vector<8x1xf32> to vector<8x8xf32>
    %107 = arith.mulf %102, %106 : vector<8x8xf32>
    %108 = arith.truncf %107 : vector<8x8xf32> to vector<8x8xbf16>
    %cst_32 = arith.constant dense<0.000000e+00> : vector<8x8xf32>
    %109 = tpu.matmul %108, %94, %cst_32 {dimension_numbers = #tpu.dot_dimension_numbers<[1], [0], [0], [1], [0, 0, 1, 1], [], []>} : vector<8x8xbf16>, vector<8x8xbf16>, vector<8x8xf32> -> vector<8x8xf32>
    %110 = vector.extract_strided_slice %37 {offsets = [0, 24], sizes = [8, 8], strides = [1, 1]} : vector<8x96xf32> to vector<8x8xf32>
    %cst_33 = arith.constant 0.353553385 : f32
    %111 = vector.broadcast %cst_33 : f32 to vector<8x8xf32>
    %112 = arith.mulf %110, %111 : vector<8x8xf32>
    %113 = arith.truncf %112 : vector<8x8xf32> to vector<8x8xbf16>
    %114 = vector.extract_strided_slice %37 {offsets = [0, 56], sizes = [8, 8], strides = [1, 1]} : vector<8x96xf32> to vector<8x8xf32>
    %115 = arith.truncf %114 : vector<8x8xf32> to vector<8x8xbf16>
    %116 = vector.extract_strided_slice %37 {offsets = [0, 88], sizes = [8, 8], strides = [1, 1]} : vector<8x96xf32> to vector<8x8xf32>
    %117 = arith.truncf %116 : vector<8x8xf32> to vector<8x8xbf16>
    %cst_34 = arith.constant dense<0.000000e+00> : vector<8x8xf32>
    %118 = tpu.matmul %113, %115, %cst_34 {dimension_numbers = #tpu.dot_dimension_numbers<[1], [1], [0], [0], [0, 0, 1, 0], [], []>} : vector<8x8xbf16>, vector<8x8xbf16>, vector<8x8xf32> -> vector<8x8xf32>
    %cst_35 = arith.constant -1.000000e+30 : f32
    %119 = vector.broadcast %cst_35 : f32 to vector<8x8xf32>
    %120 = arith.select %40, %118, %119 : vector<8x8xi1>, vector<8x8xf32>
    %cst_36 = arith.constant dense<0xFF800000> : vector<8xf32>
    %121 = vector.multi_reduction <maximumf>, %120, %cst_36 [1] : vector<8x8xf32> to vector<8xf32>
    %122 = vector.shape_cast %121 : vector<8xf32> to vector<8x1xf32>
    %123 = vector.broadcast %122 : vector<8x1xf32> to vector<8x8xf32>
    %124 = arith.subf %120, %123 : vector<8x8xf32>
    %125 = math.exp %124 : vector<8x8xf32>
    %cst_37 = arith.constant dense<0.000000e+00> : vector<8xf32>
    %126 = vector.multi_reduction <add>, %125, %cst_37 [1] : vector<8x8xf32> to vector<8xf32>
    %127 = vector.shape_cast %126 : vector<8xf32> to vector<8x1xf32>
    %128 = tpu.reciprocal %127 {approx = true} : vector<8x1xf32> -> vector<8x1xf32>
    %129 = vector.broadcast %128 : vector<8x1xf32> to vector<8x8xf32>
    %130 = arith.mulf %125, %129 : vector<8x8xf32>
    %131 = arith.truncf %130 : vector<8x8xf32> to vector<8x8xbf16>
    %cst_38 = arith.constant dense<0.000000e+00> : vector<8x8xf32>
    %132 = tpu.matmul %131, %117, %cst_38 {dimension_numbers = #tpu.dot_dimension_numbers<[1], [0], [0], [1], [0, 0, 1, 1], [], []>} : vector<8x8xbf16>, vector<8x8xbf16>, vector<8x8xf32> -> vector<8x8xf32>
    %133 = tpu.concatenate %63, %86, %109, %132 in 1 : vector<8x8xf32>, vector<8x8xf32>, vector<8x8xf32>, vector<8x8xf32> -> vector<8x32xf32>
    %134 = arith.truncf %133 : vector<8x32xf32> to vector<8x32xbf16>
    %c0_39 = arith.constant 0 : index
    %c0_40 = arith.constant 0 : index
    %135 = vector.load %arg6[%c0_39, %c0_40] : memref<32x32xbf16, #tpu.memory_space<vmem>>, vector<32x32xbf16>
    %cst_41 = arith.constant dense<0.000000e+00> : vector<8x32xf32>
    %136 = tpu.matmul %134, %135, %cst_41 {dimension_numbers = #tpu.dot_dimension_numbers<[1], [0], [0], [1], [0, 0, 1, 1], [], []>} : vector<8x32xbf16>, vector<32x32xbf16>, vector<8x32xf32> -> vector<8x32xf32>
    %137 = arith.addf %1, %136 : vector<8x32xf32>
    %c0_42 = arith.constant 0 : index
    %c0_43 = arith.constant 0 : index
    %138 = vector.load %arg7[%c0_42, %c0_43] : memref<1x32xf32, #tpu.memory_space<vmem>>, vector<1x32xf32>
    %139 = vector.shape_cast %138 : vector<1x32xf32> to vector<32xf32>
    %140 = vector.shape_cast %139 : vector<32xf32> to vector<1x32xf32>
    %141 = vector.broadcast %140 : vector<1x32xf32> to vector<8x32xf32>
    %142 = arith.addf %137, %141 : vector<8x32xf32>
    %c0_44 = arith.constant 0 : index
    %c0_45 = arith.constant 0 : index
    %143 = vector.load %arg8[%c0_44, %c0_45] : memref<1x32xf32, #tpu.memory_space<vmem>>, vector<1x32xf32>
    %144 = vector.shape_cast %143 : vector<1x32xf32> to vector<32xf32>
    %c0_46 = arith.constant 0 : index
    %c0_47 = arith.constant 0 : index
    %145 = vector.load %arg9[%c0_46, %c0_47] : memref<1x32xf32, #tpu.memory_space<vmem>>, vector<1x32xf32>
    %146 = vector.shape_cast %145 : vector<1x32xf32> to vector<32xf32>
    %cst_48 = arith.constant dense<0.000000e+00> : vector<8xf32>
    %147 = vector.multi_reduction <add>, %142, %cst_48 [1] : vector<8x32xf32> to vector<8xf32>
    %148 = vector.shape_cast %147 : vector<8xf32> to vector<8x1xf32>
    %cst_49 = arith.constant 3.200000e+01 : f32
    %149 = vector.broadcast %cst_49 : f32 to vector<8x1xf32>
    %150 = arith.divf %148, %149 : vector<8x1xf32>
    %151 = vector.broadcast %150 : vector<8x1xf32> to vector<8x32xf32>
    %152 = arith.subf %142, %151 : vector<8x32xf32>
    %153 = arith.mulf %152, %152 : vector<8x32xf32>
    %cst_50 = arith.constant dense<0.000000e+00> : vector<8xf32>
    %154 = vector.multi_reduction <add>, %153, %cst_50 [1] : vector<8x32xf32> to vector<8xf32>
    %155 = vector.shape_cast %154 : vector<8xf32> to vector<8x1xf32>
    %cst_51 = arith.constant 3.200000e+01 : f32
    %156 = vector.broadcast %cst_51 : f32 to vector<8x1xf32>
    %157 = arith.divf %155, %156 : vector<8x1xf32>
    %158 = vector.broadcast %150 : vector<8x1xf32> to vector<8x32xf32>
    %159 = arith.subf %142, %158 : vector<8x32xf32>
    %cst_52 = arith.constant 9.99999974E-6 : f32
    %160 = vector.broadcast %cst_52 : f32 to vector<8x1xf32>
    %161 = arith.addf %157, %160 : vector<8x1xf32>
    %162 = math.rsqrt %161 : vector<8x1xf32>
    %163 = vector.broadcast %162 : vector<8x1xf32> to vector<8x32xf32>
    %164 = arith.mulf %159, %163 : vector<8x32xf32>
    %165 = vector.shape_cast %144 : vector<32xf32> to vector<1x32xf32>
    %166 = vector.broadcast %165 : vector<1x32xf32> to vector<8x32xf32>
    %167 = arith.mulf %164, %166 : vector<8x32xf32>
    %168 = vector.shape_cast %146 : vector<32xf32> to vector<1x32xf32>
    %169 = vector.broadcast %168 : vector<1x32xf32> to vector<8x32xf32>
    %170 = arith.addf %167, %169 : vector<8x32xf32>
    %171 = arith.truncf %170 : vector<8x32xf32> to vector<8x32xbf16>
    %c0_53 = arith.constant 0 : index
    %c0_54 = arith.constant 0 : index
    %172 = vector.load %arg10[%c0_53, %c0_54] : memref<32x128xbf16, #tpu.memory_space<vmem>>, vector<32x128xbf16>
    %cst_55 = arith.constant dense<0.000000e+00> : vector<8x128xf32>
    %173 = tpu.matmul %171, %172, %cst_55 {dimension_numbers = #tpu.dot_dimension_numbers<[1], [0], [0], [1], [0, 0, 1, 1], [], []>} : vector<8x32xbf16>, vector<32x128xbf16>, vector<8x128xf32> -> vector<8x128xf32>
    %c0_56 = arith.constant 0 : index
    %c0_57 = arith.constant 0 : index
    %174 = vector.load %arg11[%c0_56, %c0_57] : memref<1x128xf32, #tpu.memory_space<vmem>>, vector<1x128xf32>
    %175 = vector.shape_cast %174 : vector<1x128xf32> to vector<128xf32>
    %176 = vector.shape_cast %175 : vector<128xf32> to vector<1x128xf32>
    %177 = vector.broadcast %176 : vector<1x128xf32> to vector<8x128xf32>
    %178 = arith.addf %173, %177 : vector<8x128xf32>
    %cst_58 = arith.constant 5.000000e-01 : f32
    %179 = vector.broadcast %cst_58 : f32 to vector<8x128xf32>
    %180 = arith.mulf %179, %178 : vector<8x128xf32>
    %cst_59 = arith.constant 4.471500e-02 : f32
    %181 = vector.broadcast %cst_59 : f32 to vector<8x128xf32>
    %182 = arith.mulf %181, %178 : vector<8x128xf32>
    %183 = arith.mulf %182, %178 : vector<8x128xf32>
    %184 = arith.mulf %183, %178 : vector<8x128xf32>
    %185 = arith.addf %178, %184 : vector<8x128xf32>
    %cst_60 = arith.constant 0.797884583 : f32
    %186 = vector.broadcast %cst_60 : f32 to vector<8x128xf32>
    %187 = arith.mulf %186, %185 : vector<8x128xf32>
    %188 = math.tanh %187 : vector<8x128xf32>
    %cst_61 = arith.constant 1.000000e+00 : f32
    %189 = vector.broadcast %cst_61 : f32 to vector<8x128xf32>
    %190 = arith.addf %189, %188 : vector<8x128xf32>
    %191 = arith.mulf %180, %190 : vector<8x128xf32>
    %192 = arith.truncf %191 : vector<8x128xf32> to vector<8x128xbf16>
    %c0_62 = arith.constant 0 : index
    %c0_63 = arith.constant 0 : index
    %193 = vector.load %arg12[%c0_62, %c0_63] : memref<128x32xbf16, #tpu.memory_space<vmem>>, vector<128x32xbf16>
    %cst_64 = arith.constant dense<0.000000e+00> : vector<8x32xf32>
    %194 = tpu.matmul %192, %193, %cst_64 {dimension_numbers = #tpu.dot_dimension_numbers<[1], [0], [0], [1], [0, 0, 1, 1], [], []>} : vector<8x128xbf16>, vector<128x32xbf16>, vector<8x32xf32> -> vector<8x32xf32>
    %c0_65 = arith.constant 0 : index
    %c0_66 = arith.constant 0 : index
    %195 = vector.load %arg13[%c0_65, %c0_66] : memref<1x32xf32, #tpu.memory_space<vmem>>, vector<1x32xf32>
    %196 = vector.shape_cast %195 : vector<1x32xf32> to vector<32xf32>
    %197 = vector.shape_cast %196 : vector<32xf32> to vector<1x32xf32>
    %198 = vector.broadcast %197 : vector<1x32xf32> to vector<8x32xf32>
    %199 = arith.addf %194, %198 : vector<8x32xf32>
    %200 = arith.addf %142, %199 : vector<8x32xf32>
    %c0_67 = arith.constant 0 : index
    %c0_68 = arith.constant 0 : index
    %c0_69 = arith.constant 0 : index
    %201 = vector.load %arg14[%c0_67, %c0_68, %c0_69] : memref<1x8x32xf32, #tpu.memory_space<vmem>>, vector<1x8x32xf32>
    %202 = vector.shape_cast %201 : vector<1x8x32xf32> to vector<8x32xf32>
    %203 = vector.shape_cast %200 : vector<8x32xf32> to vector<1x8x32xf32>
    tpu.vector_store %arg14[%c0_67, %c0_68, %c0_69], %203 {strides = array<i32>} : memref<1x8x32xf32, #tpu.memory_space<vmem>>, vector<1x8x32xf32>,
    return
  }
  func.func @transform_0(%arg0: i32) -> (i32, i32, i32) {
    %c0_i32 = arith.constant 0 : i32
    %c0_i32_0 = arith.constant 0 : i32
    %c0_i32_1 = arith.constant 0 : i32
    return %arg0, %c0_i32, %c0_i32_0 : i32, i32, i32
  }
  func.func @transform_1(%arg0: i32) -> (i32, i32) {
    %c0_i32 = arith.constant 0 : i32
    %c0_i32_0 = arith.constant 0 : i32
    %c0_i32_1 = arith.constant 0 : i32
    return %c0_i32, %c0_i32_0 : i32, i32
  }
  func.func @transform_2(%arg0: i32) -> (i32, i32) {
    %c0_i32 = arith.constant 0 : i32
    %c0_i32_0 = arith.constant 0 : i32
    %c0_i32_1 = arith.constant 0 : i32
    return %c0_i32, %c0_i32_0 : i32, i32
  }
  func.func @transform_3(%arg0: i32) -> (i32, i32) {
    %c0_i32 = arith.constant 0 : i32
    %c0_i32_0 = arith.constant 0 : i32
    %c0_i32_1 = arith.constant 0 : i32
    return %c0_i32, %c0_i32_0 : i32, i32
  }
  func.func @transform_4(%arg0: i32) -> (i32, i32) {
    %c0_i32 = arith.constant 0 : i32
    %c0_i32_0 = arith.constant 0 : i32
    %c0_i32_1 = arith.constant 0 : i32
    return %c0_i32, %c0_i32_0 : i32, i32
  }
  func.func @transform_5(%arg0: i32) -> (i32, i32) {
    %c0_i32 = arith.constant 0 : i32
    %c0_i32_0 = arith.constant 0 : i32
    %c0_i32_1 = arith.constant 0 : i32
    return %c0_i32, %c0_i32_0 : i32, i32
  }
  func.func @transform_6(%arg0: i32) -> (i32, i32) {
    %c0_i32 = arith.constant 0 : i32
    %c0_i32_0 = arith.constant 0 : i32
    %c0_i32_1 = arith.constant 0 : i32
    return %c0_i32, %c0_i32_0 : i32, i32
  }
  func.func @transform_7(%arg0: i32) -> (i32, i32) {
    %c0_i32 = arith.constant 0 : i32
    %c0_i32_0 = arith.constant 0 : i32
    %c0_i32_1 = arith.constant 0 : i32
    return %c0_i32, %c0_i32_0 : i32, i32
  }
  func.func @transform_8(%arg0: i32) -> (i32, i32) {
    %c0_i32 = arith.constant 0 : i32
    %c0_i32_0 = arith.constant 0 : i32
    %c0_i32_1 = arith.constant 0 : i32
    return %c0_i32, %c0_i32_0 : i32, i32
  }
  func.func @transform_9(%arg0: i32) -> (i32, i32) {
    %c0_i32 = arith.constant 0 : i32
    %c0_i32_0 = arith.constant 0 : i32
    %c0_i32_1 = arith.constant 0 : i32
    return %c0_i32, %c0_i32_0 : i32, i32
  }
  func.func @transform_10(%arg0: i32) -> (i32, i32) {
    %c0_i32 = arith.constant 0 : i32
    %c0_i32_0 = arith.constant 0 : i32
    %c0_i32_1 = arith.constant 0 : i32
    return %c0_i32, %c0_i32_0 : i32, i32
  }
  func.func @transform_11(%arg0: i32) -> (i32, i32) {
    %c0_i32 = arith.constant 0 : i32
    %c0_i32_0 = arith.constant 0 : i32
    %c0_i32_1 = arith.constant 0 : i32
    return %c0_i32, %c0_i32_0 : i32, i32
  }
  func.func @transform_12(%arg0: i32) -> (i32, i32) {
    %c0_i32 = arith.constant 0 : i32
    %c0_i32_0 = arith.constant 0 : i32
    %c0_i32_1 = arith.constant 0 : i32
    return %c0_i32, %c0_i32_0 : i32, i32
  }
  func.func @transform_13(%arg0: i32) -> (i32, i32, i32) {
    %c0_i32 = arith.constant 0 : i32
    %c0_i32_0 = arith.constant 0 : i32
    %c0_i32_1 = arith.constant 0 : i32
    return %arg0, %c0_i32, %c0_i32_0 : i32, i32, i32
  }
}

</mosaic_0001>

<llo_original>
// kernel: tpu_custom_call.1
$region0: #{tpu_custom_call.1}
  #allocation0 [shape = 'u32[]', space=smem, size = 0x4, offset = 0x4, fixed_abs, tag = 'smem constant byte address 0x4 - core index']
  #allocation1 [shape = 'u32[144,128]{1,0:T(1,128)}', space=vmem, size = 0x12000, scoped, tag = 'internal scratch']
  %s0 = inlined_call_operand.hbm [shape: f32[2,8,32], index: 0, kind: input, shape index: {}]
  %s1 = inlined_call_operand.hbm [shape: f32[1,32], index: 1, kind: input, shape index: {}]
  %s2 = inlined_call_operand.hbm [shape: f32[1,32], index: 2, kind: input, shape index: {}]
  %s3 = inlined_call_operand.hbm [shape: bf16[32,96], index: 3, kind: input, shape index: {}]
  %s4 = inlined_call_operand.hbm [shape: f32[1,96], index: 4, kind: input, shape index: {}]
  %s5 = inlined_call_operand.hbm [shape: bf16[32,32], index: 5, kind: input, shape index: {}]
  %s6 = inlined_call_operand.hbm [shape: f32[1,32], index: 6, kind: input, shape index: {}]
  %s7 = inlined_call_operand.hbm [shape: f32[1,32], index: 7, kind: input, shape index: {}]
  %s8 = inlined_call_operand.hbm [shape: f32[1,32], index: 8, kind: input, shape index: {}]
  %s9 = inlined_call_operand.hbm [shape: bf16[32,128], index: 9, kind: input, shape index: {}]
  %s10 = inlined_call_operand.hbm [shape: f32[1,128], index: 10, kind: input, shape index: {}]
  %s11 = inlined_call_operand.hbm [shape: bf16[128,32], index: 11, kind: input, shape index: {}]
  %s12 = inlined_call_operand.hbm [shape: f32[1,32], index: 12, kind: input, shape index: {}]
  %s13 = inlined_call_operand.hbm [shape: f32[2,8,32], index: 13, kind: output, shape index: {}]
  %s14 = sld [smem:[#allocation0]]
  $region137: #{tpu_custom_call.1} parent=0
    _
  %s16 = ssub.s32 1, %s14
  %s17 = scalar_select 0, %s16, %s14
  $region1: #{tpu_custom_call.1} parent=0
    #allocation2 [shape = 'u8[8192]{0}', space=vmem, size = 0x2000, scoped, tag = 'input window, operand 0']
    #allocation3 [shape = 's32[2]{0}', space=sflag, size = 0x8, scoped, tag = 'scoped memory for tpu_custom_call.1']
    #allocation4 [shape = 's32[2]{0}', space=sflag, size = 0x8, scoped, tag = 'scoped memory for tpu_custom_call.1']
    #allocation5 [shape = 'u8[512]{0}', space=vmem, size = 0x400, scoped, tag = 'input window, operand 1, single buffered']
    #allocation6 [shape = 's32[1]{0}', space=sflag, size = 0x4, scoped, tag = 'scoped memory for tpu_custom_call.1']
    #allocation7 [shape = 'u8[512]{0}', space=vmem, size = 0x400, scoped, tag = 'input window, operand 2, single buffered']
    #allocation8 [shape = 'u8[8192]{0}', space=vmem, size = 0x2000, scoped, tag = 'input window, operand 3, single buffered']
    #allocation9 [shape = 's32[1]{0}', space=sflag, size = 0x4, scoped, tag = 'scoped memory for tpu_custom_call.1']
    #allocation10 [shape = 'u8[512]{0}', space=vmem, size = 0x400, scoped, tag = 'input window, operand 4, single buffered']
    #allocation11 [shape = 'u8[8192]{0}', space=vmem, size = 0x2000, scoped, tag = 'input window, operand 5, single buffered']
    #allocation12 [shape = 's32[1]{0}', space=sflag, size = 0x4, scoped, tag = 'scoped memory for tpu_custom_call.1']
    #allocation13 [shape = 'u8[512]{0}', space=vmem, size = 0x400, scoped, tag = 'input window, operand 6, single buffered']
    #allocation14 [shape = 'u8[512]{0}', space=vmem, size = 0x400, scoped, tag = 'input window, operand 7, single buffered']
    #allocation15 [shape = 's32[1]{0}', space=sflag, size = 0x4, scoped, tag = 'scoped memory for tpu_custom_call.1']
    #allocation16 [shape = 'u8[512]{0}', space=vmem, size = 0x400, scoped, tag = 'input window, operand 8, single buffered']
    #allocation17 [shape = 'u8[8192]{0}', space=vmem, size = 0x2000, scoped, tag = 'input window, operand 9, single buffered']
    #allocation18 [shape = 's32[1]{0}', space=sflag, size = 0x4, scoped, tag = 'scoped memory for tpu_custom_call.1']
    #allocation19 [shape = 'u8[512]{0}', space=vmem, size = 0x400, scoped, tag = 'input window, operand 10, single buffered']
    #allocation20 [shape = 'u8[32768]{0}', space=vmem, size = 0x8000, scoped, tag = 'input window, operand 11, single buffered']
    #allocation21 [shape = 's32[1]{0}', space=sflag, size = 0x4, scoped, tag = 'scoped memory for tpu_custom_call.1']
    #allocation22 [shape = 'u8[512]{0}', space=vmem, size = 0x400, scoped, tag = 'input window, operand 12, single buffered']
    #allocation23 [shape = 'u8[8192]{0}', space=vmem, size = 0x2000, scoped, tag = 'output window, operand 0']
    %18 = vsyncpa [#allocation3], 0
    %s19 = scalar_lea.sflag [#allocation3], 1
    %20 = vsyncpa %s19, 0
    %21 = vsyncpa [#allocation6], 0
    %22 = vsyncpa [#allocation9], 0
    %23 = vsyncpa [#allocation12], 0
    %24 = vsyncpa [#allocation15], 0
    %25 = vsyncpa [#allocation18], 0
    %26 = vsyncpa [#allocation21], 0
    %27 = vsyncpa [#allocation4], 0
    %s28 = scalar_lea.sflag [#allocation4], 1
    %29 = vsyncpa %s28, 0
    loop: start=0, step=1, limit=4
    $region2: #{tpu_custom_call.1} parent=1 // loop_pre_header
      _
    $region3: #{tpu_custom_call.1} parent=1 // loop_header
      %s31 = sphi 0, %s35
      %p32 = scmp.ge.s32.totalorder %s31, 4
      %s41 = sphi 0, %s43
      %s44 = sphi 0, %s41
      %s45 = sphi 0, %s44
      %s61 = sphi 0, %s45
      %s65 = sphi 0, %s65
      %s67 = sphi 0, %s65
      %s68 = sphi 0, %s67
      %s82 = sphi 0, %s68
      %s86 = sphi 0, %s86
      %s88 = sphi 0, %s86
      %s89 = sphi 0, %s88
      %s103 = sphi 0, %s89
      %s107 = sphi 0, %s107
      %s109 = sphi 0, %s107
      %s110 = sphi 0, %s109
      %s124 = sphi 0, %s110
      %s128 = sphi 0, %s128
      %s130 = sphi 0, %s128
      %s131 = sphi 0, %s130
      %s145 = sphi 0, %s131
      %s149 = sphi 0, %s149
      %s151 = sphi 0, %s149
      %s152 = sphi 0, %s151
      %s166 = sphi 0, %s152
      %s170 = sphi 0, %s170
      %s172 = sphi 0, %s170
      %s173 = sphi 0, %s172
      %s187 = sphi 0, %s173
      %s191 = sphi 0, %s191
      %s193 = sphi 0, %s191
      %s194 = sphi 0, %s193
      %s208 = sphi 0, %s194
      %s212 = sphi 0, %s212
      %s214 = sphi 0, %s212
      %s215 = sphi 0, %s214
      %s229 = sphi 0, %s215
      %s233 = sphi 0, %s233
      %s235 = sphi 0, %s233
      %s236 = sphi 0, %s235
      %s250 = sphi 0, %s236
      %s254 = sphi 0, %s254
      %s256 = sphi 0, %s254
      %s257 = sphi 0, %s256
      %s271 = sphi 0, %s257
      %s275 = sphi 0, %s275
      %s277 = sphi 0, %s275
      %s278 = sphi 0, %s277
      %s292 = sphi 0, %s278
      %s296 = sphi 0, %s296
      %s298 = sphi 0, %s296
      %s299 = sphi 0, %s298
      %s313 = sphi 0, %s299
      %s319 = sphi 0, %s321
      %s322 = sphi 0, %s319
      %s323 = sphi 0, %s322
      %s339 = sphi 0, %s323
    $region4: #{tpu_custom_call.1} parent=1 // loop_header_branch
      %34 = sbr.rel (%p32) target = $region8
    $region5: #{tpu_custom_call.1} parent=1 // loop_body
      %s36 = ssub.s32 %s31, 1
      %s37 = ssub.s32 %s31, 2
      %s38 = sadd.s32 %s31, 1
      %s39 = ssub.s32 %s31, %s38
      %p40 = scmp.eq.s32.totalorder %s39, 0
      %s42 = sadd.s32 %s41, 1
      %s43 = scalar_select %p40, %s41, %s42
      %p46 = pneg %p40
      %p47 = scmp.eq.s32.totalorder %s31, 1
      %p48 = por %p46, %p47
      %p49 = scmp.ne.s32.totalorder %s41, %s44
      %p50 = scmp.eq.s32.totalorder %s31, 0
      %p51 = por %p49, %p50
      %p52 = scmp.ne.s32.totalorder %s41, %s44
      %p53 = scmp.eq.s32.totalorder %s36, 1
      %p54 = por %p52, %p53
      %p55 = scmp.ne.s32.totalorder %s44, %s45
      %p56 = scmp.eq.s32.totalorder %s36, 0
      %p57 = por %p55, %p56
      %p58 = scmp.ne.s32.totalorder %s44, %s45
      %p59 = scmp.eq.s32.totalorder %s37, 1
      %p60 = por %p58, %p59
      %p62 = scmp.ne.s32.totalorder %s45, %s61
      %p63 = scmp.eq.s32.totalorder %s37, 0
      %p64 = por %p62, %p63
      %s66 = sadd.s32 %s65, 1
      %p69 = scmp.eq.s32.totalorder %s31, 1
      %p70 = scmp.ne.s32.totalorder %s65, %s67
      %p71 = scmp.eq.s32.totalorder %s31, 0
      %p72 = por %p70, %p71
      %p73 = scmp.ne.s32.totalorder %s65, %s67
      %p74 = scmp.eq.s32.totalorder %s36, 1
      %p75 = por %p73, %p74
      %p76 = scmp.ne.s32.totalorder %s67, %s68
      %p77 = scmp.eq.s32.totalorder %s36, 0
      %p78 = por %p76, %p77
      %p79 = scmp.ne.s32.totalorder %s67, %s68
      %p80 = scmp.eq.s32.totalorder %s37, 1
      %p81 = por %p79, %p80
      %p83 = scmp.ne.s32.totalorder %s68, %s82
      %p84 = scmp.eq.s32.totalorder %s37, 0
      %p85 = por %p83, %p84
      %s87 = sadd.s32 %s86, 1
      %p90 = scmp.eq.s32.totalorder %s31, 1
      %p91 = scmp.ne.s32.totalorder %s86, %s88
      %p92 = scmp.eq.s32.totalorder %s31, 0
      %p93 = por %p91, %p92
      %p94 = scmp.ne.s32.totalorder %s86, %s88
      %p95 = scmp.eq.s32.totalorder %s36, 1
      %p96 = por %p94, %p95
      %p97 = scmp.ne.s32.totalorder %s88, %s89
      %p98 = scmp.eq.s32.totalorder %s36, 0
      %p99 = por %p97, %p98
      %p100 = scmp.ne.s32.totalorder %s88, %s89
      %p101 = scmp.eq.s32.totalorder %s37, 1
      %p102 = por %p100, %p101
      %p104 = scmp.ne.s32.totalorder %s89, %s103
      %p105 = scmp.eq.s32.totalorder %s37, 0
      %p106 = por %p104, %p105
      %s108 = sadd.s32 %s107, 1
      %p111 = scmp.eq.s32.totalorder %s31, 1
      %p112 = scmp.ne.s32.totalorder %s107, %s109
      %p113 = scmp.eq.s32.totalorder %s31, 0
      %p114 = por %p112, %p113
      %p115 = scmp.ne.s32.totalorder %s107, %s109
      %p116 = scmp.eq.s32.totalorder %s36, 1
      %p117 = por %p115, %p116
      %p118 = scmp.ne.s32.totalorder %s109, %s110
      %p119 = scmp.eq.s32.totalorder %s36, 0
      %p120 = por %p118, %p119
      %p121 = scmp.ne.s32.totalorder %s109, %s110
      %p122 = scmp.eq.s32.totalorder %s37, 1
      %p123 = por %p121, %p122
      %p125 = scmp.ne.s32.totalorder %s110, %s124
      %p126 = scmp.eq.s32.totalorder %s37, 0
      %p127 = por %p125, %p126
      %s129 = sadd.s32 %s128, 1
      %p132 = scmp.eq.s32.totalorder %s31, 1
      %p133 = scmp.ne.s32.totalorder %s128, %s130
      %p134 = scmp.eq.s32.totalorder %s31, 0
      %p135 = por %p133, %p134
      %p136 = scmp.ne.s32.totalorder %s128, %s130
      %p137 = scmp.eq.s32.totalorder %s36, 1
      %p138 = por %p136, %p137
      %p139 = scmp.ne.s32.totalorder %s130, %s131
      %p140 = scmp.eq.s32.totalorder %s36, 0
      %p141 = por %p139, %p140
      %p142 = scmp.ne.s32.totalorder %s130, %s131
      %p143 = scmp.eq.s32.totalorder %s37, 1
      %p144 = por %p142, %p143
      %p146 = scmp.ne.s32.totalorder %s131, %s145
      %p147 = scmp.eq.s32.totalorder %s37, 0
      %p148 = por %p146, %p147
      %s150 = sadd.s32 %s149, 1
      %p153 = scmp.eq.s32.totalorder %s31, 1
      %p154 = scmp.ne.s32.totalorder %s149, %s151
      %p155 = scmp.eq.s32.totalorder %s31, 0
      %p156 = por %p154, %p155
      %p157 = scmp.ne.s32.totalorder %s149, %s151
      %p158 = scmp.eq.s32.totalorder %s36, 1
      %p159 = por %p157, %p158
      %p160 = scmp.ne.s32.totalorder %s151, %s152
      %p161 = scmp.eq.s32.totalorder %s36, 0
      %p162 = por %p160, %p161
      %p163 = scmp.ne.s32.totalorder %s151, %s152
      %p164 = scmp.eq.s32.totalorder %s37, 1
      %p165 = por %p163, %p164
      %p167 = scmp.ne.s32.totalorder %s152, %s166
      %p168 = scmp.eq.s32.totalorder %s37, 0
      %p169 = por %p167, %p168
      %s171 = sadd.s32 %s170, 1
      %p174 = scmp.eq.s32.totalorder %s31, 1
      %p175 = scmp.ne.s32.totalorder %s170, %s172
      %p176 = scmp.eq.s32.totalorder %s31, 0
      %p177 = por %p175, %p176
      %p178 = scmp.ne.s32.totalorder %s170, %s172
      %p179 = scmp.eq.s32.totalorder %s36, 1
      %p180 = por %p178, %p179
      %p181 = scmp.ne.s32.totalorder %s172, %s173
      %p182 = scmp.eq.s32.totalorder %s36, 0
      %p183 = por %p181, %p182
      %p184 = scmp.ne.s32.totalorder %s172, %s173
      %p185 = scmp.eq.s32.totalorder %s37, 1
      %p186 = por %p184, %p185
      %p188 = scmp.ne.s32.totalorder %s173, %s187
      %p189 = scmp.eq.s32.totalorder %s37, 0
      %p190 = por %p188, %p189
      %s192 = sadd.s32 %s191, 1
      %p195 = scmp.eq.s32.totalorder %s31, 1
      %p196 = scmp.ne.s32.totalorder %s191, %s193
      %p197 = scmp.eq.s32.totalorder %s31, 0
      %p198 = por %p196, %p197
      %p199 = scmp.ne.s32.totalorder %s191, %s193
      %p200 = scmp.eq.s32.totalorder %s36, 1
      %p201 = por %p199, %p200
      %p202 = scmp.ne.s32.totalorder %s193, %s194
      %p203 = scmp.eq.s32.totalorder %s36, 0
      %p204 = por %p202, %p203
      %p205 = scmp.ne.s32.totalorder %s193, %s194
      %p206 = scmp.eq.s32.totalorder %s37, 1
      %p207 = por %p205, %p206
      %p209 = scmp.ne.s32.totalorder %s194, %s208
      %p210 = scmp.eq.s32.totalorder %s37, 0
      %p211 = por %p209, %p210
      %s213 = sadd.s32 %s212, 1
      %p216 = scmp.eq.s32.totalorder %s31, 1
      %p217 = scmp.ne.s32.totalorder %s212, %s214
      %p218 = scmp.eq.s32.totalorder %s31, 0
      %p219 = por %p217, %p218
      %p220 = scmp.ne.s32.totalorder %s212, %s214
      %p221 = scmp.eq.s32.totalorder %s36, 1
      %p222 = por %p220, %p221
      %p223 = scmp.ne.s32.totalorder %s214, %s215
      %p224 = scmp.eq.s32.totalorder %s36, 0
      %p225 = por %p223, %p224
      %p226 = scmp.ne.s32.totalorder %s214, %s215
      %p227 = scmp.eq.s32.totalorder %s37, 1
      %p228 = por %p226, %p227
      %p230 = scmp.ne.s32.totalorder %s215, %s229
      %p231 = scmp.eq.s32.totalorder %s37, 0
      %p232 = por %p230, %p231
      %s234 = sadd.s32 %s233, 1
      %p237 = scmp.eq.s32.totalorder %s31, 1
      %p238 = scmp.ne.s32.totalorder %s233, %s235
      %p239 = scmp.eq.s32.totalorder %s31, 0
      %p240 = por %p238, %p239
      %p241 = scmp.ne.s32.totalorder %s233, %s235
      %p242 = scmp.eq.s32.totalorder %s36, 1
      %p243 = por %p241, %p242
      %p244 = scmp.ne.s32.totalorder %s235, %s236
      %p245 = scmp.eq.s32.totalorder %s36, 0
      %p246 = por %p244, %p245
      %p247 = scmp.ne.s32.totalorder %s235, %s236
      %p248 = scmp.eq.s32.totalorder %s37, 1
      %p249 = por %p247, %p248
      %p251 = scmp.ne.s32.totalorder %s236, %s250
      %p252 = scmp.eq.s32.totalorder %s37, 0
      %p253 = por %p251, %p252
      %s255 = sadd.s32 %s254, 1
      %p258 = scmp.eq.s32.totalorder %s31, 1
      %p259 = scmp.ne.s32.totalorder %s254, %s256
      %p260 = scmp.eq.s32.totalorder %s31, 0
      %p261 = por %p259, %p260
      %p262 = scmp.ne.s32.totalorder %s254, %s256
      %p263 = scmp.eq.s32.totalorder %s36, 1
      %p264 = por %p262, %p263
      %p265 = scmp.ne.s32.totalorder %s256, %s257
      %p266 = scmp.eq.s32.totalorder %s36, 0
      %p267 = por %p265, %p266
      %p268 = scmp.ne.s32.totalorder %s256, %s257
      %p269 = scmp.eq.s32.totalorder %s37, 1
      %p270 = por %p268, %p269
      %p272 = scmp.ne.s32.totalorder %s257, %s271
      %p273 = scmp.eq.s32.totalorder %s37, 0
      %p274 = por %p272, %p273
      %s276 = sadd.s32 %s275, 1
      %p279 = scmp.eq.s32.totalorder %s31, 1
      %p280 = scmp.ne.s32.totalorder %s275, %s277
      %p281 = scmp.eq.s32.totalorder %s31, 0
      %p282 = por %p280, %p281
      %p283 = scmp.ne.s32.totalorder %s275, %s277
      %p284 = scmp.eq.s32.totalorder %s36, 1
      %p285 = por %p283, %p284
      %p286 = scmp.ne.s32.totalorder %s277, %s278
      %p287 = scmp.eq.s32.totalorder %s36, 0
      %p288 = por %p286, %p287
      %p289 = scmp.ne.s32.totalorder %s277, %s278
      %p290 = scmp.eq.s32.totalorder %s37, 1
      %p291 = por %p289, %p290
      %p293 = scmp.ne.s32.totalorder %s278, %s292
      %p294 = scmp.eq.s32.totalorder %s37, 0
      %p295 = por %p293, %p294
      %s297 = sadd.s32 %s296, 1
      %p300 = scmp.eq.s32.totalorder %s31, 1
      %p301 = scmp.ne.s32.totalorder %s296, %s298
      %p302 = scmp.eq.s32.totalorder %s31, 0
      %p303 = por %p301, %p302
      %p304 = scmp.ne.s32.totalorder %s296, %s298
      %p305 = scmp.eq.s32.totalorder %s36, 1
      %p306 = por %p304, %p305
      %p307 = scmp.ne.s32.totalorder %s298, %s299
      %p308 = scmp.eq.s32.totalorder %s36, 0
      %p309 = por %p307, %p308
      %p310 = scmp.ne.s32.totalorder %s298, %s299
      %p311 = scmp.eq.s32.totalorder %s37, 1
      %p312 = por %p310, %p311
      %p314 = scmp.ne.s32.totalorder %s299, %s313
      %p315 = scmp.eq.s32.totalorder %s37, 0
      %p316 = por %p314, %p315
      %s317 = ssub.s32 %s31, %s38
      %p318 = scmp.eq.s32.totalorder %s317, 0
      %s320 = sadd.s32 %s319, 1
      %s321 = scalar_select %p318, %s319, %s320
      %p324 = pneg %p318
      %p325 = scmp.eq.s32.totalorder %s31, 1
      %p326 = por %p324, %p325
      %p327 = scmp.ne.s32.totalorder %s319, %s322
      %p328 = scmp.eq.s32.totalorder %s31, 0
      %p329 = por %p327, %p328
      %p330 = scmp.ne.s32.totalorder %s319, %s322
      %p331 = scmp.eq.s32.totalorder %s36, 1
      %p332 = por %p330, %p331
      %p333 = scmp.ne.s32.totalorder %s322, %s323
      %p334 = scmp.eq.s32.totalorder %s36, 0
      %p335 = por %p333, %p334
      %p336 = scmp.ne.s32.totalorder %s322, %s323
      %p337 = scmp.eq.s32.totalorder %s37, 1
      %p338 = por %p336, %p337
      %p340 = scmp.ne.s32.totalorder %s323, %s339
      %p341 = scmp.eq.s32.totalorder %s37, 0
      %p342 = por %p340, %p341
      %p343 = scmp.le.s32.totalorder 1, %s31
      %p344 = scmp.lt.s32.totalorder %s31, 3
      %p345 = pnand %p343, %p344
      %p346 = pneg %p345
      // Predicated region
      $region9: #{tpu_custom_call.1} parent=5 // pred_check
        _
      $region10: #{tpu_custom_call.1} parent=5 // pred_check_branch
        %348 = sbr.rel (%p345) target = $region12
      $region11: #{tpu_custom_call.1} parent=5 // pred_region
        %s349 = ssub.s32 %s31, 1
        // Predicated region
        $region13: #{tpu_custom_call.1} parent=11 // pred_check
          %p350 = pneg %p78
        $region14: #{tpu_custom_call.1} parent=11 // pred_check_branch
          %352 = sbr.rel (%p350) target = $region16
        $region15: #{tpu_custom_call.1} parent=11 // pred_region
          %s354 = ssub.s32 16, 16
          %355 = vsyncadd [#allocation6], %s354
          %s357 = sshll.u32 [#allocation5], 4
          %s358 = int_to_ptr.vmem [resolvable:$true] %s357
          %360 = dma.hbm_to_vmem [thread:$0]  %s1, 16, %s358, [#allocation6]
        $region16: #{tpu_custom_call.1} parent=11 // pred_fallthru
          _
        // Predicated region
        $region17: #{tpu_custom_call.1} parent=11 // pred_check
          %p361 = pneg %p99
        $region18: #{tpu_custom_call.1} parent=11 // pred_check_branch
          %363 = sbr.rel (%p361) target = $region20
        $region19: #{tpu_custom_call.1} parent=11 // pred_region
          %s365 = ssub.s32 16, 16
          %366 = vsyncadd [#allocation6], %s365
          %s368 = sshll.u32 [#allocation7], 4
          %s369 = int_to_ptr.vmem [resolvable:$true] %s368
          %371 = dma.hbm_to_vmem [thread:$0]  %s2, 16, %s369, [#allocation6]
        $region20: #{tpu_custom_call.1} parent=11 // pred_fallthru
          _
        // Predicated region
        $region21: #{tpu_custom_call.1} parent=11 // pred_check
          %p372 = pneg %p120
        $region22: #{tpu_custom_call.1} parent=11 // pred_check_branch
          %374 = sbr.rel (%p372) target = $region24
        $region23: #{tpu_custom_call.1} parent=11 // pred_region
          %s376 = ssub.s32 256, 256
          %377 = vsyncadd [#allocation9], %s376
          %s378 = sshll.u32 [#allocation8], 4
          %s379 = int_to_ptr.vmem [resolvable:$true] %s378
          %384 = dma.hbm_to_vmem [thread:$0]  %s3, 256, %s379, [#allocation9], 64, 64, 4
        $region24: #{tpu_custom_call.1} parent=11 // pred_fallthru
          _
        // Predicated region
        $region25: #{tpu_custom_call.1} parent=11 // pred_check
          %p385 = pneg %p141
        $region26: #{tpu_custom_call.1} parent=11 // pred_check_branch
          %387 = sbr.rel (%p385) target = $region28
        $region27: #{tpu_custom_call.1} parent=11 // pred_region
          %s389 = ssub.s32 16, 16
          %390 = vsyncadd [#allocation9], %s389
          %s392 = sshll.u32 [#allocation10], 4
          %s393 = int_to_ptr.vmem [resolvable:$true] %s392
          %395 = dma.hbm_to_vmem [thread:$0]  %s4, 16, %s393, [#allocation9]
        $region28: #{tpu_custom_call.1} parent=11 // pred_fallthru
          _
        // Predicated region
        $region29: #{tpu_custom_call.1} parent=11 // pred_check
          %p396 = pneg %p162
        $region30: #{tpu_custom_call.1} parent=11 // pred_check_branch
          %398 = sbr.rel (%p396) target = $region32
        $region31: #{tpu_custom_call.1} parent=11 // pred_region
          %s400 = ssub.s32 256, 256
          %401 = vsyncadd [#allocation12], %s400
          %s402 = sshll.u32 [#allocation11], 4
          %s403 = int_to_ptr.vmem [resolvable:$true] %s402
          %408 = dma.hbm_to_vmem [thread:$0]  %s5, 256, %s403, [#allocation12], 64, 64, 4
        $region32: #{tpu_custom_call.1} parent=11 // pred_fallthru
          _
        // Predicated region
        $region33: #{tpu_custom_call.1} parent=11 // pred_check
          %p409 = pneg %p183
        $region34: #{tpu_custom_call.1} parent=11 // pred_check_branch
          %411 = sbr.rel (%p409) target = $region36
        $region35: #{tpu_custom_call.1} parent=11 // pred_region
          %s413 = ssub.s32 16, 16
          %414 = vsyncadd [#allocation12], %s413
          %s416 = sshll.u32 [#allocation13], 4
          %s417 = int_to_ptr.vmem [resolvable:$true] %s416
          %419 = dma.hbm_to_vmem [thread:$0]  %s6, 16, %s417, [#allocation12]
        $region36: #{tpu_custom_call.1} parent=11 // pred_fallthru
          _
        // Predicated region
        $region37: #{tpu_custom_call.1} parent=11 // pred_check
          %p420 = pneg %p204
        $region38: #{tpu_custom_call.1} parent=11 // pred_check_branch
          %422 = sbr.rel (%p420) target = $region40
        $region39: #{tpu_custom_call.1} parent=11 // pred_region
          %s424 = ssub.s32 16, 16
          %425 = vsyncadd [#allocation15], %s424
          %s427 = sshll.u32 [#allocation14], 4
          %s428 = int_to_ptr.vmem [resolvable:$true] %s427
          %430 = dma.hbm_to_vmem [thread:$0]  %s7, 16, %s428, [#allocation15]
        $region40: #{tpu_custom_call.1} parent=11 // pred_fallthru
          _
        // Predicated region
        $region41: #{tpu_custom_call.1} parent=11 // pred_check
          %p431 = pneg %p225
        $region42: #{tpu_custom_call.1} parent=11 // pred_check_branch
          %433 = sbr.rel (%p431) target = $region44
        $region43: #{tpu_custom_call.1} parent=11 // pred_region
          %s435 = ssub.s32 16, 16
          %436 = vsyncadd [#allocation15], %s435
          %s438 = sshll.u32 [#allocation16], 4
          %s439 = int_to_ptr.vmem [resolvable:$true] %s438
          %441 = dma.hbm_to_vmem [thread:$0]  %s8, 16, %s439, [#allocation15]
        $region44: #{tpu_custom_call.1} parent=11 // pred_fallthru
          _
        // Predicated region
        $region45: #{tpu_custom_call.1} parent=11 // pred_check
          %p442 = pneg %p246
        $region46: #{tpu_custom_call.1} parent=11 // pred_check_branch
          %444 = sbr.rel (%p442) target = $region48
        $region47: #{tpu_custom_call.1} parent=11 // pred_region
          %s446 = ssub.s32 256, 256
          %447 = vsyncadd [#allocation18], %s446
          %s448 = sshll.u32 [#allocation17], 4
          %s449 = int_to_ptr.vmem [resolvable:$true] %s448
          %454 = dma.hbm_to_vmem [thread:$0]  %s9, 256, %s449, [#allocation18], 64, 64, 4
        $region48: #{tpu_custom_call.1} parent=11 // pred_fallthru
          _
        // Predicated region
        $region49: #{tpu_custom_call.1} parent=11 // pred_check
          %p455 = pneg %p267
        $region50: #{tpu_custom_call.1} parent=11 // pred_check_branch
          %457 = sbr.rel (%p455) target = $region52
        $region51: #{tpu_custom_call.1} parent=11 // pred_region
          %s459 = ssub.s32 16, 16
          %460 = vsyncadd [#allocation18], %s459
          %s462 = sshll.u32 [#allocation19], 4
          %s463 = int_to_ptr.vmem [resolvable:$true] %s462
          %465 = dma.hbm_to_vmem [thread:$0]  %s10, 16, %s463, [#allocation18]
        $region52: #{tpu_custom_call.1} parent=11 // pred_fallthru
          _
        // Predicated region
        $region53: #{tpu_custom_call.1} parent=11 // pred_check
          %p466 = pneg %p288
        $region54: #{tpu_custom_call.1} parent=11 // pred_check_branch
          %468 = sbr.rel (%p466) target = $region56
        $region55: #{tpu_custom_call.1} parent=11 // pred_region
          %s470 = ssub.s32 1024, 1024
          %471 = vsyncadd [#allocation21], %s470
          %s472 = sshll.u32 [#allocation20], 4
          %s473 = int_to_ptr.vmem [resolvable:$true] %s472
          %478 = dma.hbm_to_vmem [thread:$0]  %s11, 1024, %s473, [#allocation21], 64, 64, 4
        $region56: #{tpu_custom_call.1} parent=11 // pred_fallthru
          _
        // Predicated region
        $region57: #{tpu_custom_call.1} parent=11 // pred_check
          %p479 = pneg %p309
        $region58: #{tpu_custom_call.1} parent=11 // pred_check_branch
          %481 = sbr.rel (%p479) target = $region60
        $region59: #{tpu_custom_call.1} parent=11 // pred_region
          %s483 = ssub.s32 16, 16
          %484 = vsyncadd [#allocation21], %s483
          %s486 = sshll.u32 [#allocation22], 4
          %s487 = int_to_ptr.vmem [resolvable:$true] %s486
          %489 = dma.hbm_to_vmem [thread:$0]  %s12, 16, %s487, [#allocation21]
        $region60: #{tpu_custom_call.1} parent=11 // pred_fallthru
          _
      $region12: #{tpu_custom_call.1} parent=5 // pred_fallthru
        _
      %p490 = scmp.lt.s32.totalorder %s31, 2
      // Predicated region
      $region61: #{tpu_custom_call.1} parent=5 // pred_check
        %p491 = pneg %p490
      $region62: #{tpu_custom_call.1} parent=5 // pred_check_branch
        %493 = sbr.rel (%p491) target = $region64
      $region63: #{tpu_custom_call.1} parent=5 // pred_region
        // Predicated region
        $region65: #{tpu_custom_call.1} parent=63 // pred_check
          %p494 = pneg %p51
        $region66: #{tpu_custom_call.1} parent=63 // pred_check_branch
          %496 = sbr.rel (%p494) target = $region68
        $region67: #{tpu_custom_call.1} parent=63 // pred_region
          %s497 = sand.u32 %s41, 1
          %s498 = scalar_lea.sflag [#allocation3], %s497
          %s499 = sand.u32 %s41, 1
          %s500 = smul.addr %s499, 8
          %s501 = scalar_lea.vmem [#allocation2], %s500
          %s503 = ssub.s32 128, 128
          %504 = vsyncadd %s498, %s503
          %s505 = smul.addr %s31, 128
          %s506 = scalar_lea.hbm %s0, %s505
          %s508 = sshll.u32 %s501, 4
          %s509 = int_to_ptr.vmem [resolvable:$true] %s508
          %511 = dma.hbm_to_vmem [thread:$0]  %s506, 128, %s509, %s498
        $region68: #{tpu_custom_call.1} parent=63 // pred_fallthru
          _
      $region64: #{tpu_custom_call.1} parent=5 // pred_fallthru
        _
      %p512 = scmp.le.s32.totalorder 1, %s31
      %p513 = scmp.lt.s32.totalorder %s31, 3
      %p514 = pnand %p512, %p513
      %p515 = pneg %p514
      // Predicated region
      $region69: #{tpu_custom_call.1} parent=5 // pred_check
        _
      $region70: #{tpu_custom_call.1} parent=5 // pred_check_branch
        %517 = sbr.rel (%p514) target = $region72
      $region71: #{tpu_custom_call.1} parent=5 // pred_region
        %s518 = ssub.s32 %s31, 1
        %s519 = sand.u32 %s44, 1
        %s520 = scalar_lea.sflag [#allocation3], %s519
        %s521 = sand.u32 %s44, 1
        %s522 = smul.addr %s521, 8
        %s523 = scalar_lea.vmem [#allocation2], %s522
        // Predicated region
        $region73: #{tpu_custom_call.1} parent=71 // pred_check
          %p524 = pneg %p57
        $region74: #{tpu_custom_call.1} parent=71 // pred_check_branch
          %526 = sbr.rel (%p524) target = $region76
        $region75: #{tpu_custom_call.1} parent=71 // pred_region
          %527 = dma.done %s520, 128
        $region76: #{tpu_custom_call.1} parent=71 // pred_fallthru
          _
        // Predicated region
        $region77: #{tpu_custom_call.1} parent=71 // pred_check
          %p528 = pneg %p78
        $region78: #{tpu_custom_call.1} parent=71 // pred_check_branch
          %530 = sbr.rel (%p528) target = $region80
        $region79: #{tpu_custom_call.1} parent=71 // pred_region
          %531 = dma.done [#allocation6], 16
        $region80: #{tpu_custom_call.1} parent=71 // pred_fallthru
          _
        // Predicated region
        $region81: #{tpu_custom_call.1} parent=71 // pred_check
          %p532 = pneg %p99
        $region82: #{tpu_custom_call.1} parent=71 // pred_check_branch
          %534 = sbr.rel (%p532) target = $region84
        $region83: #{tpu_custom_call.1} parent=71 // pred_region
          %535 = dma.done [#allocation6], 16
        $region84: #{tpu_custom_call.1} parent=71 // pred_fallthru
          _
        // Predicated region
        $region85: #{tpu_custom_call.1} parent=71 // pred_check
          %p536 = pneg %p120
        $region86: #{tpu_custom_call.1} parent=71 // pred_check_branch
          %538 = sbr.rel (%p536) target = $region88
        $region87: #{tpu_custom_call.1} parent=71 // pred_region
          %539 = dma.done [#allocation9], 256
        $region88: #{tpu_custom_call.1} parent=71 // pred_fallthru
          _
        // Predicated region
        $region89: #{tpu_custom_call.1} parent=71 // pred_check
          %p540 = pneg %p141
        $region90: #{tpu_custom_call.1} parent=71 // pred_check_branch
          %542 = sbr.rel (%p540) target = $region92
        $region91: #{tpu_custom_call.1} parent=71 // pred_region
          %543 = dma.done [#allocation9], 16
        $region92: #{tpu_custom_call.1} parent=71 // pred_fallthru
          _
        // Predicated region
        $region93: #{tpu_custom_call.1} parent=71 // pred_check
          %p544 = pneg %p162
        $region94: #{tpu_custom_call.1} parent=71 // pred_check_branch
          %546 = sbr.rel (%p544) target = $region96
        $region95: #{tpu_custom_call.1} parent=71 // pred_region
          %547 = dma.done [#allocation12], 256
        $region96: #{tpu_custom_call.1} parent=71 // pred_fallthru
          _
        // Predicated region
        $region97: #{tpu_custom_call.1} parent=71 // pred_check
          %p548 = pneg %p183
        $region98: #{tpu_custom_call.1} parent=71 // pred_check_branch
          %550 = sbr.rel (%p548) target = $region100
        $region99: #{tpu_custom_call.1} parent=71 // pred_region
          %551 = dma.done [#allocation12], 16
        $region100: #{tpu_custom_call.1} parent=71 // pred_fallthru
          _
        // Predicated region
        $region101: #{tpu_custom_call.1} parent=71 // pred_check
          %p552 = pneg %p204
        $region102: #{tpu_custom_call.1} parent=71 // pred_check_branch
          %554 = sbr.rel (%p552) target = $region104
        $region103: #{tpu_custom_call.1} parent=71 // pred_region
          %555 = dma.done [#allocation15], 16
        $region104: #{tpu_custom_call.1} parent=71 // pred_fallthru
          _
        // Predicated region
        $region105: #{tpu_custom_call.1} parent=71 // pred_check
          %p556 = pneg %p225
        $region106: #{tpu_custom_call.1} parent=71 // pred_check_branch
          %558 = sbr.rel (%p556) target = $region108
        $region107: #{tpu_custom_call.1} parent=71 // pred_region
          %559 = dma.done [#allocation15], 16
        $region108: #{tpu_custom_call.1} parent=71 // pred_fallthru
          _
        // Predicated region
        $region109: #{tpu_custom_call.1} parent=71 // pred_check
          %p560 = pneg %p246
        $region110: #{tpu_custom_call.1} parent=71 // pred_check_branch
          %562 = sbr.rel (%p560) target = $region112
        $region111: #{tpu_custom_call.1} parent=71 // pred_region
          %563 = dma.done [#allocation18], 256
        $region112: #{tpu_custom_call.1} parent=71 // pred_fallthru
          _
        // Predicated region
        $region113: #{tpu_custom_call.1} parent=71 // pred_check
          %p564 = pneg %p267
        $region114: #{tpu_custom_call.1} parent=71 // pred_check_branch
          %566 = sbr.rel (%p564) target = $region116
        $region115: #{tpu_custom_call.1} parent=71 // pred_region
          %567 = dma.done [#allocation18], 16
        $region116: #{tpu_custom_call.1} parent=71 // pred_fallthru
          _
        // Predicated region
        $region117: #{tpu_custom_call.1} parent=71 // pred_check
          %p568 = pneg %p288
        $region118: #{tpu_custom_call.1} parent=71 // pred_check_branch
          %570 = sbr.rel (%p568) target = $region120
        $region119: #{tpu_custom_call.1} parent=71 // pred_region
          %571 = dma.done [#allocation21], 1024
        $region120: #{tpu_custom_call.1} parent=71 // pred_fallthru
          _
        // Predicated region
        $region121: #{tpu_custom_call.1} parent=71 // pred_check
          %p572 = pneg %p309
        $region122: #{tpu_custom_call.1} parent=71 // pred_check_branch
          %574 = sbr.rel (%p572) target = $region124
        $region123: #{tpu_custom_call.1} parent=71 // pred_region
          %575 = dma.done [#allocation21], 16
        $region124: #{tpu_custom_call.1} parent=71 // pred_fallthru
          _
        %s576 = sand.u32 %s44, 1
        %s577 = scalar_lea.sflag [#allocation3], %s576
        %s578 = sand.u32 %s44, 1
        %s579 = smul.addr %s578, 8
        %s580 = scalar_lea.vmem [#allocation2], %s579
        %p581 = pneg %p57
        %p582 = pneg %p54
        %p583 = pneg %p78
        %p584 = pneg %p75
        %p585 = pneg %p99
        %p586 = pneg %p96
        %p587 = pneg %p120
        %p588 = pneg %p117
        %p589 = pneg %p141
        %p590 = pneg %p138
        %p591 = pneg %p162
        %p592 = pneg %p159
        %p593 = pneg %p183
        %p594 = pneg %p180
        %p595 = pneg %p204
        %p596 = pneg %p201
        %p597 = pneg %p225
        %p598 = pneg %p222
        %p599 = pneg %p246
        %p600 = pneg %p243
        %p601 = pneg %p267
        %p602 = pneg %p264
        %p603 = pneg %p288
        %p604 = pneg %p285
        %p605 = pneg %p309
        %p606 = pneg %p306
        %p607 = pneg %p335
        %p608 = pneg %p332
        %s609 = sand.u32 %s322, 1
        %s610 = scalar_lea.sflag [#allocation4], %s609
        %s611 = sand.u32 %s322, 1
        %s612 = smul.addr %s611, 8
        %s613 = scalar_lea.vmem [#allocation23], %s612
        %v615 = vld [vmem:[%s523] sm:$0xff]
        %v616 = vld [vmem:[#allocation5] sm:$0x1]
        %v617 = vld [vmem:[#allocation7] sm:$0x1]
        %vm618 = vcmask 261120
        %v619 = vsel %vm618, %v615, 0.0
        %620 = vadd.xlane.f32.xlu0 %v619
        %v621 = vpop.xlane.xlu0 %620
        %v622 = vrcp.pop 32.0
        %v623 = vmul.f32 %v621, %v622
        %v624 = vsub.f32 %v615, %v623
        %v625 = vmul.f32 %v624, %v624
        %v626 = vsel %vm618, %v625, 0.0
        %627 = vadd.xlane.f32.xlu0 %v626
        %v628 = vpop.xlane.xlu0 %627
        %v629 = vmul.f32 %v628, %v622
        %v630 = vadd.f32 %v629, 1e-05
        %v631 = vrsqrt.pop %v630
        %v632 = vmul.f32 %v624, %v631
        %v634 = vlaneseq
        %v635 = vshrl.u32 %v634, 7
        %v636 = vsub.s32 0, %v635
        %v637 = vrot.slane %v616, %v636
        %v639 = vmul.f32 %v632, %v637
        %v641 = vlaneseq
        %v642 = vshrl.u32 %v641, 7
        %v643 = vsub.s32 0, %v642
        %v644 = vrot.slane %v617, %v643
        %v646 = vadd.f32 %v639, %v644
        %v647 = vpack.c.bf16 %v646, %v646
        %v648 = vld [vmem:[#allocation8] sm:$0xf]
        %v649 = vld [vmem:[#allocation8 + $0x4] sm:$0xf]
        %v650 = vld [vmem:[#allocation8 + $0x8] sm:$0xf]
        %v651 = vld [vmem:[#allocation8 + $0xc] sm:$0xf]
        %v652 = vld [vmem:[#allocation10] sm:$0x1]
        %v654 = vlaneseq
        %v655 = vshrl.u32 %v654, 7
        %v656 = vsub.s32 0, %v655
        %v657 = vrot.slane %v652, %v656
        %v663 = vunpack.c.l.b16 %v648
        %v664 = vunpack.c.l.b16 %v649
        %v665 = vunpack.c.l.b16 %v650
        %v666 = vunpack.c.l.b16 %v651
        %v667 = vpack.c.b16 %v664, %v663
        %v668 = vpack.c.b16 %v666, %v665
        %v672 = vsel %vm618, %v647, 0
        %674 = vmatprep.subr.bf16.mxu0 0
        %675 = vmatpush1.bf16.msra.mxu0 %v667
        %676 = vmatprep.subr.bf16.mxu0 0
        %677 = vmatpush1.bf16.msra.mxu0 %v668
        %678 = vmatprep.subr.bf16.mxu0 0
        %679 = vmatpush1.bf16.msra.mxu0 0
        %680 = vmatprep.subr.bf16.mxu0 0
        %681 = vmatpush1.bf16.msra.mxu0 0
        %682 = vmatprep.subr.bf16.mxu0 0
        %683 = vmatpush1.bf16.msra.mxu0 0
        %684 = vmatprep.subr.bf16.mxu0 0
        %685 = vmatpush1.bf16.msra.mxu0 0
        %686 = vmatprep.subr.bf16.mxu0 0
        %687 = vmatpush1.bf16.msra.mxu0 0
        %688 = vmatprep.subr.bf16.mxu0 0
        %689 = vmatpush1.bf16.msra.mxu0 0
        %690 = vmatprep.subr.bf16.mxu0 0
        %691 = vmatpush1.bf16.msra.mxu0 0
        %692 = vmatprep.subr.bf16.mxu0 0
        %693 = vmatpush1.bf16.msra.mxu0 0
        %694 = vmatprep.subr.bf16.mxu0 0
        %695 = vmatpush1.bf16.msra.mxu0 0
        %696 = vmatprep.subr.bf16.mxu0 0
        %697 = vmatpush1.bf16.msra.mxu0 0
        %698 = vmatprep.subr.bf16.mxu0 0
        %699 = vmatpush1.bf16.msra.mxu0 0
        %700 = vmatprep.subr.bf16.mxu0 0
        %701 = vmatpush1.bf16.msra.mxu0 0
        %702 = vmatprep.subr.bf16.mxu0 0
        %703 = vmatpush1.bf16.msra.mxu0 0
        %704 = vmatprep.subr.bf16.mxu0 0
        %705 = vmatpush1.bf16.msra.mxu0 0
        %706 = vmatprep.mubr.bf16.mxu0 0
        %707 = vmatmul.mubr.bf16.gmra.mrb[0].mxu0 %v672
        %v708 = vpop.f32.mrb[0].mxu0
        %v709 = vadd.f32 %v657, %v708
        %v710 = vpop.f32.mrb[0].mxu0
        %v711 = vpop.f32.mrb[0].mxu0
        %v712 = vpop.f32.mrb[0].mxu0
        %713 = vdwg.mxu0
        %v714 = vlaneseq
        %v715 = vshrl.u32 %v714, 7
        %v716 = vlaneseq
        %v717 = vand.u32 %v716, 127
        %vm718 = vcmp.le.s32.totalorder %v717, %v715
        %v719 = vmul.f32 %v709, 0.35355338
        %v720 = vpack.c.bf16 %v719, %v719
        %v721 = vpack.c.bf16 %v709, %v709
        %723 = vrot.lane.b32.xlu0 %v721, 96
        %v724 = vpop.permute.xlu0 %723
        %vm725 = vcmask 64512
        %v727 = vsel %vm725, %v720, 0
        %v730 = vsel %vm725, %v724, 0
        %732 = vmatprep.subr.bf16.mxu0 0
        %733 = vmatpush1.bf16.xpose.msra.mxu0 %v730
        %734 = vmatprep.subr.bf16.mxu0 0
        %735 = vmatpush1.bf16.xpose.msra.mxu0 0
        %736 = vmatprep.subr.bf16.mxu0 0
        %737 = vmatpush1.bf16.xpose.msra.mxu0 0
        %738 = vmatprep.subr.bf16.mxu0 0
        %739 = vmatpush1.bf16.xpose.msra.mxu0 0
        %740 = vmatprep.subr.bf16.mxu0 0
        %741 = vmatpush1.bf16.xpose.msra.mxu0 0
        %742 = vmatprep.subr.bf16.mxu0 0
        %743 = vmatpush1.bf16.xpose.msra.mxu0 0
        %744 = vmatprep.subr.bf16.mxu0 0
        %745 = vmatpush1.bf16.xpose.msra.mxu0 0
        %746 = vmatprep.subr.bf16.mxu0 0
        %747 = vmatpush1.bf16.xpose.msra.mxu0 0
        %748 = vmatprep.subr.bf16.mxu0 0
        %749 = vmatpush1.bf16.xpose.msra.mxu0 0
        %750 = vmatprep.subr.bf16.mxu0 0
        %751 = vmatpush1.bf16.xpose.msra.mxu0 0
        %752 = vmatprep.subr.bf16.mxu0 0
        %753 = vmatpush1.bf16.xpose.msra.mxu0 0
        %754 = vmatprep.subr.bf16.mxu0 0
        %755 = vmatpush1.bf16.xpose.msra.mxu0 0
        %756 = vmatprep.subr.bf16.mxu0 0
        %757 = vmatpush1.bf16.xpose.msra.mxu0 0
        %758 = vmatprep.subr.bf16.mxu0 0
        %759 = vmatpush1.bf16.xpose.msra.mxu0 0
        %760 = vmatprep.subr.bf16.mxu0 0
        %761 = vmatpush1.bf16.xpose.msra.mxu0 0
        %762 = vmatprep.subr.bf16.mxu0 0
        %763 = vmatpush1.bf16.xpose.msra.mxu0 0
        %764 = vmatprep.mubr.bf16.mxu0 0
        %765 = vmatmul.mubr.bf16.gmra.mrb[0].mxu0 %v727
        %v766 = vpop.f32.mrb[0].mxu0
        %v767 = vadd.f32 0.0, %v766
        %v768 = vpop.f32.mrb[0].mxu0
        %v769 = vpop.f32.mrb[0].mxu0
        %v770 = vpop.f32.mrb[0].mxu0
        %771 = vdwg.mxu0
        %v772 = vsel %vm718, %v767, -1e+30
        %v773 = vsel %vm725, %v772, -inf
        %774 = vmax.xlane.f32.xlu0 %v773
        %v775 = vpop.xlane.xlu0 %774
        %v776 = vsub.f32 %v772, %v775
        %v777 = vmul.f32 %v776, 1.442695
        %v778 = vpow.pop %v777
        %v779 = vsel %vm725, %v778, 0.0
        %780 = vadd.xlane.f32.xlu0 %v779
        %v781 = vpop.xlane.xlu0 %780
        %v782 = vrcp.pop %v781
        %v783 = vmul.f32 %v778, %v782
        %v784 = vpack.c.bf16 %v783, %v783
        %785 = vrot.lane.b32.xlu0 %v721, 64
        %v786 = vpop.permute.xlu0 %785
        %v788 = vsel %vm725, %v784, 0
        %vm790 = vcmask 1043456
        %v792 = vsel %vm790, %v786, 0
        %794 = vmatprep.subr.bf16.mxu0 0
        %795 = vmatpush1.bf16.msra.mxu0 %v792
        %796 = vmatprep.subr.bf16.mxu0 0
        %797 = vmatpush1.bf16.msra.mxu0 0
        %798 = vmatprep.subr.bf16.mxu0 0
        %799 = vmatpush1.bf16.msra.mxu0 0
        %800 = vmatprep.subr.bf16.mxu0 0
        %801 = vmatpush1.bf16.msra.mxu0 0
        %802 = vmatprep.subr.bf16.mxu0 0
        %803 = vmatpush1.bf16.msra.mxu0 0
        %804 = vmatprep.subr.bf16.mxu0 0
        %805 = vmatpush1.bf16.msra.mxu0 0
        %806 = vmatprep.subr.bf16.mxu0 0
        %807 = vmatpush1.bf16.msra.mxu0 0
        %808 = vmatprep.subr.bf16.mxu0 0
        %809 = vmatpush1.bf16.msra.mxu0 0
        %810 = vmatprep.subr.bf16.mxu0 0
        %811 = vmatpush1.bf16.msra.mxu0 0
        %812 = vmatprep.subr.bf16.mxu0 0
        %813 = vmatpush1.bf16.msra.mxu0 0
        %814 = vmatprep.subr.bf16.mxu0 0
        %815 = vmatpush1.bf16.msra.mxu0 0
        %816 = vmatprep.subr.bf16.mxu0 0
        %817 = vmatpush1.bf16.msra.mxu0 0
        %818 = vmatprep.subr.bf16.mxu0 0
        %819 = vmatpush1.bf16.msra.mxu0 0
        %820 = vmatprep.subr.bf16.mxu0 0
        %821 = vmatpush1.bf16.msra.mxu0 0
        %822 = vmatprep.subr.bf16.mxu0 0
        %823 = vmatpush1.bf16.msra.mxu0 0
        %824 = vmatprep.subr.bf16.mxu0 0
        %825 = vmatpush1.bf16.msra.mxu0 0
        %826 = vmatprep.mubr.bf16.mxu0 0
        %827 = vmatmul.mubr.bf16.gmra.mrb[0].mxu0 %v788
        %v828 = vpop.f32.mrb[0].mxu0
        %v829 = vadd.f32 0.0, %v828
        %v830 = vpop.f32.mrb[0].mxu0
        %v831 = vpop.f32.mrb[0].mxu0
        %v832 = vpop.f32.mrb[0].mxu0
        %833 = vdwg.mxu0
        %835 = vrot.lane.b32.xlu0 %v720, 120
        %v836 = vpop.permute.xlu0 %835
        %837 = vrot.lane.b32.xlu0 %v721, 88
        %v838 = vpop.permute.xlu0 %837
        %v840 = vsel %vm725, %v836, 0
        %v843 = vsel %vm725, %v838, 0
        %845 = vmatprep.subr.bf16.mxu0 0
        %846 = vmatpush1.bf16.xpose.msra.mxu0 %v843
        %847 = vmatprep.subr.bf16.mxu0 0
        %848 = vmatpush1.bf16.xpose.msra.mxu0 0
        %849 = vmatprep.subr.bf16.mxu0 0
        %850 = vmatpush1.bf16.xpose.msra.mxu0 0
        %851 = vmatprep.subr.bf16.mxu0 0
        %852 = vmatpush1.bf16.xpose.msra.mxu0 0
        %853 = vmatprep.subr.bf16.mxu0 0
        %854 = vmatpush1.bf16.xpose.msra.mxu0 0
        %855 = vmatprep.subr.bf16.mxu0 0
        %856 = vmatpush1.bf16.xpose.msra.mxu0 0
        %857 = vmatprep.subr.bf16.mxu0 0
        %858 = vmatpush1.bf16.xpose.msra.mxu0 0
        %859 = vmatprep.subr.bf16.mxu0 0
        %860 = vmatpush1.bf16.xpose.msra.mxu0 0
        %861 = vmatprep.subr.bf16.mxu0 0
        %862 = vmatpush1.bf16.xpose.msra.mxu0 0
        %863 = vmatprep.subr.bf16.mxu0 0
        %864 = vmatpush1.bf16.xpose.msra.mxu0 0
        %865 = vmatprep.subr.bf16.mxu0 0
        %866 = vmatpush1.bf16.xpose.msra.mxu0 0
        %867 = vmatprep.subr.bf16.mxu0 0
        %868 = vmatpush1.bf16.xpose.msra.mxu0 0
        %869 = vmatprep.subr.bf16.mxu0 0
        %870 = vmatpush1.bf16.xpose.msra.mxu0 0
        %871 = vmatprep.subr.bf16.mxu0 0
        %872 = vmatpush1.bf16.xpose.msra.mxu0 0
        %873 = vmatprep.subr.bf16.mxu0 0
        %874 = vmatpush1.bf16.xpose.msra.mxu0 0
        %875 = vmatprep.subr.bf16.mxu0 0
        %876 = vmatpush1.bf16.xpose.msra.mxu0 0
        %877 = vmatprep.mubr.bf16.mxu0 0
        %878 = vmatmul.mubr.bf16.gmra.mrb[0].mxu0 %v840
        %v879 = vpop.f32.mrb[0].mxu0
        %v880 = vadd.f32 0.0, %v879
        %v881 = vpop.f32.mrb[0].mxu0
        %v882 = vpop.f32.mrb[0].mxu0
        %v883 = vpop.f32.mrb[0].mxu0
        %884 = vdwg.mxu0
        %v885 = vsel %vm718, %v880, -1e+30
        %v886 = vsel %vm725, %v885, -inf
        %887 = vmax.xlane.f32.xlu0 %v886
        %v888 = vpop.xlane.xlu0 %887
        %v889 = vsub.f32 %v885, %v888
        %v890 = vmul.f32 %v889, 1.442695
        %v891 = vpow.pop %v890
        %v892 = vsel %vm725, %v891, 0.0
        %893 = vadd.xlane.f32.xlu0 %v892
        %v894 = vpop.xlane.xlu0 %893
        %v895 = vrcp.pop %v894
        %v896 = vmul.f32 %v891, %v895
        %v897 = vpack.c.bf16 %v896, %v896
        %898 = vrot.lane.b32.xlu0 %v721, 56
        %v899 = vpop.permute.xlu0 %898
        %v901 = vsel %vm725, %v897, 0
        %v904 = vsel %vm790, %v899, 0
        %906 = vmatprep.subr.bf16.mxu0 0
        %907 = vmatpush1.bf16.msra.mxu0 %v904
        %908 = vmatprep.subr.bf16.mxu0 0
        %909 = vmatpush1.bf16.msra.mxu0 0
        %910 = vmatprep.subr.bf16.mxu0 0
        %911 = vmatpush1.bf16.msra.mxu0 0
        %912 = vmatprep.subr.bf16.mxu0 0
        %913 = vmatpush1.bf16.msra.mxu0 0
        %914 = vmatprep.subr.bf16.mxu0 0
        %915 = vmatpush1.bf16.msra.mxu0 0
        %916 = vmatprep.subr.bf16.mxu0 0
        %917 = vmatpush1.bf16.msra.mxu0 0
        %918 = vmatprep.subr.bf16.mxu0 0
        %919 = vmatpush1.bf16.msra.mxu0 0
        %920 = vmatprep.subr.bf16.mxu0 0
        %921 = vmatpush1.bf16.msra.mxu0 0
        %922 = vmatprep.subr.bf16.mxu0 0
        %923 = vmatpush1.bf16.msra.mxu0 0
        %924 = vmatprep.subr.bf16.mxu0 0
        %925 = vmatpush1.bf16.msra.mxu0 0
        %926 = vmatprep.subr.bf16.mxu0 0
        %927 = vmatpush1.bf16.msra.mxu0 0
        %928 = vmatprep.subr.bf16.mxu0 0
        %929 = vmatpush1.bf16.msra.mxu0 0
        %930 = vmatprep.subr.bf16.mxu0 0
        %931 = vmatpush1.bf16.msra.mxu0 0
        %932 = vmatprep.subr.bf16.mxu0 0
        %933 = vmatpush1.bf16.msra.mxu0 0
        %934 = vmatprep.subr.bf16.mxu0 0
        %935 = vmatpush1.bf16.msra.mxu0 0
        %936 = vmatprep.subr.bf16.mxu0 0
        %937 = vmatpush1.bf16.msra.mxu0 0
        %938 = vmatprep.mubr.bf16.mxu0 0
        %939 = vmatmul.mubr.bf16.gmra.mrb[0].mxu0 %v901
        %v940 = vpop.f32.mrb[0].mxu0
        %v941 = vadd.f32 0.0, %v940
        %v942 = vpop.f32.mrb[0].mxu0
        %v943 = vpop.f32.mrb[0].mxu0
        %v944 = vpop.f32.mrb[0].mxu0
        %945 = vdwg.mxu0
        %946 = vrot.lane.b32.xlu0 %v720, 112
        %v947 = vpop.permute.xlu0 %946
        %948 = vrot.lane.b32.xlu0 %v721, 80
        %v949 = vpop.permute.xlu0 %948
        %v951 = vsel %vm725, %v947, 0
        %v954 = vsel %vm725, %v949, 0
        %956 = vmatprep.subr.bf16.mxu0 0
        %957 = vmatpush1.bf16.xpose.msra.mxu0 %v954
        %958 = vmatprep.subr.bf16.mxu0 0
        %959 = vmatpush1.bf16.xpose.msra.mxu0 0
        %960 = vmatprep.subr.bf16.mxu0 0
        %961 = vmatpush1.bf16.xpose.msra.mxu0 0
        %962 = vmatprep.subr.bf16.mxu0 0
        %963 = vmatpush1.bf16.xpose.msra.mxu0 0
        %964 = vmatprep.subr.bf16.mxu0 0
        %965 = vmatpush1.bf16.xpose.msra.mxu0 0
        %966 = vmatprep.subr.bf16.mxu0 0
        %967 = vmatpush1.bf16.xpose.msra.mxu0 0
        %968 = vmatprep.subr.bf16.mxu0 0
        %969 = vmatpush1.bf16.xpose.msra.mxu0 0
        %970 = vmatprep.subr.bf16.mxu0 0
        %971 = vmatpush1.bf16.xpose.msra.mxu0 0
        %972 = vmatprep.subr.bf16.mxu0 0
        %973 = vmatpush1.bf16.xpose.msra.mxu0 0
        %974 = vmatprep.subr.bf16.mxu0 0
        %975 = vmatpush1.bf16.xpose.msra.mxu0 0
        %976 = vmatprep.subr.bf16.mxu0 0
        %977 = vmatpush1.bf16.xpose.msra.mxu0 0
        %978 = vmatprep.subr.bf16.mxu0 0
        %979 = vmatpush1.bf16.xpose.msra.mxu0 0
        %980 = vmatprep.subr.bf16.mxu0 0
        %981 = vmatpush1.bf16.xpose.msra.mxu0 0
        %982 = vmatprep.subr.bf16.mxu0 0
        %983 = vmatpush1.bf16.xpose.msra.mxu0 0
        %984 = vmatprep.subr.bf16.mxu0 0
        %985 = vmatpush1.bf16.xpose.msra.mxu0 0
        %986 = vmatprep.subr.bf16.mxu0 0
        %987 = vmatpush1.bf16.xpose.msra.mxu0 0
        %988 = vmatprep.mubr.bf16.mxu0 0
        %989 = vmatmul.mubr.bf16.gmra.mrb[0].mxu0 %v951
        %v990 = vpop.f32.mrb[0].mxu0
        %v991 = vadd.f32 0.0, %v990
        %v992 = vpop.f32.mrb[0].mxu0
        %v993 = vpop.f32.mrb[0].mxu0
        %v994 = vpop.f32.mrb[0].mxu0
        %995 = vdwg.mxu0
        %v996 = vsel %vm718, %v991, -1e+30
        %v997 = vsel %vm725, %v996, -inf
        %998 = vmax.xlane.f32.xlu0 %v997
        %v999 = vpop.xlane.xlu0 %998
        %v1000 = vsub.f32 %v996, %v999
        %v1001 = vmul.f32 %v1000, 1.442695
        %v1002 = vpow.pop %v1001
        %v1003 = vsel %vm725, %v1002, 0.0
        %1004 = vadd.xlane.f32.xlu0 %v1003
        %v1005 = vpop.xlane.xlu0 %1004
        %v1006 = vrcp.pop %v1005
        %v1007 = vmul.f32 %v1002, %v1006
        %v1008 = vpack.c.bf16 %v1007, %v1007
        %1009 = vrot.lane.b32.xlu0 %v721, 48
        %v1010 = vpop.permute.xlu0 %1009
        %v1012 = vsel %vm725, %v1008, 0
        %v1015 = vsel %vm790, %v1010, 0
        %1017 = vmatprep.subr.bf16.mxu0 0
        %1018 = vmatpush1.bf16.msra.mxu0 %v1015
        %1019 = vmatprep.subr.bf16.mxu0 0
        %1020 = vmatpush1.bf16.msra.mxu0 0
        %1021 = vmatprep.subr.bf16.mxu0 0
        %1022 = vmatpush1.bf16.msra.mxu0 0
        %1023 = vmatprep.subr.bf16.mxu0 0
        %1024 = vmatpush1.bf16.msra.mxu0 0
        %1025 = vmatprep.subr.bf16.mxu0 0
        %1026 = vmatpush1.bf16.msra.mxu0 0
        %1027 = vmatprep.subr.bf16.mxu0 0
        %1028 = vmatpush1.bf16.msra.mxu0 0
        %1029 = vmatprep.subr.bf16.mxu0 0
        %1030 = vmatpush1.bf16.msra.mxu0 0
        %1031 = vmatprep.subr.bf16.mxu0 0
        %1032 = vmatpush1.bf16.msra.mxu0 0
        %1033 = vmatprep.subr.bf16.mxu0 0
        %1034 = vmatpush1.bf16.msra.mxu0 0
        %1035 = vmatprep.subr.bf16.mxu0 0
        %1036 = vmatpush1.bf16.msra.mxu0 0
        %1037 = vmatprep.subr.bf16.mxu0 0
        %1038 = vmatpush1.bf16.msra.mxu0 0
        %1039 = vmatprep.subr.bf16.mxu0 0
        %1040 = vmatpush1.bf16.msra.mxu0 0
        %1041 = vmatprep.subr.bf16.mxu0 0
        %1042 = vmatpush1.bf16.msra.mxu0 0
        %1043 = vmatprep.subr.bf16.mxu0 0
        %1044 = vmatpush1.bf16.msra.mxu0 0
        %1045 = vmatprep.subr.bf16.mxu0 0
        %1046 = vmatpush1.bf16.msra.mxu0 0
        %1047 = vmatprep.subr.bf16.mxu0 0
        %1048 = vmatpush1.bf16.msra.mxu0 0
        %1049 = vmatprep.mubr.bf16.mxu0 0
        %1050 = vmatmul.mubr.bf16.gmra.mrb[0].mxu0 %v1012
        %v1051 = vpop.f32.mrb[0].mxu0
        %v1052 = vadd.f32 0.0, %v1051
        %v1053 = vpop.f32.mrb[0].mxu0
        %v1054 = vpop.f32.mrb[0].mxu0
        %v1055 = vpop.f32.mrb[0].mxu0
        %1056 = vdwg.mxu0
        %1057 = vrot.lane.b32.xlu0 %v720, 104
        %v1058 = vpop.permute.xlu0 %1057
        %1059 = vrot.lane.b32.xlu0 %v721, 72
        %v1060 = vpop.permute.xlu0 %1059
        %v1062 = vsel %vm725, %v1058, 0
        %v1065 = vsel %vm725, %v1060, 0
        %1067 = vmatprep.subr.bf16.mxu0 0
        %1068 = vmatpush1.bf16.xpose.msra.mxu0 %v1065
        %1069 = vmatprep.subr.bf16.mxu0 0
        %1070 = vmatpush1.bf16.xpose.msra.mxu0 0
        %1071 = vmatprep.subr.bf16.mxu0 0
        %1072 = vmatpush1.bf16.xpose.msra.mxu0 0
        %1073 = vmatprep.subr.bf16.mxu0 0
        %1074 = vmatpush1.bf16.xpose.msra.mxu0 0
        %1075 = vmatprep.subr.bf16.mxu0 0
        %1076 = vmatpush1.bf16.xpose.msra.mxu0 0
        %1077 = vmatprep.subr.bf16.mxu0 0
        %1078 = vmatpush1.bf16.xpose.msra.mxu0 0
        %1079 = vmatprep.subr.bf16.mxu0 0
        %1080 = vmatpush1.bf16.xpose.msra.mxu0 0
        %1081 = vmatprep.subr.bf16.mxu0 0
        %1082 = vmatpush1.bf16.xpose.msra.mxu0 0
        %1083 = vmatprep.subr.bf16.mxu0 0
        %1084 = vmatpush1.bf16.xpose.msra.mxu0 0
        %1085 = vmatprep.subr.bf16.mxu0 0
        %1086 = vmatpush1.bf16.xpose.msra.mxu0 0
        %1087 = vmatprep.subr.bf16.mxu0 0
        %1088 = vmatpush1.bf16.xpose.msra.mxu0 0
        %1089 = vmatprep.subr.bf16.mxu0 0
        %1090 = vmatpush1.bf16.xpose.msra.mxu0 0
        %1091 = vmatprep.subr.bf16.mxu0 0
        %1092 = vmatpush1.bf16.xpose.msra.mxu0 0
        %1093 = vmatprep.subr.bf16.mxu0 0
        %1094 = vmatpush1.bf16.xpose.msra.mxu0 0
        %1095 = vmatprep.subr.bf16.mxu0 0
        %1096 = vmatpush1.bf16.xpose.msra.mxu0 0
        %1097 = vmatprep.subr.bf16.mxu0 0
        %1098 = vmatpush1.bf16.xpose.msra.mxu0 0
        %1099 = vmatprep.mubr.bf16.mxu0 0
        %1100 = vmatmul.mubr.bf16.gmra.mrb[0].mxu0 %v1062
        %v1101 = vpop.f32.mrb[0].mxu0
        %v1102 = vadd.f32 0.0, %v1101
        %v1103 = vpop.f32.mrb[0].mxu0
        %v1104 = vpop.f32.mrb[0].mxu0
        %v1105 = vpop.f32.mrb[0].mxu0
        %1106 = vdwg.mxu0
        %v1107 = vsel %vm718, %v1102, -1e+30
        %v1108 = vsel %vm725, %v1107, -inf
        %1109 = vmax.xlane.f32.xlu0 %v1108
        %v1110 = vpop.xlane.xlu0 %1109
        %v1111 = vsub.f32 %v1107, %v1110
        %v1112 = vmul.f32 %v1111, 1.442695
        %v1113 = vpow.pop %v1112
        %v1114 = vsel %vm725, %v1113, 0.0
        %1115 = vadd.xlane.f32.xlu0 %v1114
        %v1116 = vpop.xlane.xlu0 %1115
        %v1117 = vrcp.pop %v1116
        %v1118 = vmul.f32 %v1113, %v1117
        %v1119 = vpack.c.bf16 %v1118, %v1118
        %1120 = vrot.lane.b32.xlu0 %v721, 40
        %v1121 = vpop.permute.xlu0 %1120
        %v1123 = vsel %vm725, %v1119, 0
        %v1126 = vsel %vm790, %v1121, 0
        %1128 = vmatprep.subr.bf16.mxu0 0
        %1129 = vmatpush1.bf16.msra.mxu0 %v1126
        %1130 = vmatprep.subr.bf16.mxu0 0
        %1131 = vmatpush1.bf16.msra.mxu0 0
        %1132 = vmatprep.subr.bf16.mxu0 0
        %1133 = vmatpush1.bf16.msra.mxu0 0
        %1134 = vmatprep.subr.bf16.mxu0 0
        %1135 = vmatpush1.bf16.msra.mxu0 0
        %1136 = vmatprep.subr.bf16.mxu0 0
        %1137 = vmatpush1.bf16.msra.mxu0 0
        %1138 = vmatprep.subr.bf16.mxu0 0
        %1139 = vmatpush1.bf16.msra.mxu0 0
        %1140 = vmatprep.subr.bf16.mxu0 0
        %1141 = vmatpush1.bf16.msra.mxu0 0
        %1142 = vmatprep.subr.bf16.mxu0 0
        %1143 = vmatpush1.bf16.msra.mxu0 0
        %1144 = vmatprep.subr.bf16.mxu0 0
        %1145 = vmatpush1.bf16.msra.mxu0 0
        %1146 = vmatprep.subr.bf16.mxu0 0
        %1147 = vmatpush1.bf16.msra.mxu0 0
        %1148 = vmatprep.subr.bf16.mxu0 0
        %1149 = vmatpush1.bf16.msra.mxu0 0
        %1150 = vmatprep.subr.bf16.mxu0 0
        %1151 = vmatpush1.bf16.msra.mxu0 0
        %1152 = vmatprep.subr.bf16.mxu0 0
        %1153 = vmatpush1.bf16.msra.mxu0 0
        %1154 = vmatprep.subr.bf16.mxu0 0
        %1155 = vmatpush1.bf16.msra.mxu0 0
        %1156 = vmatprep.subr.bf16.mxu0 0
        %1157 = vmatpush1.bf16.msra.mxu0 0
        %1158 = vmatprep.subr.bf16.mxu0 0
        %1159 = vmatpush1.bf16.msra.mxu0 0
        %1160 = vmatprep.mubr.bf16.mxu0 0
        %1161 = vmatmul.mubr.bf16.gmra.mrb[0].mxu0 %v1123
        %v1162 = vpop.f32.mrb[0].mxu0
        %v1163 = vadd.f32 0.0, %v1162
        %v1164 = vpop.f32.mrb[0].mxu0
        %v1165 = vpop.f32.mrb[0].mxu0
        %v1166 = vpop.f32.mrb[0].mxu0
        %1167 = vdwg.mxu0
        %1169 = vrot.lane.b32.xlu0 %v941, 8
        %v1170 = vpop.permute.xlu0 %1169
        %1173 = vrot.lane.b32.xlu0 %v1052, 16
        %v1174 = vpop.permute.xlu0 %1173
        %1177 = vrot.lane.b32.xlu0 %v1163, 24
        %v1178 = vpop.permute.xlu0 %1177
        %v1180 = vsel %vm725, %v829, %v1170
        %vm1181 = vcmask 130048
        %v1182 = vsel %vm1181, %v1180, %v1174
        %vm1183 = vcmask 195584
        %v1184 = vsel %vm1183, %v1182, %v1178
        %v1185 = vpack.c.bf16 %v1184, %v1184
        %v1186 = vld [vmem:[#allocation11] sm:$0xf]
        %v1187 = vld [vmem:[#allocation11 + $0x4] sm:$0xf]
        %v1188 = vld [vmem:[#allocation11 + $0x8] sm:$0xf]
        %v1189 = vld [vmem:[#allocation11 + $0xc] sm:$0xf]
        %v1194 = vunpack.c.l.b16 %v1186
        %v1195 = vunpack.c.l.b16 %v1187
        %v1196 = vunpack.c.l.b16 %v1188
        %v1197 = vunpack.c.l.b16 %v1189
        %v1198 = vpack.c.b16 %v1195, %v1194
        %v1199 = vpack.c.b16 %v1197, %v1196
        %v1203 = vsel %vm618, %v1185, 0
        %1205 = vmatprep.subr.bf16.mxu0 0
        %1206 = vmatpush1.bf16.msra.mxu0 %v1198
        %1207 = vmatprep.subr.bf16.mxu0 0
        %1208 = vmatpush1.bf16.msra.mxu0 %v1199
        %1209 = vmatprep.subr.bf16.mxu0 0
        %1210 = vmatpush1.bf16.msra.mxu0 0
        %1211 = vmatprep.subr.bf16.mxu0 0
        %1212 = vmatpush1.bf16.msra.mxu0 0
        %1213 = vmatprep.subr.bf16.mxu0 0
        %1214 = vmatpush1.bf16.msra.mxu0 0
        %1215 = vmatprep.subr.bf16.mxu0 0
        %1216 = vmatpush1.bf16.msra.mxu0 0
        %1217 = vmatprep.subr.bf16.mxu0 0
        %1218 = vmatpush1.bf16.msra.mxu0 0
        %1219 = vmatprep.subr.bf16.mxu0 0
        %1220 = vmatpush1.bf16.msra.mxu0 0
        %1221 = vmatprep.subr.bf16.mxu0 0
        %1222 = vmatpush1.bf16.msra.mxu0 0
        %1223 = vmatprep.subr.bf16.mxu0 0
        %1224 = vmatpush1.bf16.msra.mxu0 0
        %1225 = vmatprep.subr.bf16.mxu0 0
        %1226 = vmatpush1.bf16.msra.mxu0 0
        %1227 = vmatprep.subr.bf16.mxu0 0
        %1228 = vmatpush1.bf16.msra.mxu0 0
        %1229 = vmatprep.subr.bf16.mxu0 0
        %1230 = vmatpush1.bf16.msra.mxu0 0
        %1231 = vmatprep.subr.bf16.mxu0 0
        %1232 = vmatpush1.bf16.msra.mxu0 0
        %1233 = vmatprep.subr.bf16.mxu0 0
        %1234 = vmatpush1.bf16.msra.mxu0 0
        %1235 = vmatprep.subr.bf16.mxu0 0
        %1236 = vmatpush1.bf16.msra.mxu0 0
        %1237 = vmatprep.mubr.bf16.mxu0 0
        %1238 = vmatmul.mubr.bf16.gmra.mrb[0].mxu0 %v1203
        %v1239 = vpop.f32.mrb[0].mxu0
        %v1240 = vadd.f32 0.0, %v1239
        %v1241 = vpop.f32.mrb[0].mxu0
        %v1242 = vpop.f32.mrb[0].mxu0
        %v1243 = vpop.f32.mrb[0].mxu0
        %1244 = vdwg.mxu0
        %v1245 = vadd.f32 %v615, %v1240
        %v1246 = vld [vmem:[#allocation13] sm:$0x1]
        %v1248 = vlaneseq
        %v1249 = vshrl.u32 %v1248, 7
        %v1250 = vsub.s32 0, %v1249
        %v1251 = vrot.slane %v1246, %v1250
        %v1253 = vadd.f32 %v1245, %v1251
        %v1254 = vld [vmem:[#allocation14] sm:$0x1]
        %v1255 = vld [vmem:[#allocation16] sm:$0x1]
        %v1256 = vsel %vm618, %v1253, 0.0
        %1257 = vadd.xlane.f32.xlu0 %v1256
        %v1258 = vpop.xlane.xlu0 %1257
        %v1259 = vmul.f32 %v1258, %v622
        %v1260 = vsub.f32 %v1253, %v1259
        %v1261 = vmul.f32 %v1260, %v1260
        %v1262 = vsel %vm618, %v1261, 0.0
        %1263 = vadd.xlane.f32.xlu0 %v1262
        %v1264 = vpop.xlane.xlu0 %1263
        %v1265 = vmul.f32 %v1264, %v622
        %v1266 = vadd.f32 %v1265, 1e-05
        %v1267 = vrsqrt.pop %v1266
        %v1268 = vmul.f32 %v1260, %v1267
        %v1270 = vlaneseq
        %v1271 = vshrl.u32 %v1270, 7
        %v1272 = vsub.s32 0, %v1271
        %v1273 = vrot.slane %v1254, %v1272
        %v1275 = vmul.f32 %v1268, %v1273
        %v1277 = vlaneseq
        %v1278 = vshrl.u32 %v1277, 7
        %v1279 = vsub.s32 0, %v1278
        %v1280 = vrot.slane %v1255, %v1279
        %v1282 = vadd.f32 %v1275, %v1280
        %v1283 = vpack.c.bf16 %v1282, %v1282
        %v1284 = vld [vmem:[#allocation17] sm:$0xf]
        %v1285 = vld [vmem:[#allocation17 + $0x4] sm:$0xf]
        %v1286 = vld [vmem:[#allocation17 + $0x8] sm:$0xf]
        %v1287 = vld [vmem:[#allocation17 + $0xc] sm:$0xf]
        %v1288 = vld [vmem:[#allocation19] sm:$0x1]
        %v1290 = vlaneseq
        %v1291 = vshrl.u32 %v1290, 7
        %v1292 = vsub.s32 0, %v1291
        %v1293 = vrot.slane %v1288, %v1292
        %v1299 = vunpack.c.l.b16 %v1284
        %v1300 = vunpack.c.l.b16 %v1285
        %v1301 = vunpack.c.l.b16 %v1286
        %v1302 = vunpack.c.l.b16 %v1287
        %v1303 = vpack.c.b16 %v1300, %v1299
        %v1304 = vpack.c.b16 %v1302, %v1301
        %v1308 = vsel %vm618, %v1283, 0
        %1310 = vmatprep.subr.bf16.mxu0 0
        %1311 = vmatpush1.bf16.msra.mxu0 %v1303
        %1312 = vmatprep.subr.bf16.mxu0 0
        %1313 = vmatpush1.bf16.msra.mxu0 %v1304
        %1314 = vmatprep.subr.bf16.mxu0 0
        %1315 = vmatpush1.bf16.msra.mxu0 0
        %1316 = vmatprep.subr.bf16.mxu0 0
        %1317 = vmatpush1.bf16.msra.mxu0 0
        %1318 = vmatprep.subr.bf16.mxu0 0
        %1319 = vmatpush1.bf16.msra.mxu0 0
        %1320 = vmatprep.subr.bf16.mxu0 0
        %1321 = vmatpush1.bf16.msra.mxu0 0
        %1322 = vmatprep.subr.bf16.mxu0 0
        %1323 = vmatpush1.bf16.msra.mxu0 0
        %1324 = vmatprep.subr.bf16.mxu0 0
        %1325 = vmatpush1.bf16.msra.mxu0 0
        %1326 = vmatprep.subr.bf16.mxu0 0
        %1327 = vmatpush1.bf16.msra.mxu0 0
        %1328 = vmatprep.subr.bf16.mxu0 0
        %1329 = vmatpush1.bf16.msra.mxu0 0
        %1330 = vmatprep.subr.bf16.mxu0 0
        %1331 = vmatpush1.bf16.msra.mxu0 0
        %1332 = vmatprep.subr.bf16.mxu0 0
        %1333 = vmatpush1.bf16.msra.mxu0 0
        %1334 = vmatprep.subr.bf16.mxu0 0
        %1335 = vmatpush1.bf16.msra.mxu0 0
        %1336 = vmatprep.subr.bf16.mxu0 0
        %1337 = vmatpush1.bf16.msra.mxu0 0
        %1338 = vmatprep.subr.bf16.mxu0 0
        %1339 = vmatpush1.bf16.msra.mxu0 0
        %1340 = vmatprep.subr.bf16.mxu0 0
        %1341 = vmatpush1.bf16.msra.mxu0 0
        %1342 = vmatprep.mubr.bf16.mxu0 0
        %1343 = vmatmul.mubr.bf16.gmra.mrb[0].mxu0 %v1308
        %v1344 = vpop.f32.mrb[0].mxu0
        %v1345 = vadd.f32 %v1293, %v1344
        %v1346 = vpop.f32.mrb[0].mxu0
        %v1347 = vpop.f32.mrb[0].mxu0
        %v1348 = vpop.f32.mrb[0].mxu0
        %1349 = vdwg.mxu0
        %v1350 = vmul.f32 %v1345, 0.5
        %v1351 = vmul.f32 %v1345, 0.044715
        %v1352 = vmul.f32 %v1351, %v1345
        %v1353 = vmul.f32 %v1352, %v1345
        %v1354 = vadd.f32 %v1345, %v1353
        %v1355 = vmul.f32 %v1354, 0.7978846
        %v1356 = vtanh.pop %v1355
        %v1357 = vadd.f32 %v1356, 1.0
        %v1358 = vmul.f32 %v1350, %v1357
        %v1359 = vpack.c.bf16 %v1358, %v1358
        %v1360 = vld [vmem:[#allocation20] sm:$0xf]
        %v1361 = vld [vmem:[#allocation20 + $0x4] sm:$0xf]
        %v1362 = vld [vmem:[#allocation20 + $0x8] sm:$0xf]
        %v1363 = vld [vmem:[#allocation20 + $0xc] sm:$0xf]
        %v1364 = vld [vmem:[#allocation20 + $0x10] sm:$0xf]
        %v1365 = vld [vmem:[#allocation20 + $0x14] sm:$0xf]
        %v1366 = vld [vmem:[#allocation20 + $0x18] sm:$0xf]
        %v1367 = vld [vmem:[#allocation20 + $0x1c] sm:$0xf]
        %v1368 = vld [vmem:[#allocation20 + $0x20] sm:$0xf]
        %v1369 = vld [vmem:[#allocation20 + $0x24] sm:$0xf]
        %v1370 = vld [vmem:[#allocation20 + $0x28] sm:$0xf]
        %v1371 = vld [vmem:[#allocation20 + $0x2c] sm:$0xf]
        %v1372 = vld [vmem:[#allocation20 + $0x30] sm:$0xf]
        %v1373 = vld [vmem:[#allocation20 + $0x34] sm:$0xf]
        %v1374 = vld [vmem:[#allocation20 + $0x38] sm:$0xf]
        %v1375 = vld [vmem:[#allocation20 + $0x3c] sm:$0xf]
        %v1376 = vld [vmem:[#allocation22] sm:$0x1]
        %v1378 = vlaneseq
        %v1379 = vshrl.u32 %v1378, 7
        %v1380 = vsub.s32 0, %v1379
        %v1381 = vrot.slane %v1376, %v1380
        %v1399 = vunpack.c.l.b16 %v1360
        %v1400 = vunpack.c.l.b16 %v1361
        %v1401 = vunpack.c.l.b16 %v1362
        %v1402 = vunpack.c.l.b16 %v1363
        %v1403 = vunpack.c.l.b16 %v1364
        %v1404 = vunpack.c.l.b16 %v1365
        %v1405 = vunpack.c.l.b16 %v1366
        %v1406 = vunpack.c.l.b16 %v1367
        %v1407 = vunpack.c.l.b16 %v1368
        %v1408 = vunpack.c.l.b16 %v1369
        %v1409 = vunpack.c.l.b16 %v1370
        %v1410 = vunpack.c.l.b16 %v1371
        %v1411 = vunpack.c.l.b16 %v1372
        %v1412 = vunpack.c.l.b16 %v1373
        %v1413 = vunpack.c.l.b16 %v1374
        %v1414 = vunpack.c.l.b16 %v1375
        %v1415 = vpack.c.b16 %v1400, %v1399
        %v1416 = vpack.c.b16 %v1402, %v1401
        %v1417 = vpack.c.b16 %v1404, %v1403
        %v1418 = vpack.c.b16 %v1406, %v1405
        %v1419 = vpack.c.b16 %v1408, %v1407
        %v1420 = vpack.c.b16 %v1410, %v1409
        %v1421 = vpack.c.b16 %v1412, %v1411
        %v1422 = vpack.c.b16 %v1414, %v1413
        %1431 = vmatprep.subr.bf16.mxu0 0
        %1432 = vmatpush1.bf16.msra.mxu0 %v1415
        %1433 = vmatprep.subr.bf16.mxu0 0
        %1434 = vmatpush1.bf16.msra.mxu0 %v1416
        %1435 = vmatprep.subr.bf16.mxu0 0
        %1436 = vmatpush1.bf16.msra.mxu0 %v1417
        %1437 = vmatprep.subr.bf16.mxu0 0
        %1438 = vmatpush1.bf16.msra.mxu0 %v1418
        %1439 = vmatprep.subr.bf16.mxu0 0
        %1440 = vmatpush1.bf16.msra.mxu0 %v1419
        %1441 = vmatprep.subr.bf16.mxu0 0
        %1442 = vmatpush1.bf16.msra.mxu0 %v1420
        %1443 = vmatprep.subr.bf16.mxu0 0
        %1444 = vmatpush1.bf16.msra.mxu0 %v1421
        %1445 = vmatprep.subr.bf16.mxu0 0
        %1446 = vmatpush1.bf16.msra.mxu0 %v1422
        %1447 = vmatprep.subr.bf16.mxu0 0
        %1448 = vmatpush1.bf16.msra.mxu0 0
        %1449 = vmatprep.subr.bf16.mxu0 0
        %1450 = vmatpush1.bf16.msra.mxu0 0
        %1451 = vmatprep.subr.bf16.mxu0 0
        %1452 = vmatpush1.bf16.msra.mxu0 0
        %1453 = vmatprep.subr.bf16.mxu0 0
        %1454 = vmatpush1.bf16.msra.mxu0 0
        %1455 = vmatprep.subr.bf16.mxu0 0
        %1456 = vmatpush1.bf16.msra.mxu0 0
        %1457 = vmatprep.subr.bf16.mxu0 0
        %1458 = vmatpush1.bf16.msra.mxu0 0
        %1459 = vmatprep.subr.bf16.mxu0 0
        %1460 = vmatpush1.bf16.msra.mxu0 0
        %1461 = vmatprep.subr.bf16.mxu0 0
        %1462 = vmatpush1.bf16.msra.mxu0 0
        %1463 = vmatprep.mubr.bf16.mxu0 0
        %1464 = vmatmul.mubr.bf16.gmra.mrb[0].mxu0 %v1359
        %v1465 = vpop.f32.mrb[0].mxu0
        %v1466 = vadd.f32 %v1381, %v1465
        %v1467 = vpop.f32.mrb[0].mxu0
        %v1468 = vpop.f32.mrb[0].mxu0
        %v1469 = vpop.f32.mrb[0].mxu0
        %1470 = vdwg.mxu0
        %v1471 = vadd.f32 %v1253, %v1466
        %1472 = vst.msk [vmem:[%s613] sm:$0xff] %vm618, %v1471
        %s1473 = sand.u32 %s322, 1
        %s1474 = scalar_lea.sflag [#allocation4], %s1473
        %s1475 = sand.u32 %s322, 1
        %s1476 = smul.addr %s1475, 8
        %s1477 = scalar_lea.vmem [#allocation23], %s1476
        // Predicated region
        $region125: #{tpu_custom_call.1} parent=71 // pred_check
          %p1478 = pneg %p332
        $region126: #{tpu_custom_call.1} parent=71 // pred_check_branch
          %1480 = sbr.rel (%p1478) target = $region128
        $region127: #{tpu_custom_call.1} parent=71 // pred_region
          %s1482 = ssub.s32 128, 128
          %1483 = vsyncadd %s1474, %s1482
          %s1484 = smul.addr %s36, 128
          %s1485 = scalar_lea.hbm %s13, %s1484
          %s1487 = sshll.u32 %s1477, 4
          %s1488 = int_to_ptr.vmem [resolvable:$true] %s1487
          %1490 = dma.vmem_to_hbm [thread:$0]  %s1488, 128, %s1485, %s1474
        $region128: #{tpu_custom_call.1} parent=71 // pred_fallthru
          _
      $region72: #{tpu_custom_call.1} parent=5 // pred_fallthru
        _
      %p1491 = scmp.le.s32.totalorder 2, %s31
      // Predicated region
      $region129: #{tpu_custom_call.1} parent=5 // pred_check
        %p1492 = pneg %p1491
      $region130: #{tpu_custom_call.1} parent=5 // pred_check_branch
        %1494 = sbr.rel (%p1492) target = $region132
      $region131: #{tpu_custom_call.1} parent=5 // pred_region
        %s1495 = ssub.s32 %s31, 2
        // Predicated region
        $region133: #{tpu_custom_call.1} parent=131 // pred_check
          %p1496 = pneg %p338
        $region134: #{tpu_custom_call.1} parent=131 // pred_check_branch
          %1498 = sbr.rel (%p1496) target = $region136
        $region135: #{tpu_custom_call.1} parent=131 // pred_region
          %s1499 = sand.u32 %s323, 1
          %s1500 = scalar_lea.sflag [#allocation4], %s1499
          %s1501 = sand.u32 %s323, 1
          %s1502 = smul.addr %s1501, 8
          %s1503 = scalar_lea.vmem [#allocation23], %s1502
          %1504 = dma.done %s1500, 128
        $region136: #{tpu_custom_call.1} parent=131 // pred_fallthru
          _
      $region132: #{tpu_custom_call.1} parent=5 // pred_fallthru
        _
    $region6: #{tpu_custom_call.1} parent=1 // loop_footer
      %s35 = sadd.s32 1, %s31
    $region7: #{tpu_custom_call.1} parent=1 // loop_footer_branch
      %30 = sbr.rel target = $region3
    $region8: #{tpu_custom_call.1} parent=1 // loop_exit
      _
    %1505 = vsyncpa [#allocation3], 1
    %s1506 = scalar_lea.sflag [#allocation3], 1
    %1507 = vsyncpa %s1506, 1
    %1508 = vsyncpa [#allocation6], 1
    %1509 = vsyncpa [#allocation9], 1
    %1510 = vsyncpa [#allocation12], 1
    %1511 = vsyncpa [#allocation15], 1
    %1512 = vsyncpa [#allocation18], 1
    %1513 = vsyncpa [#allocation21], 1
    %1514 = vsyncpa [#allocation4], 1
    %s1515 = scalar_lea.sflag [#allocation4], 1
    %1516 = vsyncpa %s1515, 1

// kernel: tpu_custom_call.1
$region0: #{tpu_custom_call.1}
  #allocation0 [shape = 'u32[]', space=smem, size = 0x4, offset = 0x4, fixed_abs, tag = 'smem constant byte address 0x4 - core index']
  #allocation1 [shape = 'u32[144,128]{1,0:T(1,128)}', space=vmem, size = 0x12000, scoped, tag = 'internal scratch']
  %s0 = inlined_call_operand.hbm [shape: f32[2,8,32], index: 0, kind: input, shape index: {}]
  %s1 = inlined_call_operand.hbm [shape: f32[1,32], index: 1, kind: input, shape index: {}]
  %s2 = inlined_call_operand.hbm [shape: f32[1,32], index: 2, kind: input, shape index: {}]
  %s3 = inlined_call_operand.hbm [shape: bf16[32,96], index: 3, kind: input, shape index: {}]
  %s4 = inlined_call_operand.hbm [shape: f32[1,96], index: 4, kind: input, shape index: {}]
  %s5 = inlined_call_operand.hbm [shape: bf16[32,32], index: 5, kind: input, shape index: {}]
  %s6 = inlined_call_operand.hbm [shape: f32[1,32], index: 6, kind: input, shape index: {}]
  %s7 = inlined_call_operand.hbm [shape: f32[1,32], index: 7, kind: input, shape index: {}]
  %s8 = inlined_call_operand.hbm [shape: f32[1,32], index: 8, kind: input, shape index: {}]
  %s9 = inlined_call_operand.hbm [shape: bf16[32,128], index: 9, kind: input, shape index: {}]
  %s10 = inlined_call_operand.hbm [shape: f32[1,128], index: 10, kind: input, shape index: {}]
  %s11 = inlined_call_operand.hbm [shape: bf16[128,32], index: 11, kind: input, shape index: {}]
  %s12 = inlined_call_operand.hbm [shape: f32[1,32], index: 12, kind: input, shape index: {}]
  %s13 = inlined_call_operand.hbm [shape: f32[2,8,32], index: 13, kind: output, shape index: {}]
  %s14 = sld [smem:[#allocation0]]
  $region137: #{tpu_custom_call.1} parent=0
    _
  %s16 = ssub.s32 1, %s14
  %s17 = scalar_select 0, %s16, %s14
  $region1: #{tpu_custom_call.1} parent=0
    #allocation2 [shape = 'u8[8192]{0}', space=vmem, size = 0x2000, scoped, tag = 'input window, operand 0']
    #allocation3 [shape = 's32[2]{0}', space=sflag, size = 0x8, scoped, tag = 'scoped memory for tpu_custom_call.1']
    #allocation4 [shape = 's32[2]{0}', space=sflag, size = 0x8, scoped, tag = 'scoped memory for tpu_custom_call.1']
    #allocation5 [shape = 'u8[512]{0}', space=vmem, size = 0x400, scoped, tag = 'input window, operand 1, single buffered']
    #allocation6 [shape = 's32[1]{0}', space=sflag, size = 0x4, scoped, tag = 'scoped memory for tpu_custom_call.1']
    #allocation7 [shape = 'u8[512]{0}', space=vmem, size = 0x400, scoped, tag = 'input window, operand 2, single buffered']
    #allocation8 [shape = 'u8[8192]{0}', space=vmem, size = 0x2000, scoped, tag = 'input window, operand 3, single buffered']
    #allocation9 [shape = 's32[1]{0}', space=sflag, size = 0x4, scoped, tag = 'scoped memory for tpu_custom_call.1']
    #allocation10 [shape = 'u8[512]{0}', space=vmem, size = 0x400, scoped, tag = 'input window, operand 4, single buffered']
    #allocation11 [shape = 'u8[8192]{0}', space=vmem, size = 0x2000, scoped, tag = 'input window, operand 5, single buffered']
    #allocation12 [shape = 's32[1]{0}', space=sflag, size = 0x4, scoped, tag = 'scoped memory for tpu_custom_call.1']
    #allocation13 [shape = 'u8[512]{0}', space=vmem, size = 0x400, scoped, tag = 'input window, operand 6, single buffered']
    #allocation14 [shape = 'u8[512]{0}', space=vmem, size = 0x400, scoped, tag = 'input window, operand 7, single buffered']
    #allocation15 [shape = 's32[1]{0}', space=sflag, size = 0x4, scoped, tag = 'scoped memory for tpu_custom_call.1']
    #allocation16 [shape = 'u8[512]{0}', space=vmem, size = 0x400, scoped, tag = 'input window, operand 8, single buffered']
    #allocation17 [shape = 'u8[8192]{0}', space=vmem, size = 0x2000, scoped, tag = 'input window, operand 9, single buffered']
    #allocation18 [shape = 's32[1]{0}', space=sflag, size = 0x4, scoped, tag = 'scoped memory for tpu_custom_call.1']
    #allocation19 [shape = 'u8[512]{0}', space=vmem, size = 0x400, scoped, tag = 'input window, operand 10, single buffered']
    #allocation20 [shape = 'u8[32768]{0}', space=vmem, size = 0x8000, scoped, tag = 'input window, operand 11, single buffered']
    #allocation21 [shape = 's32[1]{0}', space=sflag, size = 0x4, scoped, tag = 'scoped memory for tpu_custom_call.1']
    #allocation22 [shape = 'u8[512]{0}', space=vmem, size = 0x400, scoped, tag = 'input window, operand 12, single buffered']
    #allocation23 [shape = 'u8[8192]{0}', space=vmem, size = 0x2000, scoped, tag = 'output window, operand 0']
    %18 = vsyncpa [#allocation3], 0
    %s19 = scalar_lea.sflag [#allocation3], 1
    %20 = vsyncpa %s19, 0
    %21 = vsyncpa [#allocation6], 0
    %22 = vsyncpa [#allocation9], 0
    %23 = vsyncpa [#allocation12], 0
    %24 = vsyncpa [#allocation15], 0
    %25 = vsyncpa [#allocation18], 0
    %26 = vsyncpa [#allocation21], 0
    %27 = vsyncpa [#allocation4], 0
    %s28 = scalar_lea.sflag [#allocation4], 1
    %29 = vsyncpa %s28, 0
    loop: start=0, step=1, limit=4
    $region2: #{tpu_custom_call.1} parent=1 // loop_pre_header
      _
    $region3: #{tpu_custom_call.1} parent=1 // loop_header
      %s31 = sphi 0, %s35
      %p32 = scmp.ge.s32.totalorder %s31, 4
      %s41 = sphi 0, %s43
      %s44 = sphi 0, %s41
      %s45 = sphi 0, %s44
      %s61 = sphi 0, %s45
      %s65 = sphi 0, %s65
      %s67 = sphi 0, %s65
      %s68 = sphi 0, %s67
      %s82 = sphi 0, %s68
      %s86 = sphi 0, %s86
      %s88 = sphi 0, %s86
      %s89 = sphi 0, %s88
      %s103 = sphi 0, %s89
      %s107 = sphi 0, %s107
      %s109 = sphi 0, %s107
      %s110 = sphi 0, %s109
      %s124 = sphi 0, %s110
      %s128 = sphi 0, %s128
      %s130 = sphi 0, %s128
      %s131 = sphi 0, %s130
      %s145 = sphi 0, %s131
      %s149 = sphi 0, %s149
      %s151 = sphi 0, %s149
      %s152 = sphi 0, %s151
      %s166 = sphi 0, %s152
      %s170 = sphi 0, %s170
      %s172 = sphi 0, %s170
      %s173 = sphi 0, %s172
      %s187 = sphi 0, %s173
      %s191 = sphi 0, %s191
      %s193 = sphi 0, %s191
      %s194 = sphi 0, %s193
      %s208 = sphi 0, %s194
      %s212 = sphi 0, %s212
      %s214 = sphi 0, %s212
      %s215 = sphi 0, %s214
      %s229 = sphi 0, %s215
      %s233 = sphi 0, %s233
      %s235 = sphi 0, %s233
      %s236 = sphi 0, %s235
      %s250 = sphi 0, %s236
      %s254 = sphi 0, %s254
      %s256 = sphi 0, %s254
      %s257 = sphi 0, %s256
      %s271 = sphi 0, %s257
      %s275 = sphi 0, %s275
      %s277 = sphi 0, %s275
      %s278 = sphi 0, %s277
      %s292 = sphi 0, %s278
      %s296 = sphi 0, %s296
      %s298 = sphi 0, %s296
      %s299 = sphi 0, %s298
      %s313 = sphi 0, %s299
      %s319 = sphi 0, %s321
      %s322 = sphi 0, %s319
      %s323 = sphi 0, %s322
      %s339 = sphi 0, %s323
    $region4: #{tpu_custom_call.1} parent=1 // loop_header_branch
      %34 = sbr.rel (%p32) target = $region8
    $region5: #{tpu_custom_call.1} parent=1 // loop_body
      %s36 = ssub.s32 %s31, 1
      %s37 = ssub.s32 %s31, 2
      %s38 = sadd.s32 %s31, 1
      %s39 = ssub.s32 %s31, %s38
      %p40 = scmp.eq.s32.totalorder %s39, 0
      %s42 = sadd.s32 %s41, 1
      %s43 = scalar_select %p40, %s41, %s42
      %p46 = pneg %p40
      %p47 = scmp.eq.s32.totalorder %s31, 1
      %p48 = por %p46, %p47
      %p49 = scmp.ne.s32.totalorder %s41, %s44
      %p50 = scmp.eq.s32.totalorder %s31, 0
      %p51 = por %p49, %p50
      %p52 = scmp.ne.s32.totalorder %s41, %s44
      %p53 = scmp.eq.s32.totalorder %s36, 1
      %p54 = por %p52, %p53
      %p55 = scmp.ne.s32.totalorder %s44, %s45
      %p56 = scmp.eq.s32.totalorder %s36, 0
      %p57 = por %p55, %p56
      %p58 = scmp.ne.s32.totalorder %s44, %s45
      %p59 = scmp.eq.s32.totalorder %s37, 1
      %p60 = por %p58, %p59
      %p62 = scmp.ne.s32.totalorder %s45, %s61
      %p63 = scmp.eq.s32.totalorder %s37, 0
      %p64 = por %p62, %p63
      %s66 = sadd.s32 %s65, 1
      %p69 = scmp.eq.s32.totalorder %s31, 1
      %p70 = scmp.ne.s32.totalorder %s65, %s67
      %p71 = scmp.eq.s32.totalorder %s31, 0
      %p72 = por %p70, %p71
      %p73 = scmp.ne.s32.totalorder %s65, %s67
      %p74 = scmp.eq.s32.totalorder %s36, 1
      %p75 = por %p73, %p74
      %p76 = scmp.ne.s32.totalorder %s67, %s68
      %p77 = scmp.eq.s32.totalorder %s36, 0
      %p78 = por %p76, %p77
      %p79 = scmp.ne.s32.totalorder %s67, %s68
      %p80 = scmp.eq.s32.totalorder %s37, 1
      %p81 = por %p79, %p80
      %p83 = scmp.ne.s32.totalorder %s68, %s82
      %p84 = scmp.eq.s32.totalorder %s37, 0
      %p85 = por %p83, %p84
      %s87 = sadd.s32 %s86, 1
      %p90 = scmp.eq.s32.totalorder %s31, 1
      %p91 = scmp.ne.s32.totalorder %s86, %s88
      %p92 = scmp.eq.s32.totalorder %s31, 0
      %p93 = por %p91, %p92
      %p94 = scmp.ne.s32.totalorder %s86, %s88
      %p95 = scmp.eq.s32.totalorder %s36, 1
      %p96 = por %p94, %p95
      %p97 = scmp.ne.s32.totalorder %s88, %s89
      %p98 = scmp.eq.s32.totalorder %s36, 0
      %p99 = por %p97, %p98
      %p100 = scmp.ne.s32.totalorder %s88, %s89
      %p101 = scmp.eq.s32.totalorder %s37, 1
      %p102 = por %p100, %p101
      %p104 = scmp.ne.s32.totalorder %s89, %s103
      %p105 = scmp.eq.s32.totalorder %s37, 0
      %p106 = por %p104, %p105
      %s108 = sadd.s32 %s107, 1
      %p111 = scmp.eq.s32.totalorder %s31, 1
      %p112 = scmp.ne.s32.totalorder %s107, %s109
      %p113 = scmp.eq.s32.totalorder %s31, 0
      %p114 = por %p112, %p113
      %p115 = scmp.ne.s32.totalorder %s107, %s109
      %p116 = scmp.eq.s32.totalorder %s36, 1
      %p117 = por %p115, %p116
      %p118 = scmp.ne.s32.totalorder %s109, %s110
      %p119 = scmp.eq.s32.totalorder %s36, 0
      %p120 = por %p118, %p119
      %p121 = scmp.ne.s32.totalorder %s109, %s110
      %p122 = scmp.eq.s32.totalorder %s37, 1
      %p123 = por %p121, %p122
      %p125 = scmp.ne.s32.totalorder %s110, %s124
      %p126 = scmp.eq.s32.totalorder %s37, 0
      %p127 = por %p125, %p126
      %s129 = sadd.s32 %s128, 1
      %p132 = scmp.eq.s32.totalorder %s31, 1
      %p133 = scmp.ne.s32.totalorder %s128, %s130
      %p134 = scmp.eq.s32.totalorder %s31, 0
      %p135 = por %p133, %p134
      %p136 = scmp.ne.s32.totalorder %s128, %s130
      %p137 = scmp.eq.s32.totalorder %s36, 1
      %p138 = por %p136, %p137
      %p139 = scmp.ne.s32.totalorder %s130, %s131
      %p140 = scmp.eq.s32.totalorder %s36, 0
      %p141 = por %p139, %p140
      %p142 = scmp.ne.s32.totalorder %s130, %s131
      %p143 = scmp.eq.s32.totalorder %s37, 1
      %p144 = por %p142, %p143
      %p146 = scmp.ne.s32.totalorder %s131, %s145
      %p147 = scmp.eq.s32.totalorder %s37, 0
      %p148 = por %p146, %p147
      %s150 = sadd.s32 %s149, 1
      %p153 = scmp.eq.s32.totalorder %s31, 1
      %p154 = scmp.ne.s32.totalorder %s149, %s151
      %p155 = scmp.eq.s32.totalorder %s31, 0
      %p156 = por %p154, %p155
      %p157 = scmp.ne.s32.totalorder %s149, %s151
      %p158 = scmp.eq.s32.totalorder %s36, 1
      %p159 = por %p157, %p158
      %p160 = scmp.ne.s32.totalorder %s151, %s152
      %p161 = scmp.eq.s32.totalorder %s36, 0
      %p162 = por %p160, %p161
      %p163 = scmp.ne.s32.totalorder %s151, %s152
      %p164 = scmp.eq.s32.totalorder %s37, 1
      %p165 = por %p163, %p164
      %p167 = scmp.ne.s32.totalorder %s152, %s166
      %p168 = scmp.eq.s32.totalorder %s37, 0
      %p169 = por %p167, %p168
      %s171 = sadd.s32 %s170, 1
      %p174 = scmp.eq.s32.totalorder %s31, 1
      %p175 = scmp.ne.s32.totalorder %s170, %s172
      %p176 = scmp.eq.s32.totalorder %s31, 0
      %p177 = por %p175, %p176
      %p178 = scmp.ne.s32.totalorder %s170, %s172
      %p179 = scmp.eq.s32.totalorder %s36, 1
      %p180 = por %p178, %p179
      %p181 = scmp.ne.s32.totalorder %s172, %s173
      %p182 = scmp.eq.s32.totalorder %s36, 0
      %p183 = por %p181, %p182
      %p184 = scmp.ne.s32.totalorder %s172, %s173
      %p185 = scmp.eq.s32.totalorder %s37, 1
      %p186 = por %p184, %p185
      %p188 = scmp.ne.s32.totalorder %s173, %s187
      %p189 = scmp.eq.s32.totalorder %s37, 0
      %p190 = por %p188, %p189
      %s192 = sadd.s32 %s191, 1
      %p195 = scmp.eq.s32.totalorder %s31, 1
      %p196 = scmp.ne.s32.totalorder %s191, %s193
      %p197 = scmp.eq.s32.totalorder %s31, 0
      %p198 = por %p196, %p197
      %p199 = scmp.ne.s32.totalorder %s191, %s193
      %p200 = scmp.eq.s32.totalorder %s36, 1
      %p201 = por %p199, %p200
      %p202 = scmp.ne.s32.totalorder %s193, %s194
      %p203 = scmp.eq.s32.totalorder %s36, 0
      %p204 = por %p202, %p203
      %p205 = scmp.ne.s32.totalorder %s193, %s194
      %p206 = scmp.eq.s32.totalorder %s37, 1
      %p207 = por %p205, %p206
      %p209 = scmp.ne.s32.totalorder %s194, %s208
      %p210 = scmp.eq.s32.totalorder %s37, 0
      %p211 = por %p209, %p210
      %s213 = sadd.s32 %s212, 1
      %p216 = scmp.eq.s32.totalorder %s31, 1
      %p217 = scmp.ne.s32.totalorder %s212, %s214
      %p218 = scmp.eq.s32.totalorder %s31, 0
      %p219 = por %p217, %p218
      %p220 = scmp.ne.s32.totalorder %s212, %s214
      %p221 = scmp.eq.s32.totalorder %s36, 1
      %p222 = por %p220, %p221
      %p223 = scmp.ne.s32.totalorder %s214, %s215
      %p224 = scmp.eq.s32.totalorder %s36, 0
      %p225 = por %p223, %p224
      %p226 = scmp.ne.s32.totalorder %s214, %s215
      %p227 = scmp.eq.s32.totalorder %s37, 1
      %p228 = por %p226, %p227
      %p230 = scmp.ne.s32.totalorder %s215, %s229
      %p231 = scmp.eq.s32.totalorder %s37, 0
      %p232 = por %p230, %p231
      %s234 = sadd.s32 %s233, 1
      %p237 = scmp.eq.s32.totalorder %s31, 1
      %p238 = scmp.ne.s32.totalorder %s233, %s235
      %p239 = scmp.eq.s32.totalorder %s31, 0
      %p240 = por %p238, %p239
      %p241 = scmp.ne.s32.totalorder %s233, %s235
      %p242 = scmp.eq.s32.totalorder %s36, 1
      %p243 = por %p241, %p242
      %p244 = scmp.ne.s32.totalorder %s235, %s236
      %p245 = scmp.eq.s32.totalorder %s36, 0
      %p246 = por %p244, %p245
      %p247 = scmp.ne.s32.totalorder %s235, %s236
      %p248 = scmp.eq.s32.totalorder %s37, 1
      %p249 = por %p247, %p248
      %p251 = scmp.ne.s32.totalorder %s236, %s250
      %p252 = scmp.eq.s32.totalorder %s37, 0
      %p253 = por %p251, %p252
      %s255 = sadd.s32 %s254, 1
      %p258 = scmp.eq.s32.totalorder %s31, 1
      %p259 = scmp.ne.s32.totalorder %s254, %s256
      %p260 = scmp.eq.s32.totalorder %s31, 0
      %p261 = por %p259, %p260
      %p262 = scmp.ne.s32.totalorder %s254, %s256
      %p263 = scmp.eq.s32.totalorder %s36, 1
      %p264 = por %p262, %p263
      %p265 = scmp.ne.s32.totalorder %s256, %s257
      %p266 = scmp.eq.s32.totalorder %s36, 0
      %p267 = por %p265, %p266
      %p268 = scmp.ne.s32.totalorder %s256, %s257
      %p269 = scmp.eq.s32.totalorder %s37, 1
      %p270 = por %p268, %p269
      %p272 = scmp.ne.s32.totalorder %s257, %s271
      %p273 = scmp.eq.s32.totalorder %s37, 0
      %p274 = por %p272, %p273
      %s276 = sadd.s32 %s275, 1
      %p279 = scmp.eq.s32.totalorder %s31, 1
      %p280 = scmp.ne.s32.totalorder %s275, %s277
      %p281 = scmp.eq.s32.totalorder %s31, 0
      %p282 = por %p280, %p281
      %p283 = scmp.ne.s32.totalorder %s275, %s277
      %p284 = scmp.eq.s32.totalorder %s36, 1
      %p285 = por %p283, %p284
      %p286 = scmp.ne.s32.totalorder %s277, %s278
      %p287 = scmp.eq.s32.totalorder %s36, 0
      %p288 = por %p286, %p287
      %p289 = scmp.ne.s32.totalorder %s277, %s278
      %p290 = scmp.eq.s32.totalorder %s37, 1
      %p291 = por %p289, %p290
      %p293 = scmp.ne.s32.totalorder %s278, %s292
      %p294 = scmp.eq.s32.totalorder %s37, 0
      %p295 = por %p293, %p294
      %s297 = sadd.s32 %s296, 1
      %p300 = scmp.eq.s32.totalorder %s31, 1
      %p301 = scmp.ne.s32.totalorder %s296, %s298
      %p302 = scmp.eq.s32.totalorder %s31, 0
      %p303 = por %p301, %p302
      %p304 = scmp.ne.s32.totalorder %s296, %s298
      %p305 = scmp.eq.s32.totalorder %s36, 1
      %p306 = por %p304, %p305
      %p307 = scmp.ne.s32.totalorder %s298, %s299
      %p308 = scmp.eq.s32.totalorder %s36, 0
      %p309 = por %p307, %p308
      %p310 = scmp.ne.s32.totalorder %s298, %s299
      %p311 = scmp.eq.s32.totalorder %s37, 1
      %p312 = por %p310, %p311
      %p314 = scmp.ne.s32.totalorder %s299, %s313
      %p315 = scmp.eq.s32.totalorder %s37, 0
      %p316 = por %p314, %p315
      %s317 = ssub.s32 %s31, %s38
      %p318 = scmp.eq.s32.totalorder %s317, 0
      %s320 = sadd.s32 %s319, 1
      %s321 = scalar_select %p318, %s319, %s320
      %p324 = pneg %p318
      %p325 = scmp.eq.s32.totalorder %s31, 1
      %p326 = por %p324, %p325
      %p327 = scmp.ne.s32.totalorder %s319, %s322
      %p328 = scmp.eq.s32.totalorder %s31, 0
      %p329 = por %p327, %p328
      %p330 = scmp.ne.s32.totalorder %s319, %s322
      %p331 = scmp.eq.s32.totalorder %s36, 1
      %p332 = por %p330, %p331
      %p333 = scmp.ne.s32.totalorder %s322, %s323
      %p334 = scmp.eq.s32.totalorder %s36, 0
      %p335 = por %p333, %p334
      %p336 = scmp.ne.s32.totalorder %s322, %s323
      %p337 = scmp.eq.s32.totalorder %s37, 1
      %p338 = por %p336, %p337
      %p340 = scmp.ne.s32.totalorder %s323, %s339
      %p341 = scmp.eq.s32.totalorder %s37, 0
      %p342 = por %p340, %p341
      %p343 = scmp.le.s32.totalorder 1, %s31
      %p344 = scmp.lt.s32.totalorder %s31, 3
      %p345 = pnand %p343, %p344
      %p346 = pneg %p345
      // Predicated region
      $region9: #{tpu_custom_call.1} parent=5 // pred_check
        _
      $region10: #{tpu_custom_call.1} parent=5 // pred_check_branch
        %348 = sbr.rel (%p345) target = $region12
      $region11: #{tpu_custom_call.1} parent=5 // pred_region
        %s349 = ssub.s32 %s31, 1
        // Predicated region
        $region13: #{tpu_custom_call.1} parent=11 // pred_check
          %p350 = pneg %p78
        $region14: #{tpu_custom_call.1} parent=11 // pred_check_branch
          %352 = sbr.rel (%p350) target = $region16
        $region15: #{tpu_custom_call.1} parent=11 // pred_region
          %s354 = ssub.s32 16, 16
          %355 = vsyncadd [#allocation6], %s354
          %s357 = sshll.u32 [#allocation5], 4
          %s358 = int_to_ptr.vmem [resolvable:$true] %s357
          %360 = dma.hbm_to_vmem [thread:$0]  %s1, 16, %s358, [#allocation6]
        $region16: #{tpu_custom_call.1} parent=11 // pred_fallthru
          _
        // Predicated region
        $region17: #{tpu_custom_call.1} parent=11 // pred_check
          %p361 = pneg %p99
        $region18: #{tpu_custom_call.1} parent=11 // pred_check_branch
          %363 = sbr.rel (%p361) target = $region20
        $region19: #{tpu_custom_call.1} parent=11 // pred_region
          %s365 = ssub.s32 16, 16
          %366 = vsyncadd [#allocation6], %s365
          %s368 = sshll.u32 [#allocation7], 4
          %s369 = int_to_ptr.vmem [resolvable:$true] %s368
          %371 = dma.hbm_to_vmem [thread:$0]  %s2, 16, %s369, [#allocation6]
        $region20: #{tpu_custom_call.1} parent=11 // pred_fallthru
          _
        // Predicated region
        $region21: #{tpu_custom_call.1} parent=11 // pred_check
          %p372 = pneg %p120
        $region22: #{tpu_custom_call.1} parent=11 // pred_check_branch
          %374 = sbr.rel (%p372) target = $region24
        $region23: #{tpu_custom_call.1} parent=11 // pred_region
          %s376 = ssub.s32 256, 256
          %377 = vsyncadd [#allocation9], %s376
          %s378 = sshll.u32 [#allocation8], 4
          %s379 = int_to_ptr.vmem [resolvable:$true] %s378
          %384 = dma.hbm_to_vmem [thread:$0]  %s3, 256, %s379, [#allocation9], 64, 64, 4
        $region24: #{tpu_custom_call.1} parent=11 // pred_fallthru
          _
        // Predicated region
        $region25: #{tpu_custom_call.1} parent=11 // pred_check
          %p385 = pneg %p141
        $region26: #{tpu_custom_call.1} parent=11 // pred_check_branch
          %387 = sbr.rel (%p385) target = $region28
        $region27: #{tpu_custom_call.1} parent=11 // pred_region
          %s389 = ssub.s32 16, 16
          %390 = vsyncadd [#allocation9], %s389
          %s392 = sshll.u32 [#allocation10], 4
          %s393 = int_to_ptr.vmem [resolvable:$true] %s392
          %395 = dma.hbm_to_vmem [thread:$0]  %s4, 16, %s393, [#allocation9]
        $region28: #{tpu_custom_call.1} parent=11 // pred_fallthru
          _
        // Predicated region
        $region29: #{tpu_custom_call.1} parent=11 // pred_check
          %p396 = pneg %p162
        $region30: #{tpu_custom_call.1} parent=11 // pred_check_branch
          %398 = sbr.rel (%p396) target = $region32
        $region31: #{tpu_custom_call.1} parent=11 // pred_region
          %s400 = ssub.s32 256, 256
          %401 = vsyncadd [#allocation12], %s400
          %s402 = sshll.u32 [#allocation11], 4
          %s403 = int_to_ptr.vmem [resolvable:$true] %s402
          %408 = dma.hbm_to_vmem [thread:$0]  %s5, 256, %s403, [#allocation12], 64, 64, 4
        $region32: #{tpu_custom_call.1} parent=11 // pred_fallthru
          _
        // Predicated region
        $region33: #{tpu_custom_call.1} parent=11 // pred_check
          %p409 = pneg %p183
        $region34: #{tpu_custom_call.1} parent=11 // pred_check_branch
          %411 = sbr.rel (%p409) target = $region36
        $region35: #{tpu_custom_call.1} parent=11 // pred_region
          %s413 = ssub.s32 16, 16
          %414 = vsyncadd [#allocation12], %s413
          %s416 = sshll.u32 [#allocation13], 4
          %s417 = int_to_ptr.vmem [resolvable:$true] %s416
          %419 = dma.hbm_to_vmem [thread:$0]  %s6, 16, %s417, [#allocation12]
        $region36: #{tpu_custom_call.1} parent=11 // pred_fallthru
          _
        // Predicated region
        $region37: #{tpu_custom_call.1} parent=11 // pred_check
          %p420 = pneg %p204
        $region38: #{tpu_custom_call.1} parent=11 // pred_check_branch
          %422 = sbr.rel (%p420) target = $region40
        $region39: #{tpu_custom_call.1} parent=11 // pred_region
          %s424 = ssub.s32 16, 16
          %425 = vsyncadd [#allocation15], %s424
          %s427 = sshll.u32 [#allocation14], 4
          %s428 = int_to_ptr.vmem [resolvable:$true] %s427
          %430 = dma.hbm_to_vmem [thread:$0]  %s7, 16, %s428, [#allocation15]
        $region40: #{tpu_custom_call.1} parent=11 // pred_fallthru
          _
        // Predicated region
        $region41: #{tpu_custom_call.1} parent=11 // pred_check
          %p431 = pneg %p225
        $region42: #{tpu_custom_call.1} parent=11 // pred_check_branch
          %433 = sbr.rel (%p431) target = $region44
        $region43: #{tpu_custom_call.1} parent=11 // pred_region
          %s435 = ssub.s32 16, 16
          %436 = vsyncadd [#allocation15], %s435
          %s438 = sshll.u32 [#allocation16], 4
          %s439 = int_to_ptr.vmem [resolvable:$true] %s438
          %441 = dma.hbm_to_vmem [thread:$0]  %s8, 16, %s439, [#allocation15]
        $region44: #{tpu_custom_call.1} parent=11 // pred_fallthru
          _
        // Predicated region
        $region45: #{tpu_custom_call.1} parent=11 // pred_check
          %p442 = pneg %p246
        $region46: #{tpu_custom_call.1} parent=11 // pred_check_branch
          %444 = sbr.rel (%p442) target = $region48
        $region47: #{tpu_custom_call.1} parent=11 // pred_region
          %s446 = ssub.s32 256, 256
          %447 = vsyncadd [#allocation18], %s446
          %s448 = sshll.u32 [#allocation17], 4
          %s449 = int_to_ptr.vmem [resolvable:$true] %s448
          %454 = dma.hbm_to_vmem [thread:$0]  %s9, 256, %s449, [#allocation18], 64, 64, 4
        $region48: #{tpu_custom_call.1} parent=11 // pred_fallthru
          _
        // Predicated region
        $region49: #{tpu_custom_call.1} parent=11 // pred_check
          %p455 = pneg %p267
        $region50: #{tpu_custom_call.1} parent=11 // pred_check_branch
          %457 = sbr.rel (%p455) target = $region52
        $region51: #{tpu_custom_call.1} parent=11 // pred_region
          %s459 = ssub.s32 16, 16
          %460 = vsyncadd [#allocation18], %s459
          %s462 = sshll.u32 [#allocation19], 4
          %s463 = int_to_ptr.vmem [resolvable:$true] %s462
          %465 = dma.hbm_to_vmem [thread:$0]  %s10, 16, %s463, [#allocation18]
        $region52: #{tpu_custom_call.1} parent=11 // pred_fallthru
          _
        // Predicated region
        $region53: #{tpu_custom_call.1} parent=11 // pred_check
          %p466 = pneg %p288
        $region54: #{tpu_custom_call.1} parent=11 // pred_check_branch
          %468 = sbr.rel (%p466) target = $region56
        $region55: #{tpu_custom_call.1} parent=11 // pred_region
          %s470 = ssub.s32 1024, 1024
          %471 = vsyncadd [#allocation21], %s470
          %s472 = sshll.u32 [#allocation20], 4
          %s473 = int_to_ptr.vmem [resolvable:$true] %s472
          %478 = dma.hbm_to_vmem [thread:$0]  %s11, 1024, %s473, [#allocation21], 64, 64, 4
        $region56: #{tpu_custom_call.1} parent=11 // pred_fallthru
          _
        // Predicated region
        $region57: #{tpu_custom_call.1} parent=11 // pred_check
          %p479 = pneg %p309
        $region58: #{tpu_custom_call.1} parent=11 // pred_check_branch
          %481 = sbr.rel (%p479) target = $region60
        $region59: #{tpu_custom_call.1} parent=11 // pred_region
          %s483 = ssub.s32 16, 16
          %484 = vsyncadd [#allocation21], %s483
          %s486 = sshll.u32 [#allocation22], 4
          %s487 = int_to_ptr.vmem [resolvable:$true] %s486
          %489 = dma.hbm_to_vmem [thread:$0]  %s12, 16, %s487, [#allocation21]
        $region60: #{tpu_custom_call.1} parent=11 // pred_fallthru
          _
      $region12: #{tpu_custom_call.1} parent=5 // pred_fallthru
        _
      %p490 = scmp.lt.s32.totalorder %s31, 2
      // Predicated region
      $region61: #{tpu_custom_call.1} parent=5 // pred_check
        %p491 = pneg %p490
      $region62: #{tpu_custom_call.1} parent=5 // pred_check_branch
        %493 = sbr.rel (%p491) target = $region64
      $region63: #{tpu_custom_call.1} parent=5 // pred_region
        // Predicated region
        $region65: #{tpu_custom_call.1} parent=63 // pred_check
          %p494 = pneg %p51
        $region66: #{tpu_custom_call.1} parent=63 // pred_check_branch
          %496 = sbr.rel (%p494) target = $region68
        $region67: #{tpu_custom_call.1} parent=63 // pred_region
          %s497 = sand.u32 %s41, 1
          %s498 = scalar_lea.sflag [#allocation3], %s497
          %s499 = sand.u32 %s41, 1
          %s500 = smul.addr %s499, 8
          %s501 = scalar_lea.vmem [#allocation2], %s500
          %s503 = ssub.s32 128, 128
          %504 = vsyncadd %s498, %s503
          %s505 = smul.addr %s31, 128
          %s506 = scalar_lea.hbm %s0, %s505
          %s508 = sshll.u32 %s501, 4
          %s509 = int_to_ptr.vmem [resolvable:$true] %s508
          %511 = dma.hbm_to_vmem [thread:$0]  %s506, 128, %s509, %s498
        $region68: #{tpu_custom_call.1} parent=63 // pred_fallthru
          _
      $region64: #{tpu_custom_call.1} parent=5 // pred_fallthru
        _
      %p512 = scmp.le.s32.totalorder 1, %s31
      %p513 = scmp.lt.s32.totalorder %s31, 3
      %p514 = pnand %p512, %p513
      %p515 = pneg %p514
      // Predicated region
      $region69: #{tpu_custom_call.1} parent=5 // pred_check
        _
      $region70: #{tpu_custom_call.1} parent=5 // pred_check_branch
        %517 = sbr.rel (%p514) target = $region72
      $region71: #{tpu_custom_call.1} parent=5 // pred_region
        %s518 = ssub.s32 %s31, 1
        %s519 = sand.u32 %s44, 1
        %s520 = scalar_lea.sflag [#allocation3], %s519
        %s521 = sand.u32 %s44, 1
        %s522 = smul.addr %s521, 8
        %s523 = scalar_lea.vmem [#allocation2], %s522
        // Predicated region
        $region73: #{tpu_custom_call.1} parent=71 // pred_check
          %p524 = pneg %p57
        $region74: #{tpu_custom_call.1} parent=71 // pred_check_branch
          %526 = sbr.rel (%p524) target = $region76
        $region75: #{tpu_custom_call.1} parent=71 // pred_region
          %527 = dma.done %s520, 128
        $region76: #{tpu_custom_call.1} parent=71 // pred_fallthru
          _
        // Predicated region
        $region77: #{tpu_custom_call.1} parent=71 // pred_check
          %p528 = pneg %p78
        $region78: #{tpu_custom_call.1} parent=71 // pred_check_branch
          %530 = sbr.rel (%p528) target = $region80
        $region79: #{tpu_custom_call.1} parent=71 // pred_region
          %531 = dma.done [#allocation6], 16
        $region80: #{tpu_custom_call.1} parent=71 // pred_fallthru
          _
        // Predicated region
        $region81: #{tpu_custom_call.1} parent=71 // pred_check
          %p532 = pneg %p99
        $region82: #{tpu_custom_call.1} parent=71 // pred_check_branch
          %534 = sbr.rel (%p532) target = $region84
        $region83: #{tpu_custom_call.1} parent=71 // pred_region
          %535 = dma.done [#allocation6], 16
        $region84: #{tpu_custom_call.1} parent=71 // pred_fallthru
          _
        // Predicated region
        $region85: #{tpu_custom_call.1} parent=71 // pred_check
          %p536 = pneg %p120
        $region86: #{tpu_custom_call.1} parent=71 // pred_check_branch
          %538 = sbr.rel (%p536) target = $region88
        $region87: #{tpu_custom_call.1} parent=71 // pred_region
          %539 = dma.done [#allocation9], 256
        $region88: #{tpu_custom_call.1} parent=71 // pred_fallthru
          _
        // Predicated region
        $region89: #{tpu_custom_call.1} parent=71 // pred_check
          %p540 = pneg %p141
        $region90: #{tpu_custom_call.1} parent=71 // pred_check_branch
          %542 = sbr.rel (%p540) target = $region92
        $region91: #{tpu_custom_call.1} parent=71 // pred_region
          %543 = dma.done [#allocation9], 16
        $region92: #{tpu_custom_call.1} parent=71 // pred_fallthru
          _
        // Predicated region
        $region93: #{tpu_custom_call.1} parent=71 // pred_check
          %p544 = pneg %p162
        $region94: #{tpu_custom_call.1} parent=71 // pred_check_branch
          %546 = sbr.rel (%p544) target = $region96
        $region95: #{tpu_custom_call.1} parent=71 // pred_region
          %547 = dma.done [#allocation12], 256
        $region96: #{tpu_custom_call.1} parent=71 // pred_fallthru
          _
        // Predicated region
        $region97: #{tpu_custom_call.1} parent=71 // pred_check
          %p548 = pneg %p183
        $region98: #{tpu_custom_call.1} parent=71 // pred_check_branch
          %550 = sbr.rel (%p548) target = $region100
        $region99: #{tpu_custom_call.1} parent=71 // pred_region
          %551 = dma.done [#allocation12], 16
        $region100: #{tpu_custom_call.1} parent=71 // pred_fallthru
          _
        // Predicated region
        $region101: #{tpu_custom_call.1} parent=71 // pred_check
          %p552 = pneg %p204
        $region102: #{tpu_custom_call.1} parent=71 // pred_check_branch
          %554 = sbr.rel (%p552) target = $region104
        $region103: #{tpu_custom_call.1} parent=71 // pred_region
          %555 = dma.done [#allocation15], 16
        $region104: #{tpu_custom_call.1} parent=71 // pred_fallthru
          _
        // Predicated region
        $region105: #{tpu_custom_call.1} parent=71 // pred_check
          %p556 = pneg %p225
        $region106: #{tpu_custom_call.1} parent=71 // pred_check_branch
          %558 = sbr.rel (%p556) target = $region108
        $region107: #{tpu_custom_call.1} parent=71 // pred_region
          %559 = dma.done [#allocation15], 16
        $region108: #{tpu_custom_call.1} parent=71 // pred_fallthru
          _
        // Predicated region
        $region109: #{tpu_custom_call.1} parent=71 // pred_check
          %p560 = pneg %p246
        $region110: #{tpu_custom_call.1} parent=71 // pred_check_branch
          %562 = sbr.rel (%p560) target = $region112
        $region111: #{tpu_custom_call.1} parent=71 // pred_region
          %563 = dma.done [#allocation18], 256
        $region112: #{tpu_custom_call.1} parent=71 // pred_fallthru
          _
        // Predicated region
        $region113: #{tpu_custom_call.1} parent=71 // pred_check
          %p564 = pneg %p267
        $region114: #{tpu_custom_call.1} parent=71 // pred_check_branch
          %566 = sbr.rel (%p564) target = $region116
        $region115: #{tpu_custom_call.1} parent=71 // pred_region
          %567 = dma.done [#allocation18], 16
        $region116: #{tpu_custom_call.1} parent=71 // pred_fallthru
          _
        // Predicated region
        $region117: #{tpu_custom_call.1} parent=71 // pred_check
          %p568 = pneg %p288
        $region118: #{tpu_custom_call.1} parent=71 // pred_check_branch
          %570 = sbr.rel (%p568) target = $region120
        $region119: #{tpu_custom_call.1} parent=71 // pred_region
          %571 = dma.done [#allocation21], 1024
        $region120: #{tpu_custom_call.1} parent=71 // pred_fallthru
          _
        // Predicated region
        $region121: #{tpu_custom_call.1} parent=71 // pred_check
          %p572 = pneg %p309
        $region122: #{tpu_custom_call.1} parent=71 // pred_check_branch
          %574 = sbr.rel (%p572) target = $region124
        $region123: #{tpu_custom_call.1} parent=71 // pred_region
          %575 = dma.done [#allocation21], 16
        $region124: #{tpu_custom_call.1} parent=71 // pred_fallthru
          _
        %s576 = sand.u32 %s44, 1
        %s577 = scalar_lea.sflag [#allocation3], %s576
        %s578 = sand.u32 %s44, 1
        %s579 = smul.addr %s578, 8
        %s580 = scalar_lea.vmem [#allocation2], %s579
        %p581 = pneg %p57
        %p582 = pneg %p54
        %p583 = pneg %p78
        %p584 = pneg %p75
        %p585 = pneg %p99
        %p586 = pneg %p96
        %p587 = pneg %p120
        %p588 = pneg %p117
        %p589 = pneg %p141
        %p590 = pneg %p138
        %p591 = pneg %p162
        %p592 = pneg %p159
        %p593 = pneg %p183
        %p594 = pneg %p180
        %p595 = pneg %p204
        %p596 = pneg %p201
        %p597 = pneg %p225
        %p598 = pneg %p222
        %p599 = pneg %p246
        %p600 = pneg %p243
        %p601 = pneg %p267
        %p602 = pneg %p264
        %p603 = pneg %p288
        %p604 = pneg %p285
        %p605 = pneg %p309
        %p606 = pneg %p306
        %p607 = pneg %p335
        %p608 = pneg %p332
        %s609 = sand.u32 %s322, 1
        %s610 = scalar_lea.sflag [#allocation4], %s609
        %s611 = sand.u32 %s322, 1
        %s612 = smul.addr %s611, 8
        %s613 = scalar_lea.vmem [#allocation23], %s612
        %v615 = vld [vmem:[%s523] sm:$0xff]
        %v616 = vld [vmem:[#allocation5] sm:$0x1]
        %v617 = vld [vmem:[#allocation7] sm:$0x1]
        %vm618 = vcmask 261120
        %v619 = vsel %vm618, %v615, 0.0
        %620 = vadd.xlane.f32.xlu0 %v619
        %v621 = vpop.xlane.xlu0 %620
        %v622 = vrcp.pop 32.0
        %v623 = vmul.f32 %v621, %v622
        %v624 = vsub.f32 %v615, %v623
        %v625 = vmul.f32 %v624, %v624
        %v626 = vsel %vm618, %v625, 0.0
        %627 = vadd.xlane.f32.xlu0 %v626
        %v628 = vpop.xlane.xlu0 %627
        %v629 = vmul.f32 %v628, %v622
        %v630 = vadd.f32 %v629, 1e-05
        %v631 = vrsqrt.pop %v630
        %v632 = vmul.f32 %v624, %v631
        %v634 = vlaneseq
        %v635 = vshrl.u32 %v634, 7
        %v636 = vsub.s32 0, %v635
        %v637 = vrot.slane %v616, %v636
        %v639 = vmul.f32 %v632, %v637
        %v641 = vlaneseq
        %v642 = vshrl.u32 %v641, 7
        %v643 = vsub.s32 0, %v642
        %v644 = vrot.slane %v617, %v643
        %v646 = vadd.f32 %v639, %v644
        %v647 = vpack.c.bf16 %v646, %v646
        %v648 = vld [vmem:[#allocation8] sm:$0xf]
        %v649 = vld [vmem:[#allocation8 + $0x4] sm:$0xf]
        %v650 = vld [vmem:[#allocation8 + $0x8] sm:$0xf]
        %v651 = vld [vmem:[#allocation8 + $0xc] sm:$0xf]
        %v652 = vld [vmem:[#allocation10] sm:$0x1]
        %v654 = vlaneseq
        %v655 = vshrl.u32 %v654, 7
        %v656 = vsub.s32 0, %v655
        %v657 = vrot.slane %v652, %v656
        %v663 = vunpack.c.l.b16 %v648
        %v664 = vunpack.c.l.b16 %v649
        %v665 = vunpack.c.l.b16 %v650
        %v666 = vunpack.c.l.b16 %v651
        %v667 = vpack.c.b16 %v664, %v663
        %v668 = vpack.c.b16 %v666, %v665
        %v672 = vsel %vm618, %v647, 0
        %674 = vmatprep.subr.bf16.mxu0 0
        %675 = vmatpush1.bf16.msra.mxu0 %v667
        %676 = vmatprep.subr.bf16.mxu0 0
        %677 = vmatpush1.bf16.msra.mxu0 %v668
        %678 = vmatprep.subr.bf16.mxu0 0
        %679 = vmatpush1.bf16.msra.mxu0 0
        %680 = vmatprep.subr.bf16.mxu0 0
        %681 = vmatpush1.bf16.msra.mxu0 0
        %682 = vmatprep.subr.bf16.mxu0 0
        %683 = vmatpush1.bf16.msra.mxu0 0
        %684 = vmatprep.subr.bf16.mxu0 0
        %685 = vmatpush1.bf16.msra.mxu0 0
        %686 = vmatprep.subr.bf16.mxu0 0
        %687 = vmatpush1.bf16.msra.mxu0 0
        %688 = vmatprep.subr.bf16.mxu0 0
        %689 = vmatpush1.bf16.msra.mxu0 0
        %690 = vmatprep.subr.bf16.mxu0 0
        %691 = vmatpush1.bf16.msra.mxu0 0
        %692 = vmatprep.subr.bf16.mxu0 0
        %693 = vmatpush1.bf16.msra.mxu0 0
        %694 = vmatprep.subr.bf16.mxu0 0
        %695 = vmatpush1.bf16.msra.mxu0 0
        %696 = vmatprep.subr.bf16.mxu0 0
        %697 = vmatpush1.bf16.msra.mxu0 0
        %698 = vmatprep.subr.bf16.mxu0 0
        %699 = vmatpush1.bf16.msra.mxu0 0
        %700 = vmatprep.subr.bf16.mxu0 0
        %701 = vmatpush1.bf16.msra.mxu0 0
        %702 = vmatprep.subr.bf16.mxu0 0
        %703 = vmatpush1.bf16.msra.mxu0 0
        %704 = vmatprep.subr.bf16.mxu0 0
        %705 = vmatpush1.bf16.msra.mxu0 0
        %706 = vmatprep.mubr.bf16.mxu0 0
        %707 = vmatmul.mubr.bf16.gmra.mrb[0].mxu0 %v672
        %v708 = vpop.f32.mrb[0].mxu0
        %v709 = vadd.f32 %v657, %v708
        %v710 = vpop.f32.mrb[0].mxu0
        %v711 = vpop.f32.mrb[0].mxu0
        %v712 = vpop.f32.mrb[0].mxu0
        %713 = vdwg.mxu0
        %v714 = vlaneseq
        %v715 = vshrl.u32 %v714, 7
        %v716 = vlaneseq
        %v717 = vand.u32 %v716, 127
        %vm718 = vcmp.le.s32.totalorder %v717, %v715
        %v719 = vmul.f32 %v709, 0.35355338
        %v720 = vpack.c.bf16 %v719, %v719
        %v721 = vpack.c.bf16 %v709, %v709
        %723 = vrot.lane.b32.xlu0 %v721, 96
        %v724 = vpop.permute.xlu0 %723
        %vm725 = vcmask 64512
        %v727 = vsel %vm725, %v720, 0
        %v730 = vsel %vm725, %v724, 0
        %732 = vmatprep.subr.bf16.mxu0 0
        %733 = vmatpush1.bf16.xpose.msra.mxu0 %v730
        %734 = vmatprep.subr.bf16.mxu0 0
        %735 = vmatpush1.bf16.xpose.msra.mxu0 0
        %736 = vmatprep.subr.bf16.mxu0 0
        %737 = vmatpush1.bf16.xpose.msra.mxu0 0
        %738 = vmatprep.subr.bf16.mxu0 0
        %739 = vmatpush1.bf16.xpose.msra.mxu0 0
        %740 = vmatprep.subr.bf16.mxu0 0
        %741 = vmatpush1.bf16.xpose.msra.mxu0 0
        %742 = vmatprep.subr.bf16.mxu0 0
        %743 = vmatpush1.bf16.xpose.msra.mxu0 0
        %744 = vmatprep.subr.bf16.mxu0 0
        %745 = vmatpush1.bf16.xpose.msra.mxu0 0
        %746 = vmatprep.subr.bf16.mxu0 0
        %747 = vmatpush1.bf16.xpose.msra.mxu0 0
        %748 = vmatprep.subr.bf16.mxu0 0
        %749 = vmatpush1.bf16.xpose.msra.mxu0 0
        %750 = vmatprep.subr.bf16.mxu0 0
        %751 = vmatpush1.bf16.xpose.msra.mxu0 0
        %752 = vmatprep.subr.bf16.mxu0 0
        %753 = vmatpush1.bf16.xpose.msra.mxu0 0
        %754 = vmatprep.subr.bf16.mxu0 0
        %755 = vmatpush1.bf16.xpose.msra.mxu0 0
        %756 = vmatprep.subr.bf16.mxu0 0
        %757 = vmatpush1.bf16.xpose.msra.mxu0 0
        %758 = vmatprep.subr.bf16.mxu0 0
        %759 = vmatpush1.bf16.xpose.msra.mxu0 0
        %760 = vmatprep.subr.bf16.mxu0 0
        %761 = vmatpush1.bf16.xpose.msra.mxu0 0
        %762 = vmatprep.subr.bf16.mxu0 0
        %763 = vmatpush1.bf16.xpose.msra.mxu0 0
        %764 = vmatprep.mubr.bf16.mxu0 0
        %765 = vmatmul.mubr.bf16.gmra.mrb[0].mxu0 %v727
        %v766 = vpop.f32.mrb[0].mxu0
        %v767 = vadd.f32 0.0, %v766
        %v768 = vpop.f32.mrb[0].mxu0
        %v769 = vpop.f32.mrb[0].mxu0
        %v770 = vpop.f32.mrb[0].mxu0
        %771 = vdwg.mxu0
        %v772 = vsel %vm718, %v767, -1e+30
        %v773 = vsel %vm725, %v772, -inf
        %774 = vmax.xlane.f32.xlu0 %v773
        %v775 = vpop.xlane.xlu0 %774
        %v776 = vsub.f32 %v772, %v775
        %v777 = vmul.f32 %v776, 1.442695
        %v778 = vpow.pop %v777
        %v779 = vsel %vm725, %v778, 0.0
        %780 = vadd.xlane.f32.xlu0 %v779
        %v781 = vpop.xlane.xlu0 %780
        %v782 = vrcp.pop %v781
        %v783 = vmul.f32 %v778, %v782
        %v784 = vpack.c.bf16 %v783, %v783
        %785 = vrot.lane.b32.xlu0 %v721, 64
        %v786 = vpop.permute.xlu0 %785
        %v788 = vsel %vm725, %v784, 0
        %vm790 = vcmask 1043456
        %v792 = vsel %vm790, %v786, 0
        %794 = vmatprep.subr.bf16.mxu0 0
        %795 = vmatpush1.bf16.msra.mxu0 %v792
        %796 = vmatprep.subr.bf16.mxu0 0
        %797 = vmatpush1.bf16.msra.mxu0 0
        %798 = vmatprep.subr.bf16.mxu0 0
        %799 = vmatpush1.bf16.msra.mxu0 0
        %800 = vmatprep.subr.bf16.mxu0 0
        %801 = vmatpush1.bf16.msra.mxu0 0
        %802 = vmatprep.subr.bf16.mxu0 0
        %803 = vmatpush1.bf16.msra.mxu0 0
        %804 = vmatprep.subr.bf16.mxu0 0
        %805 = vmatpush1.bf16.msra.mxu0 0
        %806 = vmatprep.subr.bf16.mxu0 0
        %807 = vmatpush1.bf16.msra.mxu0 0
        %808 = vmatprep.subr.bf16.mxu0 0
        %809 = vmatpush1.bf16.msra.mxu0 0
        %810 = vmatprep.subr.bf16.mxu0 0
        %811 = vmatpush1.bf16.msra.mxu0 0
        %812 = vmatprep.subr.bf16.mxu0 0
        %813 = vmatpush1.bf16.msra.mxu0 0
        %814 = vmatprep.subr.bf16.mxu0 0
        %815 = vmatpush1.bf16.msra.mxu0 0
        %816 = vmatprep.subr.bf16.mxu0 0
        %817 = vmatpush1.bf16.msra.mxu0 0
        %818 = vmatprep.subr.bf16.mxu0 0
        %819 = vmatpush1.bf16.msra.mxu0 0
        %820 = vmatprep.subr.bf16.mxu0 0
        %821 = vmatpush1.bf16.msra.mxu0 0
        %822 = vmatprep.subr.bf16.mxu0 0
        %823 = vmatpush1.bf16.msra.mxu0 0
        %824 = vmatprep.subr.bf16.mxu0 0
        %825 = vmatpush1.bf16.msra.mxu0 0
        %826 = vmatprep.mubr.bf16.mxu0 0
        %827 = vmatmul.mubr.bf16.gmra.mrb[0].mxu0 %v788
        %v828 = vpop.f32.mrb[0].mxu0
        %v829 = vadd.f32 0.0, %v828
        %v830 = vpop.f32.mrb[0].mxu0
        %v831 = vpop.f32.mrb[0].mxu0
        %v832 = vpop.f32.mrb[0].mxu0
        %833 = vdwg.mxu0
        %835 = vrot.lane.b32.xlu0 %v720, 120
        %v836 = vpop.permute.xlu0 %835
        %837 = vrot.lane.b32.xlu0 %v721, 88
        %v838 = vpop.permute.xlu0 %837
        %v840 = vsel %vm725, %v836, 0
        %v843 = vsel %vm725, %v838, 0
        %845 = vmatprep.subr.bf16.mxu0 0
        %846 = vmatpush1.bf16.xpose.msra.mxu0 %v843
        %847 = vmatprep.subr.bf16.mxu0 0
        %848 = vmatpush1.bf16.xpose.msra.mxu0 0
        %849 = vmatprep.subr.bf16.mxu0 0
        %850 = vmatpush1.bf16.xpose.msra.mxu0 0
        %851 = vmatprep.subr.bf16.mxu0 0
        %852 = vmatpush1.bf16.xpose.msra.mxu0 0
        %853 = vmatprep.subr.bf16.mxu0 0
        %854 = vmatpush1.bf16.xpose.msra.mxu0 0
        %855 = vmatprep.subr.bf16.mxu0 0
        %856 = vmatpush1.bf16.xpose.msra.mxu0 0
        %857 = vmatprep.subr.bf16.mxu0 0
        %858 = vmatpush1.bf16.xpose.msra.mxu0 0
        %859 = vmatprep.subr.bf16.mxu0 0
        %860 = vmatpush1.bf16.xpose.msra.mxu0 0
        %861 = vmatprep.subr.bf16.mxu0 0
        %862 = vmatpush1.bf16.xpose.msra.mxu0 0
        %863 = vmatprep.subr.bf16.mxu0 0
        %864 = vmatpush1.bf16.xpose.msra.mxu0 0
        %865 = vmatprep.subr.bf16.mxu0 0
        %866 = vmatpush1.bf16.xpose.msra.mxu0 0
        %867 = vmatprep.subr.bf16.mxu0 0
        %868 = vmatpush1.bf16.xpose.msra.mxu0 0
        %869 = vmatprep.subr.bf16.mxu0 0
        %870 = vmatpush1.bf16.xpose.msra.mxu0 0
        %871 = vmatprep.subr.bf16.mxu0 0
        %872 = vmatpush1.bf16.xpose.msra.mxu0 0
        %873 = vmatprep.subr.bf16.mxu0 0
        %874 = vmatpush1.bf16.xpose.msra.mxu0 0
        %875 = vmatprep.subr.bf16.mxu0 0
        %876 = vmatpush1.bf16.xpose.msra.mxu0 0
        %877 = vmatprep.mubr.bf16.mxu0 0
        %878 = vmatmul.mubr.bf16.gmra.mrb[0].mxu0 %v840
        %v879 = vpop.f32.mrb[0].mxu0
        %v880 = vadd.f32 0.0, %v879
        %v881 = vpop.f32.mrb[0].mxu0
        %v882 = vpop.f32.mrb[0].mxu0
        %v883 = vpop.f32.mrb[0].mxu0
        %884 = vdwg.mxu0
        %v885 = vsel %vm718, %v880, -1e+30
        %v886 = vsel %vm725, %v885, -inf
        %887 = vmax.xlane.f32.xlu0 %v886
        %v888 = vpop.xlane.xlu0 %887
        %v889 = vsub.f32 %v885, %v888
        %v890 = vmul.f32 %v889, 1.442695
        %v891 = vpow.pop %v890
        %v892 = vsel %vm725, %v891, 0.0
        %893 = vadd.xlane.f32.xlu0 %v892
        %v894 = vpop.xlane.xlu0 %893
        %v895 = vrcp.pop %v894
        %v896 = vmul.f32 %v891, %v895
        %v897 = vpack.c.bf16 %v896, %v896
        %898 = vrot.lane.b32.xlu0 %v721, 56
        %v899 = vpop.permute.xlu0 %898
        %v901 = vsel %vm725, %v897, 0
        %v904 = vsel %vm790, %v899, 0
        %906 = vmatprep.subr.bf16.mxu0 0
        %907 = vmatpush1.bf16.msra.mxu0 %v904
        %908 = vmatprep.subr.bf16.mxu0 0
        %909 = vmatpush1.bf16.msra.mxu0 0
        %910 = vmatprep.subr.bf16.mxu0 0
        %911 = vmatpush1.bf16.msra.mxu0 0
        %912 = vmatprep.subr.bf16.mxu0 0
        %913 = vmatpush1.bf16.msra.mxu0 0
        %914 = vmatprep.subr.bf16.mxu0 0
        %915 = vmatpush1.bf16.msra.mxu0 0
        %916 = vmatprep.subr.bf16.mxu0 0
        %917 = vmatpush1.bf16.msra.mxu0 0
        %918 = vmatprep.subr.bf16.mxu0 0
        %919 = vmatpush1.bf16.msra.mxu0 0
        %920 = vmatprep.subr.bf16.mxu0 0
        %921 = vmatpush1.bf16.msra.mxu0 0
        %922 = vmatprep.subr.bf16.mxu0 0
        %923 = vmatpush1.bf16.msra.mxu0 0
        %924 = vmatprep.subr.bf16.mxu0 0
        %925 = vmatpush1.bf16.msra.mxu0 0
        %926 = vmatprep.subr.bf16.mxu0 0
        %927 = vmatpush1.bf16.msra.mxu0 0
        %928 = vmatprep.subr.bf16.mxu0 0
        %929 = vmatpush1.bf16.msra.mxu0 0
        %930 = vmatprep.subr.bf16.mxu0 0
        %931 = vmatpush1.bf16.msra.mxu0 0
        %932 = vmatprep.subr.bf16.mxu0 0
        %933 = vmatpush1.bf16.msra.mxu0 0
        %934 = vmatprep.subr.bf16.mxu0 0
        %935 = vmatpush1.bf16.msra.mxu0 0
        %936 = vmatprep.subr.bf16.mxu0 0
        %937 = vmatpush1.bf16.msra.mxu0 0
        %938 = vmatprep.mubr.bf16.mxu0 0
        %939 = vmatmul.mubr.bf16.gmra.mrb[0].mxu0 %v901
        %v940 = vpop.f32.mrb[0].mxu0
        %v941 = vadd.f32 0.0, %v940
        %v942 = vpop.f32.mrb[0].mxu0
        %v943 = vpop.f32.mrb[0].mxu0
        %v944 = vpop.f32.mrb[0].mxu0
        %945 = vdwg.mxu0
        %946 = vrot.lane.b32.xlu0 %v720, 112
        %v947 = vpop.permute.xlu0 %946
        %948 = vrot.lane.b32.xlu0 %v721, 80
        %v949 = vpop.permute.xlu0 %948
        %v951 = vsel %vm725, %v947, 0
        %v954 = vsel %vm725, %v949, 0
        %956 = vmatprep.subr.bf16.mxu0 0
        %957 = vmatpush1.bf16.xpose.msra.mxu0 %v954
        %958 = vmatprep.subr.bf16.mxu0 0
        %959 = vmatpush1.bf16.xpose.msra.mxu0 0
        %960 = vmatprep.subr.bf16.mxu0 0
        %961 = vmatpush1.bf16.xpose.msra.mxu0 0
        %962 = vmatprep.subr.bf16.mxu0 0
        %963 = vmatpush1.bf16.xpose.msra.mxu0 0
        %964 = vmatprep.subr.bf16.mxu0 0
        %965 = vmatpush1.bf16.xpose.msra.mxu0 0
        %966 = vmatprep.subr.bf16.mxu0 0
        %967 = vmatpush1.bf16.xpose.msra.mxu0 0
        %968 = vmatprep.subr.bf16.mxu0 0
        %969 = vmatpush1.bf16.xpose.msra.mxu0 0
        %970 = vmatprep.subr.bf16.mxu0 0
        %971 = vmatpush1.bf16.xpose.msra.mxu0 0
        %972 = vmatprep.subr.bf16.mxu0 0
        %973 = vmatpush1.bf16.xpose.msra.mxu0 0
        %974 = vmatprep.subr.bf16.mxu0 0
        %975 = vmatpush1.bf16.xpose.msra.mxu0 0
        %976 = vmatprep.subr.bf16.mxu0 0
        %977 = vmatpush1.bf16.xpose.msra.mxu0 0
        %978 = vmatprep.subr.bf16.mxu0 0
        %979 = vmatpush1.bf16.xpose.msra.mxu0 0
        %980 = vmatprep.subr.bf16.mxu0 0
        %981 = vmatpush1.bf16.xpose.msra.mxu0 0
        %982 = vmatprep.subr.bf16.mxu0 0
        %983 = vmatpush1.bf16.xpose.msra.mxu0 0
        %984 = vmatprep.subr.bf16.mxu0 0
        %985 = vmatpush1.bf16.xpose.msra.mxu0 0
        %986 = vmatprep.subr.bf16.mxu0 0
        %987 = vmatpush1.bf16.xpose.msra.mxu0 0
        %988 = vmatprep.mubr.bf16.mxu0 0
        %989 = vmatmul.mubr.bf16.gmra.mrb[0].mxu0 %v951
        %v990 = vpop.f32.mrb[0].mxu0
        %v991 = vadd.f32 0.0, %v990
        %v992 = vpop.f32.mrb[0].mxu0
        %v993 = vpop.f32.mrb[0].mxu0
        %v994 = vpop.f32.mrb[0].mxu0
        %995 = vdwg.mxu0
        %v996 = vsel %vm718, %v991, -1e+30
        %v997 = vsel %vm725, %v996, -inf
        %998 = vmax.xlane.f32.xlu0 %v997
        %v999 = vpop.xlane.xlu0 %998
        %v1000 = vsub.f32 %v996, %v999
        %v1001 = vmul.f32 %v1000, 1.442695
        %v1002 = vpow.pop %v1001
        %v1003 = vsel %vm725, %v1002, 0.0
        %1004 = vadd.xlane.f32.xlu0 %v1003
        %v1005 = vpop.xlane.xlu0 %1004
        %v1006 = vrcp.pop %v1005
        %v1007 = vmul.f32 %v1002, %v1006
        %v1008 = vpack.c.bf16 %v1007, %v1007
        %1009 = vrot.lane.b32.xlu0 %v721, 48
        %v1010 = vpop.permute.xlu0 %1009
        %v1012 = vsel %vm725, %v1008, 0
        %v1015 = vsel %vm790, %v1010, 0
        %1017 = vmatprep.subr.bf16.mxu0 0
        %1018 = vmatpush1.bf16.msra.mxu0 %v1015
        %1019 = vmatprep.subr.bf16.mxu0 0
        %1020 = vmatpush1.bf16.msra.mxu0 0
        %1021 = vmatprep.subr.bf16.mxu0 0
        %1022 = vmatpush1.bf16.msra.mxu0 0
        %1023 = vmatprep.subr.bf16.mxu0 0
        %1024 = vmatpush1.bf16.msra.mxu0 0
        %1025 = vmatprep.subr.bf16.mxu0 0
        %1026 = vmatpush1.bf16.msra.mxu0 0
        %1027 = vmatprep.subr.bf16.mxu0 0
        %1028 = vmatpush1.bf16.msra.mxu0 0
        %1029 = vmatprep.subr.bf16.mxu0 0
        %1030 = vmatpush1.bf16.msra.mxu0 0
        %1031 = vmatprep.subr.bf16.mxu0 0
        %1032 = vmatpush1.bf16.msra.mxu0 0
        %1033 = vmatprep.subr.bf16.mxu0 0
        %1034 = vmatpush1.bf16.msra.mxu0 0
        %1035 = vmatprep.subr.bf16.mxu0 0
        %1036 = vmatpush1.bf16.msra.mxu0 0
        %1037 = vmatprep.subr.bf16.mxu0 0
        %1038 = vmatpush1.bf16.msra.mxu0 0
        %1039 = vmatprep.subr.bf16.mxu0 0
        %1040 = vmatpush1.bf16.msra.mxu0 0
        %1041 = vmatprep.subr.bf16.mxu0 0
        %1042 = vmatpush1.bf16.msra.mxu0 0
        %1043 = vmatprep.subr.bf16.mxu0 0
        %1044 = vmatpush1.bf16.msra.mxu0 0
        %1045 = vmatprep.subr.bf16.mxu0 0
        %1046 = vmatpush1.bf16.msra.mxu0 0
        %1047 = vmatprep.subr.bf16.mxu0 0
        %1048 = vmatpush1.bf16.msra.mxu0 0
        %1049 = vmatprep.mubr.bf16.mxu0 0
        %1050 = vmatmul.mubr.bf16.gmra.mrb[0].mxu0 %v1012
        %v1051 = vpop.f32.mrb[0].mxu0
        %v1052 = vadd.f32 0.0, %v1051
        %v1053 = vpop.f32.mrb[0].mxu0
        %v1054 = vpop.f32.mrb[0].mxu0
        %v1055 = vpop.f32.mrb[0].mxu0
        %1056 = vdwg.mxu0
        %1057 = vrot.lane.b32.xlu0 %v720, 104
        %v1058 = vpop.permute.xlu0 %1057
        %1059 = vrot.lane.b32.xlu0 %v721, 72
        %v1060 = vpop.permute.xlu0 %1059
        %v1062 = vsel %vm725, %v1058, 0
        %v1065 = vsel %vm725, %v1060, 0
        %1067 = vmatprep.subr.bf16.mxu0 0
        %1068 = vmatpush1.bf16.xpose.msra.mxu0 %v1065
        %1069 = vmatprep.subr.bf16.mxu0 0
        %1070 = vmatpush1.bf16.xpose.msra.mxu0 0
        %1071 = vmatprep.subr.bf16.mxu0 0
        %1072 = vmatpush1.bf16.xpose.msra.mxu0 0
        %1073 = vmatprep.subr.bf16.mxu0 0
        %1074 = vmatpush1.bf16.xpose.msra.mxu0 0
        %1075 = vmatprep.subr.bf16.mxu0 0
        %1076 = vmatpush1.bf16.xpose.msra.mxu0 0
        %1077 = vmatprep.subr.bf16.mxu0 0
        %1078 = vmatpush1.bf16.xpose.msra.mxu0 0
        %1079 = vmatprep.subr.bf16.mxu0 0
        %1080 = vmatpush1.bf16.xpose.msra.mxu0 0
        %1081 = vmatprep.subr.bf16.mxu0 0
        %1082 = vmatpush1.bf16.xpose.msra.mxu0 0
        %1083 = vmatprep.subr.bf16.mxu0 0
        %1084 = vmatpush1.bf16.xpose.msra.mxu0 0
        %1085 = vmatprep.subr.bf16.mxu0 0
        %1086 = vmatpush1.bf16.xpose.msra.mxu0 0
        %1087 = vmatprep.subr.bf16.mxu0 0
        %1088 = vmatpush1.bf16.xpose.msra.mxu0 0
        %1089 = vmatprep.subr.bf16.mxu0 0
        %1090 = vmatpush1.bf16.xpose.msra.mxu0 0
        %1091 = vmatprep.subr.bf16.mxu0 0
        %1092 = vmatpush1.bf16.xpose.msra.mxu0 0
        %1093 = vmatprep.subr.bf16.mxu0 0
        %1094 = vmatpush1.bf16.xpose.msra.mxu0 0
        %1095 = vmatprep.subr.bf16.mxu0 0
        %1096 = vmatpush1.bf16.xpose.msra.mxu0 0
        %1097 = vmatprep.subr.bf16.mxu0 0
        %1098 = vmatpush1.bf16.xpose.msra.mxu0 0
        %1099 = vmatprep.mubr.bf16.mxu0 0
        %1100 = vmatmul.mubr.bf16.gmra.mrb[0].mxu0 %v1062
        %v1101 = vpop.f32.mrb[0].mxu0
        %v1102 = vadd.f32 0.0, %v1101
        %v1103 = vpop.f32.mrb[0].mxu0
        %v1104 = vpop.f32.mrb[0].mxu0
        %v1105 = vpop.f32.mrb[0].mxu0
        %1106 = vdwg.mxu0
        %v1107 = vsel %vm718, %v1102, -1e+30
        %v1108 = vsel %vm725, %v1107, -inf
        %1109 = vmax.xlane.f32.xlu0 %v1108
        %v1110 = vpop.xlane.xlu0 %1109
        %v1111 = vsub.f32 %v1107, %v1110
        %v1112 = vmul.f32 %v1111, 1.442695
        %v1113 = vpow.pop %v1112
        %v1114 = vsel %vm725, %v1113, 0.0
        %1115 = vadd.xlane.f32.xlu0 %v1114
        %v1116 = vpop.xlane.xlu0 %1115
        %v1117 = vrcp.pop %v1116
        %v1118 = vmul.f32 %v1113, %v1117
        %v1119 = vpack.c.bf16 %v1118, %v1118
        %1120 = vrot.lane.b32.xlu0 %v721, 40
        %v1121 = vpop.permute.xlu0 %1120
        %v1123 = vsel %vm725, %v1119, 0
        %v1126 = vsel %vm790, %v1121, 0
        %1128 = vmatprep.subr.bf16.mxu0 0
        %1129 = vmatpush1.bf16.msra.mxu0 %v1126
        %1130 = vmatprep.subr.bf16.mxu0 0
        %1131 = vmatpush1.bf16.msra.mxu0 0
        %1132 = vmatprep.subr.bf16.mxu0 0
        %1133 = vmatpush1.bf16.msra.mxu0 0
        %1134 = vmatprep.subr.bf16.mxu0 0
        %1135 = vmatpush1.bf16.msra.mxu0 0
        %1136 = vmatprep.subr.bf16.mxu0 0
        %1137 = vmatpush1.bf16.msra.mxu0 0
        %1138 = vmatprep.subr.bf16.mxu0 0
        %1139 = vmatpush1.bf16.msra.mxu0 0
        %1140 = vmatprep.subr.bf16.mxu0 0
        %1141 = vmatpush1.bf16.msra.mxu0 0
        %1142 = vmatprep.subr.bf16.mxu0 0
        %1143 = vmatpush1.bf16.msra.mxu0 0
        %1144 = vmatprep.subr.bf16.mxu0 0
        %1145 = vmatpush1.bf16.msra.mxu0 0
        %1146 = vmatprep.subr.bf16.mxu0 0
        %1147 = vmatpush1.bf16.msra.mxu0 0
        %1148 = vmatprep.subr.bf16.mxu0 0
        %1149 = vmatpush1.bf16.msra.mxu0 0
        %1150 = vmatprep.subr.bf16.mxu0 0
        %1151 = vmatpush1.bf16.msra.mxu0 0
        %1152 = vmatprep.subr.bf16.mxu0 0
        %1153 = vmatpush1.bf16.msra.mxu0 0
        %1154 = vmatprep.subr.bf16.mxu0 0
        %1155 = vmatpush1.bf16.msra.mxu0 0
        %1156 = vmatprep.subr.bf16.mxu0 0
        %1157 = vmatpush1.bf16.msra.mxu0 0
        %1158 = vmatprep.subr.bf16.mxu0 0
        %1159 = vmatpush1.bf16.msra.mxu0 0
        %1160 = vmatprep.mubr.bf16.mxu0 0
        %1161 = vmatmul.mubr.bf16.gmra.mrb[0].mxu0 %v1123
        %v1162 = vpop.f32.mrb[0].mxu0
        %v1163 = vadd.f32 0.0, %v1162
        %v1164 = vpop.f32.mrb[0].mxu0
        %v1165 = vpop.f32.mrb[0].mxu0
        %v1166 = vpop.f32.mrb[0].mxu0
        %1167 = vdwg.mxu0
        %1169 = vrot.lane.b32.xlu0 %v941, 8
        %v1170 = vpop.permute.xlu0 %1169
        %1173 = vrot.lane.b32.xlu0 %v1052, 16
        %v1174 = vpop.permute.xlu0 %1173
        %1177 = vrot.lane.b32.xlu0 %v1163, 24
        %v1178 = vpop.permute.xlu0 %1177
        %v1180 = vsel %vm725, %v829, %v1170
        %vm1181 = vcmask 130048
        %v1182 = vsel %vm1181, %v1180, %v1174
        %vm1183 = vcmask 195584
        %v1184 = vsel %vm1183, %v1182, %v1178
        %v1185 = vpack.c.bf16 %v1184, %v1184
        %v1186 = vld [vmem:[#allocation11] sm:$0xf]
        %v1187 = vld [vmem:[#allocation11 + $0x4] sm:$0xf]
        %v1188 = vld [vmem:[#allocation11 + $0x8] sm:$0xf]
        %v1189 = vld [vmem:[#allocation11 + $0xc] sm:$0xf]
        %v1194 = vunpack.c.l.b16 %v1186
        %v1195 = vunpack.c.l.b16 %v1187
        %v1196 = vunpack.c.l.b16 %v1188
        %v1197 = vunpack.c.l.b16 %v1189
        %v1198 = vpack.c.b16 %v1195, %v1194
        %v1199 = vpack.c.b16 %v1197, %v1196
        %v1203 = vsel %vm618, %v1185, 0
        %1205 = vmatprep.subr.bf16.mxu0 0
        %1206 = vmatpush1.bf16.msra.mxu0 %v1198
        %1207 = vmatprep.subr.bf16.mxu0 0
        %1208 = vmatpush1.bf16.msra.mxu0 %v1199
        %1209 = vmatprep.subr.bf16.mxu0 0
        %1210 = vmatpush1.bf16.msra.mxu0 0
        %1211 = vmatprep.subr.bf16.mxu0 0
        %1212 = vmatpush1.bf16.msra.mxu0 0
        %1213 = vmatprep.subr.bf16.mxu0 0
        %1214 = vmatpush1.bf16.msra.mxu0 0
        %1215 = vmatprep.subr.bf16.mxu0 0
        %1216 = vmatpush1.bf16.msra.mxu0 0
        %1217 = vmatprep.subr.bf16.mxu0 0
        %1218 = vmatpush1.bf16.msra.mxu0 0
        %1219 = vmatprep.subr.bf16.mxu0 0
        %1220 = vmatpush1.bf16.msra.mxu0 0
        %1221 = vmatprep.subr.bf16.mxu0 0
        %1222 = vmatpush1.bf16.msra.mxu0 0
        %1223 = vmatprep.subr.bf16.mxu0 0
        %1224 = vmatpush1.bf16.msra.mxu0 0
        %1225 = vmatprep.subr.bf16.mxu0 0
        %1226 = vmatpush1.bf16.msra.mxu0 0
        %1227 = vmatprep.subr.bf16.mxu0 0
        %1228 = vmatpush1.bf16.msra.mxu0 0
        %1229 = vmatprep.subr.bf16.mxu0 0
        %1230 = vmatpush1.bf16.msra.mxu0 0
        %1231 = vmatprep.subr.bf16.mxu0 0
        %1232 = vmatpush1.bf16.msra.mxu0 0
        %1233 = vmatprep.subr.bf16.mxu0 0
        %1234 = vmatpush1.bf16.msra.mxu0 0
        %1235 = vmatprep.subr.bf16.mxu0 0
        %1236 = vmatpush1.bf16.msra.mxu0 0
        %1237 = vmatprep.mubr.bf16.mxu0 0
        %1238 = vmatmul.mubr.bf16.gmra.mrb[0].mxu0 %v1203
        %v1239 = vpop.f32.mrb[0].mxu0
        %v1240 = vadd.f32 0.0, %v1239
        %v1241 = vpop.f32.mrb[0].mxu0
        %v1242 = vpop.f32.mrb[0].mxu0
        %v1243 = vpop.f32.mrb[0].mxu0
        %1244 = vdwg.mxu0
        %v1245 = vadd.f32 %v615, %v1240
        %v1246 = vld [vmem:[#allocation13] sm:$0x1]
        %v1248 = vlaneseq
        %v1249 = vshrl.u32 %v1248, 7
        %v1250 = vsub.s32 0, %v1249
        %v1251 = vrot.slane %v1246, %v1250
        %v1253 = vadd.f32 %v1245, %v1251
        %v1254 = vld [vmem:[#allocation14] sm:$0x1]
        %v1255 = vld [vmem:[#allocation16] sm:$0x1]
        %v1256 = vsel %vm618, %v1253, 0.0
        %1257 = vadd.xlane.f32.xlu0 %v1256
        %v1258 = vpop.xlane.xlu0 %1257
        %v1259 = vmul.f32 %v1258, %v622
        %v1260 = vsub.f32 %v1253, %v1259
        %v1261 = vmul.f32 %v1260, %v1260
        %v1262 = vsel %vm618, %v1261, 0.0
        %1263 = vadd.xlane.f32.xlu0 %v1262
        %v1264 = vpop.xlane.xlu0 %1263
        %v1265 = vmul.f32 %v1264, %v622
        %v1266 = vadd.f32 %v1265, 1e-05
        %v1267 = vrsqrt.pop %v1266
        %v1268 = vmul.f32 %v1260, %v1267
        %v1270 = vlaneseq
        %v1271 = vshrl.u32 %v1270, 7
        %v1272 = vsub.s32 0, %v1271
        %v1273 = vrot.slane %v1254, %v1272
        %v1275 = vmul.f32 %v1268, %v1273
        %v1277 = vlaneseq
        %v1278 = vshrl.u32 %v1277, 7
        %v1279 = vsub.s32 0, %v1278
        %v1280 = vrot.slane %v1255, %v1279
        %v1282 = vadd.f32 %v1275, %v1280
        %v1283 = vpack.c.bf16 %v1282, %v1282
        %v1284 = vld [vmem:[#allocation17] sm:$0xf]
        %v1285 = vld [vmem:[#allocation17 + $0x4] sm:$0xf]
        %v1286 = vld [vmem:[#allocation17 + $0x8] sm:$0xf]
        %v1287 = vld [vmem:[#allocation17 + $0xc] sm:$0xf]
        %v1288 = vld [vmem:[#allocation19] sm:$0x1]
        %v1290 = vlaneseq
        %v1291 = vshrl.u32 %v1290, 7
        %v1292 = vsub.s32 0, %v1291
        %v1293 = vrot.slane %v1288, %v1292
        %v1299 = vunpack.c.l.b16 %v1284
        %v1300 = vunpack.c.l.b16 %v1285
        %v1301 = vunpack.c.l.b16 %v1286
        %v1302 = vunpack.c.l.b16 %v1287
        %v1303 = vpack.c.b16 %v1300, %v1299
        %v1304 = vpack.c.b16 %v1302, %v1301
        %v1308 = vsel %vm618, %v1283, 0
        %1310 = vmatprep.subr.bf16.mxu0 0
        %1311 = vmatpush1.bf16.msra.mxu0 %v1303
        %1312 = vmatprep.subr.bf16.mxu0 0
        %1313 = vmatpush1.bf16.msra.mxu0 %v1304
        %1314 = vmatprep.subr.bf16.mxu0 0
        %1315 = vmatpush1.bf16.msra.mxu0 0
        %1316 = vmatprep.subr.bf16.mxu0 0
        %1317 = vmatpush1.bf16.msra.mxu0 0
        %1318 = vmatprep.subr.bf16.mxu0 0
        %1319 = vmatpush1.bf16.msra.mxu0 0
        %1320 = vmatprep.subr.bf16.mxu0 0
        %1321 = vmatpush1.bf16.msra.mxu0 0
        %1322 = vmatprep.subr.bf16.mxu0 0
        %1323 = vmatpush1.bf16.msra.mxu0 0
        %1324 = vmatprep.subr.bf16.mxu0 0
        %1325 = vmatpush1.bf16.msra.mxu0 0
        %1326 = vmatprep.subr.bf16.mxu0 0
        %1327 = vmatpush1.bf16.msra.mxu0 0
        %1328 = vmatprep.subr.bf16.mxu0 0
        %1329 = vmatpush1.bf16.msra.mxu0 0
        %1330 = vmatprep.subr.bf16.mxu0 0
        %1331 = vmatpush1.bf16.msra.mxu0 0
        %1332 = vmatprep.subr.bf16.mxu0 0
        %1333 = vmatpush1.bf16.msra.mxu0 0
        %1334 = vmatprep.subr.bf16.mxu0 0
        %1335 = vmatpush1.bf16.msra.mxu0 0
        %1336 = vmatprep.subr.bf16.mxu0 0
        %1337 = vmatpush1.bf16.msra.mxu0 0
        %1338 = vmatprep.subr.bf16.mxu0 0
        %1339 = vmatpush1.bf16.msra.mxu0 0
        %1340 = vmatprep.subr.bf16.mxu0 0
        %1341 = vmatpush1.bf16.msra.mxu0 0
        %1342 = vmatprep.mubr.bf16.mxu0 0
        %1343 = vmatmul.mubr.bf16.gmra.mrb[0].mxu0 %v1308
        %v1344 = vpop.f32.mrb[0].mxu0
        %v1345 = vadd.f32 %v1293, %v1344
        %v1346 = vpop.f32.mrb[0].mxu0
        %v1347 = vpop.f32.mrb[0].mxu0
        %v1348 = vpop.f32.mrb[0].mxu0
        %1349 = vdwg.mxu0
        %v1350 = vmul.f32 %v1345, 0.5
        %v1351 = vmul.f32 %v1345, 0.044715
        %v1352 = vmul.f32 %v1351, %v1345
        %v1353 = vmul.f32 %v1352, %v1345
        %v1354 = vadd.f32 %v1345, %v1353
        %v1355 = vmul.f32 %v1354, 0.7978846
        %v1356 = vtanh.pop %v1355
        %v1357 = vadd.f32 %v1356, 1.0
        %v1358 = vmul.f32 %v1350, %v1357
        %v1359 = vpack.c.bf16 %v1358, %v1358
        %v1360 = vld [vmem:[#allocation20] sm:$0xf]
        %v1361 = vld [vmem:[#allocation20 + $0x4] sm:$0xf]
        %v1362 = vld [vmem:[#allocation20 + $0x8] sm:$0xf]
        %v1363 = vld [vmem:[#allocation20 + $0xc] sm:$0xf]
        %v1364 = vld [vmem:[#allocation20 + $0x10] sm:$0xf]
        %v1365 = vld [vmem:[#allocation20 + $0x14] sm:$0xf]
        %v1366 = vld [vmem:[#allocation20 + $0x18] sm:$0xf]
        %v1367 = vld [vmem:[#allocation20 + $0x1c] sm:$0xf]
        %v1368 = vld [vmem:[#allocation20 + $0x20] sm:$0xf]
        %v1369 = vld [vmem:[#allocation20 + $0x24] sm:$0xf]
        %v1370 = vld [vmem:[#allocation20 + $0x28] sm:$0xf]
        %v1371 = vld [vmem:[#allocation20 + $0x2c] sm:$0xf]
        %v1372 = vld [vmem:[#allocation20 + $0x30] sm:$0xf]
        %v1373 = vld [vmem:[#allocation20 + $0x34] sm:$0xf]
        %v1374 = vld [vmem:[#allocation20 + $0x38] sm:$0xf]
        %v1375 = vld [vmem:[#allocation20 + $0x3c] sm:$0xf]
        %v1376 = vld [vmem:[#allocation22] sm:$0x1]
        %v1378 = vlaneseq
        %v1379 = vshrl.u32 %v1378, 7
        %v1380 = vsub.s32 0, %v1379
        %v1381 = vrot.slane %v1376, %v1380
        %v1399 = vunpack.c.l.b16 %v1360
        %v1400 = vunpack.c.l.b16 %v1361
        %v1401 = vunpack.c.l.b16 %v1362
        %v1402 = vunpack.c.l.b16 %v1363
        %v1403 = vunpack.c.l.b16 %v1364
        %v1404 = vunpack.c.l.b16 %v1365
        %v1405 = vunpack.c.l.b16 %v1366
        %v1406 = vunpack.c.l.b16 %v1367
        %v1407 = vunpack.c.l.b16 %v1368
        %v1408 = vunpack.c.l.b16 %v1369
        %v1409 = vunpack.c.l.b16 %v1370
        %v1410 = vunpack.c.l.b16 %v1371
        %v1411 = vunpack.c.l.b16 %v1372
        %v1412 = vunpack.c.l.b16 %v1373
        %v1413 = vunpack.c.l.b16 %v1374
        %v1414 = vunpack.c.l.b16 %v1375
        %v1415 = vpack.c.b16 %v1400, %v1399
        %v1416 = vpack.c.b16 %v1402, %v1401
        %v1417 = vpack.c.b16 %v1404, %v1403
        %v1418 = vpack.c.b16 %v1406, %v1405
        %v1419 = vpack.c.b16 %v1408, %v1407
        %v1420 = vpack.c.b16 %v1410, %v1409
        %v1421 = vpack.c.b16 %v1412, %v1411
        %v1422 = vpack.c.b16 %v1414, %v1413
        %1431 = vmatprep.subr.bf16.mxu0 0
        %1432 = vmatpush1.bf16.msra.mxu0 %v1415
        %1433 = vmatprep.subr.bf16.mxu0 0
        %1434 = vmatpush1.bf16.msra.mxu0 %v1416
        %1435 = vmatprep.subr.bf16.mxu0 0
        %1436 = vmatpush1.bf16.msra.mxu0 %v1417
        %1437 = vmatprep.subr.bf16.mxu0 0
        %1438 = vmatpush1.bf16.msra.mxu0 %v1418
        %1439 = vmatprep.subr.bf16.mxu0 0
        %1440 = vmatpush1.bf16.msra.mxu0 %v1419
        %1441 = vmatprep.subr.bf16.mxu0 0
        %1442 = vmatpush1.bf16.msra.mxu0 %v1420
        %1443 = vmatprep.subr.bf16.mxu0 0
        %1444 = vmatpush1.bf16.msra.mxu0 %v1421
        %1445 = vmatprep.subr.bf16.mxu0 0
        %1446 = vmatpush1.bf16.msra.mxu0 %v1422
        %1447 = vmatprep.subr.bf16.mxu0 0
        %1448 = vmatpush1.bf16.msra.mxu0 0
        %1449 = vmatprep.subr.bf16.mxu0 0
        %1450 = vmatpush1.bf16.msra.mxu0 0
        %1451 = vmatprep.subr.bf16.mxu0 0
        %1452 = vmatpush1.bf16.msra.mxu0 0
        %1453 = vmatprep.subr.bf16.mxu0 0
        %1454 = vmatpush1.bf16.msra.mxu0 0
        %1455 = vmatprep.subr.bf16.mxu0 0
        %1456 = vmatpush1.bf16.msra.mxu0 0
        %1457 = vmatprep.subr.bf16.mxu0 0
        %1458 = vmatpush1.bf16.msra.mxu0 0
        %1459 = vmatprep.subr.bf16.mxu0 0
        %1460 = vmatpush1.bf16.msra.mxu0 0
        %1461 = vmatprep.subr.bf16.mxu0 0
        %1462 = vmatpush1.bf16.msra.mxu0 0
        %1463 = vmatprep.mubr.bf16.mxu0 0
        %1464 = vmatmul.mubr.bf16.gmra.mrb[0].mxu0 %v1359
        %v1465 = vpop.f32.mrb[0].mxu0
        %v1466 = vadd.f32 %v1381, %v1465
        %v1467 = vpop.f32.mrb[0].mxu0
        %v1468 = vpop.f32.mrb[0].mxu0
        %v1469 = vpop.f32.mrb[0].mxu0
        %1470 = vdwg.mxu0
        %v1471 = vadd.f32 %v1253, %v1466
        %1472 = vst.msk [vmem:[%s613] sm:$0xff] %vm618, %v1471
        %s1473 = sand.u32 %s322, 1
        %s1474 = scalar_lea.sflag [#allocation4], %s1473
        %s1475 = sand.u32 %s322, 1
        %s1476 = smul.addr %s1475, 8
        %s1477 = scalar_lea.vmem [#allocation23], %s1476
        // Predicated region
        $region125: #{tpu_custom_call.1} parent=71 // pred_check
          %p1478 = pneg %p332
        $region126: #{tpu_custom_call.1} parent=71 // pred_check_branch
          %1480 = sbr.rel (%p1478) target = $region128
        $region127: #{tpu_custom_call.1} parent=71 // pred_region
          %s1482 = ssub.s32 128, 128
          %1483 = vsyncadd %s1474, %s1482
          %s1484 = smul.addr %s36, 128
          %s1485 = scalar_lea.hbm %s13, %s1484
          %s1487 = sshll.u32 %s1477, 4
          %s1488 = int_to_ptr.vmem [resolvable:$true] %s1487
          %1490 = dma.vmem_to_hbm [thread:$0]  %s1488, 128, %s1485, %s1474
        $region128: #{tpu_custom_call.1} parent=71 // pred_fallthru
          _
      $region72: #{tpu_custom_call.1} parent=5 // pred_fallthru
        _
      %p1491 = scmp.le.s32.totalorder 2, %s31
      // Predicated region
      $region129: #{tpu_custom_call.1} parent=5 // pred_check
        %p1492 = pneg %p1491
      $region130: #{tpu_custom_call.1} parent=5 // pred_check_branch
        %1494 = sbr.rel (%p1492) target = $region132
      $region131: #{tpu_custom_call.1} parent=5 // pred_region
        %s1495 = ssub.s32 %s31, 2
        // Predicated region
        $region133: #{tpu_custom_call.1} parent=131 // pred_check
          %p1496 = pneg %p338
        $region134: #{tpu_custom_call.1} parent=131 // pred_check_branch
          %1498 = sbr.rel (%p1496) target = $region136
        $region135: #{tpu_custom_call.1} parent=131 // pred_region
          %s1499 = sand.u32 %s323, 1
          %s1500 = scalar_lea.sflag [#allocation4], %s1499
          %s1501 = sand.u32 %s323, 1
          %s1502 = smul.addr %s1501, 8
          %s1503 = scalar_lea.vmem [#allocation23], %s1502
          %1504 = dma.done %s1500, 128
        $region136: #{tpu_custom_call.1} parent=131 // pred_fallthru
          _
      $region132: #{tpu_custom_call.1} parent=5 // pred_fallthru
        _
    $region6: #{tpu_custom_call.1} parent=1 // loop_footer
      %s35 = sadd.s32 1, %s31
    $region7: #{tpu_custom_call.1} parent=1 // loop_footer_branch
      %30 = sbr.rel target = $region3
    $region8: #{tpu_custom_call.1} parent=1 // loop_exit
      _
    %1505 = vsyncpa [#allocation3], 1
    %s1506 = scalar_lea.sflag [#allocation3], 1
    %1507 = vsyncpa %s1506, 1
    %1508 = vsyncpa [#allocation6], 1
    %1509 = vsyncpa [#allocation9], 1
    %1510 = vsyncpa [#allocation12], 1
    %1511 = vsyncpa [#allocation15], 1
    %1512 = vsyncpa [#allocation18], 1
    %1513 = vsyncpa [#allocation21], 1
    %1514 = vsyncpa [#allocation4], 1
    %s1515 = scalar_lea.sflag [#allocation4], 1
    %1516 = vsyncpa %s1515, 1

</llo_original>
